<compile_context>
chip_gen: v7x
topology: tpu7x:2x2x1
jax: 0.10.0
libtpu: 0.0.40
codegen_flags: <defaults>
</compile_context>

<pallas_src>
import jax
import jax.numpy as jnp
from jax.experimental import pallas as pl
from jax.experimental.pallas import tpu as pltpu


def lumonet_kernel(x_ref,
                   w1_ref, b1_ref,
                   w2_ref, b2_ref,
                   w3_ref, b3_ref,
                   w4_ref, b4_ref,
                   out_ref):
    # fc1 + relu : bf16 MXU matmul, f32 accumulate, f32 epilogue on the VPU.
    h = jnp.dot(x_ref[...], w1_ref[...], preferred_element_type=jnp.float32)
    h = jnp.maximum(h + b1_ref[...], 0.0)
    # fc2 + relu
    h = jnp.dot(h.astype(jnp.bfloat16), w2_ref[...],
                preferred_element_type=jnp.float32)
    h = jnp.maximum(h + b2_ref[...], 0.0)
    # fc3 + relu
    h = jnp.dot(h.astype(jnp.bfloat16), w3_ref[...],
                preferred_element_type=jnp.float32)
    h = jnp.maximum(h + b3_ref[...], 0.0)
    # fc4 (out_features == 1): VPU multiply + lane reduction — an MXU matmul
    # here would only use one column and pay full push/drain latency.
    y = jnp.sum(h * w4_ref[...], axis=-1, keepdims=True) + b4_ref[0, 0]
    out_ref[...] = y


def lumonet_forward(x, params, *, block_b=256):
    """x: [B, 1000] float32; params: dict (bf16 transposed weights, f32 biases)."""
    B, F = x.shape
    w1, b1 = params["w1"], params["b1"]   # bf16 [1000,700], f32 [1,700]
    w2, b2 = params["w2"], params["b2"]   # bf16 [700,350],  f32 [1,350]
    w3, b3 = params["w3"], params["b3"]   # bf16 [350,dim],  f32 [1,dim]
    w4, b4 = params["w4"], params["b4"]   # f32  [1,dim],    f32 [1,1]

    # Cast activations once in the wrapper so the input DMA is also halved.
    x16 = x.astype(jnp.bfloat16)

    # Batch grid: one block if small, else 256-row (multiple-of-8) blocks.
    if B <= block_b:
        bb, Bp = B, B
    else:
        bb = block_b
        Bp = pl.cdiv(B, bb) * bb
        if Bp != B:
            x16 = jnp.pad(x16, ((0, Bp - B), (0, 0)))
    grid = (Bp // bb,)

    def resident(shape):
        # Whole-array block whose block index never changes -> fetched once,
        # stays VMEM-resident across all batch blocks.
        return pl.BlockSpec(shape, lambda i: (0,) * len(shape))

    out = pl.pallas_call(
        lumonet_kernel,
        out_shape=jax.ShapeDtypeStruct((Bp, 1), jnp.float32),
        grid=grid,
        in_specs=[
            pl.BlockSpec((bb, F), lambda i: (i, 0)),
            resident(w1.shape), resident(b1.shape),
            resident(w2.shape), resident(b2.shape),
            resident(w3.shape), resident(b3.shape),
            resident(w4.shape),
            pl.BlockSpec(memory_space=pltpu.MemorySpace.SMEM),   # scalar b4
        ],
        out_specs=pl.BlockSpec((bb, 1), lambda i: (i, 0)),
        compiler_params=pltpu.CompilerParams(
            dimension_semantics=("parallel",),
            vmem_limit_bytes=16 << 20),
    )(x16, w1, b1, w2, b2, w3, b3, w4, b4)

    # torch.squeeze drops all size-1 dims; we only drop the feature dim so a
    # batch of 1 still returns shape (1,) instead of a scalar.
    return jnp.squeeze(out[:B], axis=-1)


def init_params(key, dim):
    """Deterministic synthetic init matching nn.Linear shapes.
    PyTorch nn.Linear(in, out) has W:[out,in]; we store the transpose [in,out]
    (bf16 for the MXU layers, f32 row-vector for the final VPU dot)."""
    shapes = [(1000, 700), (700, 350), (350, dim), (dim, 1)]
    params = {}
    for i, (fin, fout) in enumerate(shapes, start=1):
        key, kw, kb = jax.random.split(key, 3)
        bound = 1.0 / jnp.sqrt(fin)
        w = jax.random.uniform(kw, (fin, fout), jnp.float32, -bound, bound)
        b = jax.random.uniform(kb, (1, fout), jnp.float32, -bound, bound)
        if i < 4:
            params[f"w{i}"] = w.astype(jnp.bfloat16)
            params[f"b{i}"] = b
        else:
            params["w4"] = w.reshape(1, fin)     # [1, dim] row, f32 (VPU path)
            params["b4"] = b.reshape(1, 1)       # scalar in SMEM
    return params


def lumonet_ref(x, params):
    """Pure-JAX reference replicating the kernel's mixed-precision math."""
    x16 = x.astype(jnp.bfloat16)
    h = jnp.maximum(jnp.dot(x16, params["w1"],
                            preferred_element_type=jnp.float32) + params["b1"], 0.0)
    h = jnp.maximum(jnp.dot(h.astype(jnp.bfloat16), params["w2"],
                            preferred_element_type=jnp.float32) + params["b2"], 0.0)
    h = jnp.maximum(jnp.dot(h.astype(jnp.bfloat16), params["w3"],
                            preferred_element_type=jnp.float32) + params["b3"], 0.0)
    y = jnp.sum(h * params["w4"], axis=-1, keepdims=True) + params["b4"][0, 0]
    return jnp.squeeze(y, axis=-1)


if __name__ == "__main__":
    key = jax.random.PRNGKey(0)
    kx, kp = jax.random.split(key)

    batch, dim = 8, 32
    x = jax.random.normal(kx, (batch, 1000), jnp.float32)
    params = init_params(kp, dim)

    out = jax.block_until_ready(lumonet_forward(x, params))
    ref = lumonet_ref(x, params)

    assert out.shape == (batch,), out.shape
    err = jnp.max(jnp.abs(out - ref))
    assert jnp.allclose(out, ref, atol=5e-3, rtol=5e-3), f"mismatch vs ref: {err}"

    print("KERNEL_OK")
</pallas_src>

<mosaic_0001>
module attributes {stable_mosaic.version = 11 : i64} {
  func.func @lumonet_kernel(%arg0: i32, %arg1: memref<8x1000xbf16, #tpu.memory_space<vmem>>, %arg2: memref<1000x700xbf16, #tpu.memory_space<vmem>>, %arg3: memref<1x700xf32, #tpu.memory_space<vmem>>, %arg4: memref<700x350xbf16, #tpu.memory_space<vmem>>, %arg5: memref<1x350xf32, #tpu.memory_space<vmem>>, %arg6: memref<350x32xbf16, #tpu.memory_space<vmem>>, %arg7: memref<1x32xf32, #tpu.memory_space<vmem>>, %arg8: memref<1x32xf32, #tpu.memory_space<vmem>>, %arg9: memref<1x1xf32, #tpu.memory_space<smem>>, %arg10: memref<8x1xf32, #tpu.memory_space<vmem>>) attributes {dimension_semantics = [#tpu.dimension_semantics<parallel>], iteration_bounds = array<i64: 1>, scalar_prefetch = 0 : i64, scratch_operands = 0 : i64, tpu.core_type = #tpu.core_type<tc>, window_params = [{transform_indices = @transform_0, window_bounds = array<i64: 8, 1000>}, {pipeline_mode = #tpu.pipeline_mode<synchronous>, transform_indices = @transform_1, window_bounds = array<i64: 1000, 700>}, {pipeline_mode = #tpu.pipeline_mode<synchronous>, transform_indices = @transform_2, window_bounds = array<i64: 1, 700>}, {pipeline_mode = #tpu.pipeline_mode<synchronous>, transform_indices = @transform_3, window_bounds = array<i64: 700, 350>}, {pipeline_mode = #tpu.pipeline_mode<synchronous>, transform_indices = @transform_4, window_bounds = array<i64: 1, 350>}, {pipeline_mode = #tpu.pipeline_mode<synchronous>, transform_indices = @transform_5, window_bounds = array<i64: 350, 32>}, {pipeline_mode = #tpu.pipeline_mode<synchronous>, transform_indices = @transform_6, window_bounds = array<i64: 1, 32>}, {pipeline_mode = #tpu.pipeline_mode<synchronous>, transform_indices = @transform_7, window_bounds = array<i64: 1, 32>}, {transform_indices = @transform_8, window_bounds = array<i64: 1, 1>}, {transform_indices = @transform_9, window_bounds = array<i64: 8, 1>}]} {
    %c0 = arith.constant 0 : index
    %c0_0 = arith.constant 0 : index
    %0 = vector.load %arg1[%c0, %c0_0] : memref<8x1000xbf16, #tpu.memory_space<vmem>>, vector<8x1000xbf16>
    %c0_1 = arith.constant 0 : index
    %c0_2 = arith.constant 0 : index
    %1 = vector.load %arg2[%c0_1, %c0_2] : memref<1000x700xbf16, #tpu.memory_space<vmem>>, vector<1000x700xbf16>
    %cst = arith.constant dense<0.000000e+00> : vector<8x700xf32>
    %2 = tpu.matmul %0, %1, %cst {dimension_numbers = #tpu.dot_dimension_numbers<[1], [0], [0], [1], [0, 0, 1, 1], [], []>} : vector<8x1000xbf16>, vector<1000x700xbf16>, vector<8x700xf32> -> vector<8x700xf32>
    %c0_3 = arith.constant 0 : index
    %c0_4 = arith.constant 0 : index
    %3 = vector.load %arg3[%c0_3, %c0_4] : memref<1x700xf32, #tpu.memory_space<vmem>>, vector<1x700xf32>
    %4 = vector.broadcast %3 : vector<1x700xf32> to vector<8x700xf32>
    %5 = arith.addf %2, %4 : vector<8x700xf32>
    %cst_5 = arith.constant 0.000000e+00 : f32
    %6 = vector.broadcast %cst_5 : f32 to vector<8x700xf32>
    %7 = arith.maximumf %5, %6 : vector<8x700xf32>
    %8 = arith.truncf %7 : vector<8x700xf32> to vector<8x700xbf16>
    %c0_6 = arith.constant 0 : index
    %c0_7 = arith.constant 0 : index
    %9 = vector.load %arg4[%c0_6, %c0_7] : memref<700x350xbf16, #tpu.memory_space<vmem>>, vector<700x350xbf16>
    %cst_8 = arith.constant dense<0.000000e+00> : vector<8x350xf32>
    %10 = tpu.matmul %8, %9, %cst_8 {dimension_numbers = #tpu.dot_dimension_numbers<[1], [0], [0], [1], [0, 0, 1, 1], [], []>} : vector<8x700xbf16>, vector<700x350xbf16>, vector<8x350xf32> -> vector<8x350xf32>
    %c0_9 = arith.constant 0 : index
    %c0_10 = arith.constant 0 : index
    %11 = vector.load %arg5[%c0_9, %c0_10] : memref<1x350xf32, #tpu.memory_space<vmem>>, vector<1x350xf32>
    %12 = vector.broadcast %11 : vector<1x350xf32> to vector<8x350xf32>
    %13 = arith.addf %10, %12 : vector<8x350xf32>
    %cst_11 = arith.constant 0.000000e+00 : f32
    %14 = vector.broadcast %cst_11 : f32 to vector<8x350xf32>
    %15 = arith.maximumf %13, %14 : vector<8x350xf32>
    %16 = arith.truncf %15 : vector<8x350xf32> to vector<8x350xbf16>
    %c0_12 = arith.constant 0 : index
    %c0_13 = arith.constant 0 : index
    %17 = vector.load %arg6[%c0_12, %c0_13] : memref<350x32xbf16, #tpu.memory_space<vmem>>, vector<350x32xbf16>
    %cst_14 = arith.constant dense<0.000000e+00> : vector<8x32xf32>
    %18 = tpu.matmul %16, %17, %cst_14 {dimension_numbers = #tpu.dot_dimension_numbers<[1], [0], [0], [1], [0, 0, 1, 1], [], []>} : vector<8x350xbf16>, vector<350x32xbf16>, vector<8x32xf32> -> vector<8x32xf32>
    %c0_15 = arith.constant 0 : index
    %c0_16 = arith.constant 0 : index
    %19 = vector.load %arg7[%c0_15, %c0_16] : memref<1x32xf32, #tpu.memory_space<vmem>>, vector<1x32xf32>
    %20 = vector.broadcast %19 : vector<1x32xf32> to vector<8x32xf32>
    %21 = arith.addf %18, %20 : vector<8x32xf32>
    %cst_17 = arith.constant 0.000000e+00 : f32
    %22 = vector.broadcast %cst_17 : f32 to vector<8x32xf32>
    %23 = arith.maximumf %21, %22 : vector<8x32xf32>
    %c0_18 = arith.constant 0 : index
    %c0_19 = arith.constant 0 : index
    %24 = vector.load %arg8[%c0_18, %c0_19] : memref<1x32xf32, #tpu.memory_space<vmem>>, vector<1x32xf32>
    %25 = vector.broadcast %24 : vector<1x32xf32> to vector<8x32xf32>
    %26 = arith.mulf %23, %25 : vector<8x32xf32>
    %cst_20 = arith.constant dense<0.000000e+00> : vector<8xf32>
    %27 = vector.multi_reduction <add>, %26, %cst_20 [1] : vector<8x32xf32> to vector<8xf32>
    %28 = vector.shape_cast %27 : vector<8xf32> to vector<8x1xf32>
    %c0_21 = arith.constant 0 : index
    %c0_22 = arith.constant 0 : index
    %29 = memref.load %arg9[%c0_21, %c0_22] : memref<1x1xf32, #tpu.memory_space<smem>>
    %30 = vector.broadcast %29 : f32 to vector<8x1xf32>
    %31 = arith.addf %28, %30 : vector<8x1xf32>
    %c0_23 = arith.constant 0 : index
    %c0_24 = arith.constant 0 : index
    %32 = vector.load %arg10[%c0_23, %c0_24] : memref<8x1xf32, #tpu.memory_space<vmem>>, vector<8x1xf32>
    tpu.vector_store %arg10[%c0_23, %c0_24], %31 {strides = array<i32>} : memref<8x1xf32, #tpu.memory_space<vmem>>, vector<8x1xf32>,
    return
  }
  func.func @transform_0(%arg0: i32) -> (i32, i32) {
    %c0_i32 = arith.constant 0 : i32
    %c0_i32_0 = arith.constant 0 : i32
    return %arg0, %c0_i32 : i32, i32
  }
  func.func @transform_1(%arg0: i32) -> (i32, i32) {
    %c0_i32 = arith.constant 0 : i32
    %c0_i32_0 = arith.constant 0 : i32
    %c0_i32_1 = arith.constant 0 : i32
    return %c0_i32, %c0_i32_0 : i32, i32
  }
  func.func @transform_2(%arg0: i32) -> (i32, i32) {
    %c0_i32 = arith.constant 0 : i32
    %c0_i32_0 = arith.constant 0 : i32
    %c0_i32_1 = arith.constant 0 : i32
    return %c0_i32, %c0_i32_0 : i32, i32
  }
  func.func @transform_3(%arg0: i32) -> (i32, i32) {
    %c0_i32 = arith.constant 0 : i32
    %c0_i32_0 = arith.constant 0 : i32
    %c0_i32_1 = arith.constant 0 : i32
    return %c0_i32, %c0_i32_0 : i32, i32
  }
  func.func @transform_4(%arg0: i32) -> (i32, i32) {
    %c0_i32 = arith.constant 0 : i32
    %c0_i32_0 = arith.constant 0 : i32
    %c0_i32_1 = arith.constant 0 : i32
    return %c0_i32, %c0_i32_0 : i32, i32
  }
  func.func @transform_5(%arg0: i32) -> (i32, i32) {
    %c0_i32 = arith.constant 0 : i32
    %c0_i32_0 = arith.constant 0 : i32
    %c0_i32_1 = arith.constant 0 : i32
    return %c0_i32, %c0_i32_0 : i32, i32
  }
  func.func @transform_6(%arg0: i32) -> (i32, i32) {
    %c0_i32 = arith.constant 0 : i32
    %c0_i32_0 = arith.constant 0 : i32
    %c0_i32_1 = arith.constant 0 : i32
    return %c0_i32, %c0_i32_0 : i32, i32
  }
  func.func @transform_7(%arg0: i32) -> (i32, i32) {
    %c0_i32 = arith.constant 0 : i32
    %c0_i32_0 = arith.constant 0 : i32
    %c0_i32_1 = arith.constant 0 : i32
    return %c0_i32, %c0_i32_0 : i32, i32
  }
  func.func @transform_8(%arg0: i32) -> (i32, i32) {
    %c0_i32 = arith.constant 0 : i32
    %c0_i32_0 = arith.constant 0 : i32
    %c0_i32_1 = arith.constant 0 : i32
    return %c0_i32, %c0_i32_0 : i32, i32
  }
  func.func @transform_9(%arg0: i32) -> (i32, i32) {
    %c0_i32 = arith.constant 0 : i32
    %c0_i32_0 = arith.constant 0 : i32
    return %arg0, %c0_i32 : i32, i32
  }
}

</mosaic_0001>

<llo_original>
// kernel: tpu_custom_call.1
$region0: #{tpu_custom_call.1}
  #allocation0 [shape = 'u32[]', space=smem, size = 0x4, offset = 0x4, fixed_abs, tag = 'smem constant byte address 0x4 - core index']
  #allocation1 [shape = 'u32[144,128]{1,0:T(1,128)}', space=vmem, size = 0x12000, scoped, tag = 'internal scratch']
  #allocation2 [shape = 'f32[1,1]{1,0:T(1,128)S(6)}', space=smem, size = 0x200, scoped, tag = 'scoped memory for tpu_custom_call.1']
  %s0 = inlined_call_operand.vmem [shape: bf16[8,1000], index: 0, kind: input, shape index: {}]
  %s1 = inlined_call_operand.vmem [shape: bf16[1000,700], index: 1, kind: input, shape index: {}]
  %s2 = inlined_call_operand.vmem [shape: f32[1,700], index: 2, kind: input, shape index: {}]
  %s3 = inlined_call_operand.vmem [shape: bf16[700,350], index: 3, kind: input, shape index: {}]
  %s4 = inlined_call_operand.vmem [shape: f32[1,350], index: 4, kind: input, shape index: {}]
  %s5 = inlined_call_operand.vmem [shape: bf16[350,32], index: 5, kind: input, shape index: {}]
  %s6 = inlined_call_operand.vmem [shape: f32[1,32], index: 6, kind: input, shape index: {}]
  %s7 = inlined_call_operand.vmem [shape: f32[1,32], index: 7, kind: input, shape index: {}]
  %s8 = inlined_call_operand.<no memory space> [shape: f32[1,1], index: 8, kind: input, shape index: {}]
  %s9 = inlined_call_operand.vmem [shape: f32[8,1], index: 9, kind: output, shape index: {}]
  %s10 = sld [smem:[#allocation0]]
  $region46: #{tpu_custom_call.1} parent=0
    _
  %s12 = ssub.s32 1, %s10
  %s13 = scalar_select 0, %s12, %s10
  %14 = sst [smem:[#allocation2]] %s8
  // Predicated region
  $region2: #{tpu_custom_call.1} parent=0 // pred_check
    _
  $region3: #{tpu_custom_call.1} parent=0 // pred_check_branch
    %16 = sbr.rel (0) target = $region5
  $region4: #{tpu_custom_call.1} parent=0 // pred_region
    _
  $region5: #{tpu_custom_call.1} parent=0 // pred_fallthru
    _
  // Predicated region
  $region6: #{tpu_custom_call.1} parent=0 // pred_check
    _
  $region7: #{tpu_custom_call.1} parent=0 // pred_check_branch
    %18 = sbr.rel (0) target = $region9
  $region8: #{tpu_custom_call.1} parent=0 // pred_region
    _
  $region9: #{tpu_custom_call.1} parent=0 // pred_fallthru
    _
  // Predicated region
  $region10: #{tpu_custom_call.1} parent=0 // pred_check
    _
  $region11: #{tpu_custom_call.1} parent=0 // pred_check_branch
    %20 = sbr.rel (0) target = $region13
  $region12: #{tpu_custom_call.1} parent=0 // pred_region
    _
  $region13: #{tpu_custom_call.1} parent=0 // pred_fallthru
    _
  // Predicated region
  $region14: #{tpu_custom_call.1} parent=0 // pred_check
    _
  $region15: #{tpu_custom_call.1} parent=0 // pred_check_branch
    %22 = sbr.rel (0) target = $region17
  $region16: #{tpu_custom_call.1} parent=0 // pred_region
    _
  $region17: #{tpu_custom_call.1} parent=0 // pred_fallthru
    _
  // Predicated region
  $region18: #{tpu_custom_call.1} parent=0 // pred_check
    _
  $region19: #{tpu_custom_call.1} parent=0 // pred_check_branch
    %24 = sbr.rel (0) target = $region21
  $region20: #{tpu_custom_call.1} parent=0 // pred_region
    _
  $region21: #{tpu_custom_call.1} parent=0 // pred_fallthru
    _
  // Predicated region
  $region22: #{tpu_custom_call.1} parent=0 // pred_check
    _
  $region23: #{tpu_custom_call.1} parent=0 // pred_check_branch
    %26 = sbr.rel (0) target = $region25
  $region24: #{tpu_custom_call.1} parent=0 // pred_region
    _
  $region25: #{tpu_custom_call.1} parent=0 // pred_fallthru
    _
  // Predicated region
  $region26: #{tpu_custom_call.1} parent=0 // pred_check
    _
  $region27: #{tpu_custom_call.1} parent=0 // pred_check_branch
    %28 = sbr.rel (0) target = $region29
  $region28: #{tpu_custom_call.1} parent=0 // pred_region
    _
  $region29: #{tpu_custom_call.1} parent=0 // pred_fallthru
    _
  // Predicated region
  $region30: #{tpu_custom_call.1} parent=0 // pred_check
    _
  $region31: #{tpu_custom_call.1} parent=0 // pred_check_branch
    %30 = sbr.rel (0) target = $region33
  $region32: #{tpu_custom_call.1} parent=0 // pred_region
    _
  $region33: #{tpu_custom_call.1} parent=0 // pred_fallthru
    _
  // Predicated region
  $region34: #{tpu_custom_call.1} parent=0 // pred_check
    _
  $region35: #{tpu_custom_call.1} parent=0 // pred_check_branch
    %32 = sbr.rel (0) target = $region37
  $region36: #{tpu_custom_call.1} parent=0 // pred_region
    _
  $region37: #{tpu_custom_call.1} parent=0 // pred_fallthru
    _
  %v34 = vld [vmem:[%s0] sm:$0xff]
  %v35 = vld [vmem:[%s0 + $0x8] sm:$0xff]
  %v36 = vld [vmem:[%s0 + $0x10] sm:$0xff]
  %v37 = vld [vmem:[%s0 + $0x18] sm:$0xff]
  %v38 = vld [vmem:[%s1] sm:$0xff]
  %v39 = vld [vmem:[%s1 + $0x8] sm:$0xff]
  %v40 = vld [vmem:[%s1 + $0x10] sm:$0xff]
  %v41 = vld [vmem:[%s1 + $0x18] sm:$0xff]
  %v42 = vld [vmem:[%s1 + $0x20] sm:$0xff]
  %v43 = vld [vmem:[%s1 + $0x28] sm:$0xff]
  %v44 = vld [vmem:[%s1 + $0x30] sm:$0xff]
  %v45 = vld [vmem:[%s1 + $0x38] sm:$0xff]
  %v46 = vld [vmem:[%s1 + $0x40] sm:$0xff]
  %v47 = vld [vmem:[%s1 + $0x48] sm:$0xff]
  %v48 = vld [vmem:[%s1 + $0x50] sm:$0xff]
  %v49 = vld [vmem:[%s1 + $0x58] sm:$0xff]
  %v50 = vld [vmem:[%s1 + $0x60] sm:$0xff]
  %v51 = vld [vmem:[%s1 + $0x68] sm:$0xff]
  %v52 = vld [vmem:[%s1 + $0x70] sm:$0xff]
  %v53 = vld [vmem:[%s1 + $0x78] sm:$0xff]
  %v54 = vld [vmem:[%s1 + $0x80] sm:$0xff]
  %v55 = vld [vmem:[%s1 + $0x88] sm:$0xff]
  %v56 = vld [vmem:[%s1 + $0x90] sm:$0xff]
  %v57 = vld [vmem:[%s1 + $0x98] sm:$0xff]
  %v58 = vld [vmem:[%s1 + $0xa0] sm:$0xff]
  %v59 = vld [vmem:[%s1 + $0xa8] sm:$0xff]
  %v60 = vld [vmem:[%s1 + $0xb0] sm:$0xff]
  %v61 = vld [vmem:[%s1 + $0xb8] sm:$0xff]
  %v62 = vld [vmem:[%s1 + $0xc0] sm:$0xff]
  %v63 = vld [vmem:[%s1 + $0xc8] sm:$0xff]
  %v64 = vld [vmem:[%s1 + $0xd0] sm:$0xff]
  %v65 = vld [vmem:[%s1 + $0xd8] sm:$0xff]
  %v66 = vld [vmem:[%s1 + $0xe0] sm:$0xff]
  %v67 = vld [vmem:[%s1 + $0xe8] sm:$0xff]
  %v68 = vld [vmem:[%s1 + $0xf0] sm:$0xff]
  %v69 = vld [vmem:[%s1 + $0xf8] sm:$0xff]
  %v70 = vld [vmem:[%s1 + $0x100] sm:$0xff]
  %v71 = vld [vmem:[%s1 + $0x108] sm:$0xff]
  %v72 = vld [vmem:[%s1 + $0x110] sm:$0xff]
  %v73 = vld [vmem:[%s1 + $0x118] sm:$0xff]
  %v74 = vld [vmem:[%s1 + $0x120] sm:$0xff]
  %v75 = vld [vmem:[%s1 + $0x128] sm:$0xff]
  %v76 = vld [vmem:[%s1 + $0x130] sm:$0xff]
  %v77 = vld [vmem:[%s1 + $0x138] sm:$0xff]
  %v78 = vld [vmem:[%s1 + $0x140] sm:$0xff]
  %v79 = vld [vmem:[%s1 + $0x148] sm:$0xff]
  %v80 = vld [vmem:[%s1 + $0x150] sm:$0xff]
  %v81 = vld [vmem:[%s1 + $0x158] sm:$0xff]
  %v82 = vld [vmem:[%s1 + $0x160] sm:$0xff]
  %v83 = vld [vmem:[%s1 + $0x168] sm:$0xff]
  %v84 = vld [vmem:[%s1 + $0x170] sm:$0xff]
  %v85 = vld [vmem:[%s1 + $0x178] sm:$0xff]
  %v86 = vld [vmem:[%s1 + $0x180] sm:$0xff]
  %v87 = vld [vmem:[%s1 + $0x188] sm:$0xff]
  %v88 = vld [vmem:[%s1 + $0x190] sm:$0xff]
  %v89 = vld [vmem:[%s1 + $0x198] sm:$0xff]
  %v90 = vld [vmem:[%s1 + $0x1a0] sm:$0xff]
  %v91 = vld [vmem:[%s1 + $0x1a8] sm:$0xff]
  %v92 = vld [vmem:[%s1 + $0x1b0] sm:$0xff]
  %v93 = vld [vmem:[%s1 + $0x1b8] sm:$0xff]
  %v94 = vld [vmem:[%s1 + $0x1c0] sm:$0xff]
  %v95 = vld [vmem:[%s1 + $0x1c8] sm:$0xff]
  %v96 = vld [vmem:[%s1 + $0x1d0] sm:$0xff]
  %v97 = vld [vmem:[%s1 + $0x1d8] sm:$0xff]
  %v98 = vld [vmem:[%s1 + $0x1e0] sm:$0xff]
  %v99 = vld [vmem:[%s1 + $0x1e8] sm:$0xff]
  %v100 = vld [vmem:[%s1 + $0x1f0] sm:$0xff]
  %v101 = vld [vmem:[%s1 + $0x1f8] sm:$0xff]
  %v102 = vld [vmem:[%s1 + $0x200] sm:$0xff]
  %v103 = vld [vmem:[%s1 + $0x208] sm:$0xff]
  %v104 = vld [vmem:[%s1 + $0x210] sm:$0xff]
  %v105 = vld [vmem:[%s1 + $0x218] sm:$0xff]
  %v106 = vld [vmem:[%s1 + $0x220] sm:$0xff]
  %v107 = vld [vmem:[%s1 + $0x228] sm:$0xff]
  %v108 = vld [vmem:[%s1 + $0x230] sm:$0xff]
  %v109 = vld [vmem:[%s1 + $0x238] sm:$0xff]
  %v110 = vld [vmem:[%s1 + $0x240] sm:$0xff]
  %v111 = vld [vmem:[%s1 + $0x248] sm:$0xff]
  %v112 = vld [vmem:[%s1 + $0x250] sm:$0xff]
  %v113 = vld [vmem:[%s1 + $0x258] sm:$0xff]
  %v114 = vld [vmem:[%s1 + $0x260] sm:$0xff]
  %v115 = vld [vmem:[%s1 + $0x268] sm:$0xff]
  %v116 = vld [vmem:[%s1 + $0x270] sm:$0xff]
  %v117 = vld [vmem:[%s1 + $0x278] sm:$0xff]
  %v118 = vld [vmem:[%s1 + $0x280] sm:$0xff]
  %v119 = vld [vmem:[%s1 + $0x288] sm:$0xff]
  %v120 = vld [vmem:[%s1 + $0x290] sm:$0xff]
  %v121 = vld [vmem:[%s1 + $0x298] sm:$0xff]
  %v122 = vld [vmem:[%s1 + $0x2a0] sm:$0xff]
  %v123 = vld [vmem:[%s1 + $0x2a8] sm:$0xff]
  %v124 = vld [vmem:[%s1 + $0x2b0] sm:$0xff]
  %v125 = vld [vmem:[%s1 + $0x2b8] sm:$0xff]
  %v126 = vld [vmem:[%s1 + $0x2c0] sm:$0xff]
  %v127 = vld [vmem:[%s1 + $0x2c8] sm:$0xff]
  %v128 = vld [vmem:[%s1 + $0x2d0] sm:$0xff]
  %v129 = vld [vmem:[%s1 + $0x2d8] sm:$0xff]
  %v130 = vld [vmem:[%s1 + $0x2e0] sm:$0xff]
  %v131 = vld [vmem:[%s1 + $0x2e8] sm:$0xff]
  %v132 = vld [vmem:[%s1 + $0x2f0] sm:$0xff]
  %v133 = vld [vmem:[%s1 + $0x2f8] sm:$0xff]
  %v134 = vld [vmem:[%s1 + $0x300] sm:$0xff]
  %v135 = vld [vmem:[%s1 + $0x308] sm:$0xff]
  %v136 = vld [vmem:[%s1 + $0x310] sm:$0xff]
  %v137 = vld [vmem:[%s1 + $0x318] sm:$0xff]
  %v138 = vld [vmem:[%s1 + $0x320] sm:$0xff]
  %v139 = vld [vmem:[%s1 + $0x328] sm:$0xff]
  %v140 = vld [vmem:[%s1 + $0x330] sm:$0xff]
  %v141 = vld [vmem:[%s1 + $0x338] sm:$0xff]
  %v142 = vld [vmem:[%s1 + $0x340] sm:$0xff]
  %v143 = vld [vmem:[%s1 + $0x348] sm:$0xff]
  %v144 = vld [vmem:[%s1 + $0x350] sm:$0xff]
  %v145 = vld [vmem:[%s1 + $0x358] sm:$0xff]
  %v146 = vld [vmem:[%s1 + $0x360] sm:$0xff]
  %v147 = vld [vmem:[%s1 + $0x368] sm:$0xff]
  %v148 = vld [vmem:[%s1 + $0x370] sm:$0xff]
  %v149 = vld [vmem:[%s1 + $0x378] sm:$0xff]
  %v150 = vld [vmem:[%s1 + $0x380] sm:$0xff]
  %v151 = vld [vmem:[%s1 + $0x388] sm:$0xff]
  %v152 = vld [vmem:[%s1 + $0x390] sm:$0xff]
  %v153 = vld [vmem:[%s1 + $0x398] sm:$0xff]
  %v154 = vld [vmem:[%s1 + $0x3a0] sm:$0xff]
  %v155 = vld [vmem:[%s1 + $0x3a8] sm:$0xff]
  %v156 = vld [vmem:[%s1 + $0x3b0] sm:$0xff]
  %v157 = vld [vmem:[%s1 + $0x3b8] sm:$0xff]
  %v158 = vld [vmem:[%s1 + $0x3c0] sm:$0xff]
  %v159 = vld [vmem:[%s1 + $0x3c8] sm:$0xff]
  %v160 = vld [vmem:[%s1 + $0x3d0] sm:$0xff]
  %v161 = vld [vmem:[%s1 + $0x3d8] sm:$0xff]
  %v162 = vld [vmem:[%s1 + $0x3e0] sm:$0xff]
  %v163 = vld [vmem:[%s1 + $0x3e8] sm:$0xff]
  %v164 = vld [vmem:[%s1 + $0x3f0] sm:$0xff]
  %v165 = vld [vmem:[%s1 + $0x3f8] sm:$0xff]
  %v166 = vld [vmem:[%s1 + $0x400] sm:$0xff]
  %v167 = vld [vmem:[%s1 + $0x408] sm:$0xff]
  %v168 = vld [vmem:[%s1 + $0x410] sm:$0xff]
  %v169 = vld [vmem:[%s1 + $0x418] sm:$0xff]
  %v170 = vld [vmem:[%s1 + $0x420] sm:$0xff]
  %v171 = vld [vmem:[%s1 + $0x428] sm:$0xff]
  %v172 = vld [vmem:[%s1 + $0x430] sm:$0xff]
  %v173 = vld [vmem:[%s1 + $0x438] sm:$0xff]
  %v174 = vld [vmem:[%s1 + $0x440] sm:$0xff]
  %v175 = vld [vmem:[%s1 + $0x448] sm:$0xff]
  %v176 = vld [vmem:[%s1 + $0x450] sm:$0xff]
  %v177 = vld [vmem:[%s1 + $0x458] sm:$0xff]
  %v178 = vld [vmem:[%s1 + $0x460] sm:$0xff]
  %v179 = vld [vmem:[%s1 + $0x468] sm:$0xff]
  %v180 = vld [vmem:[%s1 + $0x470] sm:$0xff]
  %v181 = vld [vmem:[%s1 + $0x478] sm:$0xff]
  %v182 = vld [vmem:[%s1 + $0x480] sm:$0xff]
  %v183 = vld [vmem:[%s1 + $0x488] sm:$0xff]
  %v184 = vld [vmem:[%s1 + $0x490] sm:$0xff]
  %v185 = vld [vmem:[%s1 + $0x498] sm:$0xff]
  %v186 = vld [vmem:[%s1 + $0x4a0] sm:$0xff]
  %v187 = vld [vmem:[%s1 + $0x4a8] sm:$0xff]
  %v188 = vld [vmem:[%s1 + $0x4b0] sm:$0xff]
  %v189 = vld [vmem:[%s1 + $0x4b8] sm:$0xff]
  %v190 = vld [vmem:[%s1 + $0x4c0] sm:$0xff]
  %v191 = vld [vmem:[%s1 + $0x4c8] sm:$0xff]
  %v192 = vld [vmem:[%s1 + $0x4d0] sm:$0xff]
  %v193 = vld [vmem:[%s1 + $0x4d8] sm:$0xff]
  %v194 = vld [vmem:[%s1 + $0x4e0] sm:$0xff]
  %v195 = vld [vmem:[%s1 + $0x4e8] sm:$0xff]
  %v196 = vld [vmem:[%s1 + $0x4f0] sm:$0xff]
  %v197 = vld [vmem:[%s1 + $0x4f8] sm:$0xff]
  %v198 = vld [vmem:[%s1 + $0x500] sm:$0xff]
  %v199 = vld [vmem:[%s1 + $0x508] sm:$0xff]
  %v200 = vld [vmem:[%s1 + $0x510] sm:$0xff]
  %v201 = vld [vmem:[%s1 + $0x518] sm:$0xff]
  %v202 = vld [vmem:[%s1 + $0x520] sm:$0xff]
  %v203 = vld [vmem:[%s1 + $0x528] sm:$0xff]
  %v204 = vld [vmem:[%s1 + $0x530] sm:$0xff]
  %v205 = vld [vmem:[%s1 + $0x538] sm:$0xff]
  %v206 = vld [vmem:[%s1 + $0x540] sm:$0xff]
  %v207 = vld [vmem:[%s1 + $0x548] sm:$0xff]
  %v208 = vld [vmem:[%s1 + $0x550] sm:$0xff]
  %v209 = vld [vmem:[%s1 + $0x558] sm:$0xff]
  %v210 = vld [vmem:[%s1 + $0x560] sm:$0xff]
  %v211 = vld [vmem:[%s1 + $0x568] sm:$0xff]
  %v212 = vld [vmem:[%s1 + $0x570] sm:$0xff]
  %v213 = vld [vmem:[%s1 + $0x578] sm:$0xff]
  %v214 = vld [vmem:[%s1 + $0x580] sm:$0xff]
  %v215 = vld [vmem:[%s1 + $0x588] sm:$0xff]
  %v216 = vld [vmem:[%s1 + $0x590] sm:$0xff]
  %v217 = vld [vmem:[%s1 + $0x598] sm:$0xff]
  %v218 = vld [vmem:[%s1 + $0x5a0] sm:$0xff]
  %v219 = vld [vmem:[%s1 + $0x5a8] sm:$0xff]
  %v220 = vld [vmem:[%s1 + $0x5b0] sm:$0xff]
  %v221 = vld [vmem:[%s1 + $0x5b8] sm:$0xff]
  %v222 = vld [vmem:[%s1 + $0x5c0] sm:$0xff]
  %v223 = vld [vmem:[%s1 + $0x5c8] sm:$0xff]
  %v224 = vld [vmem:[%s1 + $0x5d0] sm:$0xff]
  %v225 = vld [vmem:[%s1 + $0x5d8] sm:$0xff]
  %v226 = vld [vmem:[%s1 + $0x5e0] sm:$0xff]
  %v227 = vld [vmem:[%s1 + $0x5e8] sm:$0xff]
  %v228 = vld [vmem:[%s1 + $0x5f0] sm:$0xff]
  %v229 = vld [vmem:[%s1 + $0x5f8] sm:$0xff]
  %v230 = vld [vmem:[%s1 + $0x600] sm:$0xff]
  %v231 = vld [vmem:[%s1 + $0x608] sm:$0xff]
  %v232 = vld [vmem:[%s1 + $0x610] sm:$0xff]
  %v233 = vld [vmem:[%s1 + $0x618] sm:$0xff]
  %v234 = vld [vmem:[%s1 + $0x620] sm:$0xff]
  %v235 = vld [vmem:[%s1 + $0x628] sm:$0xff]
  %v236 = vld [vmem:[%s1 + $0x630] sm:$0xff]
  %v237 = vld [vmem:[%s1 + $0x638] sm:$0xff]
  %v238 = vld [vmem:[%s1 + $0x640] sm:$0xff]
  %v239 = vld [vmem:[%s1 + $0x648] sm:$0xff]
  %v240 = vld [vmem:[%s1 + $0x650] sm:$0xff]
  %v241 = vld [vmem:[%s1 + $0x658] sm:$0xff]
  %v242 = vld [vmem:[%s1 + $0x660] sm:$0xff]
  %v243 = vld [vmem:[%s1 + $0x668] sm:$0xff]
  %v244 = vld [vmem:[%s1 + $0x670] sm:$0xff]
  %v245 = vld [vmem:[%s1 + $0x678] sm:$0xff]
  %v246 = vld [vmem:[%s1 + $0x680] sm:$0xff]
  %v247 = vld [vmem:[%s1 + $0x688] sm:$0xff]
  %v248 = vld [vmem:[%s1 + $0x690] sm:$0xff]
  %v249 = vld [vmem:[%s1 + $0x698] sm:$0xff]
  %v250 = vld [vmem:[%s1 + $0x6a0] sm:$0xff]
  %v251 = vld [vmem:[%s1 + $0x6a8] sm:$0xff]
  %v252 = vld [vmem:[%s1 + $0x6b0] sm:$0xff]
  %v253 = vld [vmem:[%s1 + $0x6b8] sm:$0xff]
  %v254 = vld [vmem:[%s1 + $0x6c0] sm:$0xff]
  %v255 = vld [vmem:[%s1 + $0x6c8] sm:$0xff]
  %v256 = vld [vmem:[%s1 + $0x6d0] sm:$0xff]
  %v257 = vld [vmem:[%s1 + $0x6d8] sm:$0xff]
  %v258 = vld [vmem:[%s1 + $0x6e0] sm:$0xff]
  %v259 = vld [vmem:[%s1 + $0x6e8] sm:$0xff]
  %v260 = vld [vmem:[%s1 + $0x6f0] sm:$0xff]
  %v261 = vld [vmem:[%s1 + $0x6f8] sm:$0xff]
  %v262 = vld [vmem:[%s1 + $0x700] sm:$0xff]
  %v263 = vld [vmem:[%s1 + $0x708] sm:$0xff]
  %v264 = vld [vmem:[%s1 + $0x710] sm:$0xff]
  %v265 = vld [vmem:[%s1 + $0x718] sm:$0xff]
  %v266 = vld [vmem:[%s1 + $0x720] sm:$0xff]
  %v267 = vld [vmem:[%s1 + $0x728] sm:$0xff]
  %v268 = vld [vmem:[%s1 + $0x730] sm:$0xff]
  %v269 = vld [vmem:[%s1 + $0x738] sm:$0xff]
  %v270 = vld [vmem:[%s1 + $0x740] sm:$0xff]
  %v271 = vld [vmem:[%s1 + $0x748] sm:$0xff]
  %v272 = vld [vmem:[%s1 + $0x750] sm:$0xff]
  %v273 = vld [vmem:[%s1 + $0x758] sm:$0xff]
  %v274 = vld [vmem:[%s1 + $0x760] sm:$0xff]
  %v275 = vld [vmem:[%s1 + $0x768] sm:$0xff]
  %v276 = vld [vmem:[%s1 + $0x770] sm:$0xff]
  %v277 = vld [vmem:[%s1 + $0x778] sm:$0xff]
  %v278 = vld [vmem:[%s1 + $0x780] sm:$0xff]
  %v279 = vld [vmem:[%s1 + $0x788] sm:$0xff]
  %v280 = vld [vmem:[%s1 + $0x790] sm:$0xff]
  %v281 = vld [vmem:[%s1 + $0x798] sm:$0xff]
  %v282 = vld [vmem:[%s1 + $0x7a0] sm:$0xff]
  %v283 = vld [vmem:[%s1 + $0x7a8] sm:$0xff]
  %v284 = vld [vmem:[%s1 + $0x7b0] sm:$0xff]
  %v285 = vld [vmem:[%s1 + $0x7b8] sm:$0xff]
  %v286 = vld [vmem:[%s1 + $0x7c0] sm:$0xff]
  %v287 = vld [vmem:[%s1 + $0x7c8] sm:$0xff]
  %v288 = vld [vmem:[%s1 + $0x7d0] sm:$0xff]
  %v289 = vld [vmem:[%s1 + $0x7d8] sm:$0xff]
  %v290 = vld [vmem:[%s1 + $0x7e0] sm:$0xff]
  %v291 = vld [vmem:[%s1 + $0x7e8] sm:$0xff]
  %v292 = vld [vmem:[%s1 + $0x7f0] sm:$0xff]
  %v293 = vld [vmem:[%s1 + $0x7f8] sm:$0xff]
  %v294 = vld [vmem:[%s1 + $0x800] sm:$0xff]
  %v295 = vld [vmem:[%s1 + $0x808] sm:$0xff]
  %v296 = vld [vmem:[%s1 + $0x810] sm:$0xff]
  %v297 = vld [vmem:[%s1 + $0x818] sm:$0xff]
  %v298 = vld [vmem:[%s1 + $0x820] sm:$0xff]
  %v299 = vld [vmem:[%s1 + $0x828] sm:$0xff]
  %v300 = vld [vmem:[%s1 + $0x830] sm:$0xff]
  %v301 = vld [vmem:[%s1 + $0x838] sm:$0xff]
  %v302 = vld [vmem:[%s1 + $0x840] sm:$0xff]
  %v303 = vld [vmem:[%s1 + $0x848] sm:$0xff]
  %v304 = vld [vmem:[%s1 + $0x850] sm:$0xff]
  %v305 = vld [vmem:[%s1 + $0x858] sm:$0xff]
  %v306 = vld [vmem:[%s1 + $0x860] sm:$0xff]
  %v307 = vld [vmem:[%s1 + $0x868] sm:$0xff]
  %v308 = vld [vmem:[%s1 + $0x870] sm:$0xff]
  %v309 = vld [vmem:[%s1 + $0x878] sm:$0xff]
  %v310 = vld [vmem:[%s1 + $0x880] sm:$0xff]
  %v311 = vld [vmem:[%s1 + $0x888] sm:$0xff]
  %v312 = vld [vmem:[%s1 + $0x890] sm:$0xff]
  %v313 = vld [vmem:[%s1 + $0x898] sm:$0xff]
  %v314 = vld [vmem:[%s1 + $0x8a0] sm:$0xff]
  %v315 = vld [vmem:[%s1 + $0x8a8] sm:$0xff]
  %v316 = vld [vmem:[%s1 + $0x8b0] sm:$0xff]
  %v317 = vld [vmem:[%s1 + $0x8b8] sm:$0xff]
  %v318 = vld [vmem:[%s1 + $0x8c0] sm:$0xff]
  %v319 = vld [vmem:[%s1 + $0x8c8] sm:$0xff]
  %v320 = vld [vmem:[%s1 + $0x8d0] sm:$0xff]
  %v321 = vld [vmem:[%s1 + $0x8d8] sm:$0xff]
  %v322 = vld [vmem:[%s1 + $0x8e0] sm:$0xff]
  %v323 = vld [vmem:[%s1 + $0x8e8] sm:$0xff]
  %v324 = vld [vmem:[%s1 + $0x8f0] sm:$0xff]
  %v325 = vld [vmem:[%s1 + $0x8f8] sm:$0xff]
  %v326 = vld [vmem:[%s1 + $0x900] sm:$0xff]
  %v327 = vld [vmem:[%s1 + $0x908] sm:$0xff]
  %v328 = vld [vmem:[%s1 + $0x910] sm:$0xff]
  %v329 = vld [vmem:[%s1 + $0x918] sm:$0xff]
  %v330 = vld [vmem:[%s1 + $0x920] sm:$0xff]
  %v331 = vld [vmem:[%s1 + $0x928] sm:$0xff]
  %v332 = vld [vmem:[%s1 + $0x930] sm:$0xff]
  %v333 = vld [vmem:[%s1 + $0x938] sm:$0xff]
  %v334 = vld [vmem:[%s1 + $0x940] sm:$0xff]
  %v335 = vld [vmem:[%s1 + $0x948] sm:$0xff]
  %v336 = vld [vmem:[%s1 + $0x950] sm:$0xff]
  %v337 = vld [vmem:[%s1 + $0x958] sm:$0xff]
  %v338 = vld [vmem:[%s1 + $0x960] sm:$0xff]
  %v339 = vld [vmem:[%s1 + $0x968] sm:$0xff]
  %v340 = vld [vmem:[%s1 + $0x970] sm:$0xff]
  %v341 = vld [vmem:[%s1 + $0x978] sm:$0xff]
  %v342 = vld [vmem:[%s1 + $0x980] sm:$0xff]
  %v343 = vld [vmem:[%s1 + $0x988] sm:$0xff]
  %v344 = vld [vmem:[%s1 + $0x990] sm:$0xff]
  %v345 = vld [vmem:[%s1 + $0x998] sm:$0xff]
  %v346 = vld [vmem:[%s1 + $0x9a0] sm:$0xff]
  %v347 = vld [vmem:[%s1 + $0x9a8] sm:$0xff]
  %v348 = vld [vmem:[%s1 + $0x9b0] sm:$0xff]
  %v349 = vld [vmem:[%s1 + $0x9b8] sm:$0xff]
  %v350 = vld [vmem:[%s1 + $0x9c0] sm:$0xff]
  %v351 = vld [vmem:[%s1 + $0x9c8] sm:$0xff]
  %v352 = vld [vmem:[%s1 + $0x9d0] sm:$0xff]
  %v353 = vld [vmem:[%s1 + $0x9d8] sm:$0xff]
  %v354 = vld [vmem:[%s1 + $0x9e0] sm:$0xff]
  %v355 = vld [vmem:[%s1 + $0x9e8] sm:$0xff]
  %v356 = vld [vmem:[%s1 + $0x9f0] sm:$0xff]
  %v357 = vld [vmem:[%s1 + $0x9f8] sm:$0xff]
  %v358 = vld [vmem:[%s1 + $0xa00] sm:$0xff]
  %v359 = vld [vmem:[%s1 + $0xa08] sm:$0xff]
  %v360 = vld [vmem:[%s1 + $0xa10] sm:$0xff]
  %v361 = vld [vmem:[%s1 + $0xa18] sm:$0xff]
  %v362 = vld [vmem:[%s1 + $0xa20] sm:$0xff]
  %v363 = vld [vmem:[%s1 + $0xa28] sm:$0xff]
  %v364 = vld [vmem:[%s1 + $0xa30] sm:$0xff]
  %v365 = vld [vmem:[%s1 + $0xa38] sm:$0xff]
  %v366 = vld [vmem:[%s1 + $0xa40] sm:$0xff]
  %v367 = vld [vmem:[%s1 + $0xa48] sm:$0xff]
  %v368 = vld [vmem:[%s1 + $0xa50] sm:$0xff]
  %v369 = vld [vmem:[%s1 + $0xa58] sm:$0xff]
  %v370 = vld [vmem:[%s1 + $0xa60] sm:$0xff]
  %v371 = vld [vmem:[%s1 + $0xa68] sm:$0xff]
  %v372 = vld [vmem:[%s1 + $0xa70] sm:$0xff]
  %v373 = vld [vmem:[%s1 + $0xa78] sm:$0xff]
  %v374 = vld [vmem:[%s1 + $0xa80] sm:$0xff]
  %v375 = vld [vmem:[%s1 + $0xa88] sm:$0xff]
  %v376 = vld [vmem:[%s1 + $0xa90] sm:$0xff]
  %v377 = vld [vmem:[%s1 + $0xa98] sm:$0xff]
  %v378 = vld [vmem:[%s1 + $0xaa0] sm:$0xff]
  %v379 = vld [vmem:[%s1 + $0xaa8] sm:$0xff]
  %v380 = vld [vmem:[%s1 + $0xab0] sm:$0xff]
  %v381 = vld [vmem:[%s1 + $0xab8] sm:$0xff]
  %v382 = vld [vmem:[%s1 + $0xac0] sm:$0xff]
  %v383 = vld [vmem:[%s1 + $0xac8] sm:$0xff]
  %v384 = vld [vmem:[%s1 + $0xad0] sm:$0xff]
  %v385 = vld [vmem:[%s1 + $0xad8] sm:$0xff]
  %v386 = vld [vmem:[%s1 + $0xae0] sm:$0xff]
  %v387 = vld [vmem:[%s1 + $0xae8] sm:$0xff]
  %v388 = vld [vmem:[%s1 + $0xaf0] sm:$0xff]
  %v389 = vld [vmem:[%s1 + $0xaf8] sm:$0xff]
  %v390 = vld [vmem:[%s1 + $0xb00] sm:$0xff]
  %v391 = vld [vmem:[%s1 + $0xb08] sm:$0xff]
  %v392 = vld [vmem:[%s1 + $0xb10] sm:$0xff]
  %v393 = vld [vmem:[%s1 + $0xb18] sm:$0xff]
  %v394 = vld [vmem:[%s1 + $0xb20] sm:$0xff]
  %v395 = vld [vmem:[%s1 + $0xb28] sm:$0xff]
  %v396 = vld [vmem:[%s1 + $0xb30] sm:$0xff]
  %v397 = vld [vmem:[%s1 + $0xb38] sm:$0xff]
  %v398 = vld [vmem:[%s1 + $0xb40] sm:$0xff]
  %v399 = vld [vmem:[%s1 + $0xb48] sm:$0xff]
  %v400 = vld [vmem:[%s1 + $0xb50] sm:$0xff]
  %v401 = vld [vmem:[%s1 + $0xb58] sm:$0xff]
  %v402 = vld [vmem:[%s1 + $0xb60] sm:$0xff]
  %v403 = vld [vmem:[%s1 + $0xb68] sm:$0xff]
  %v404 = vld [vmem:[%s1 + $0xb70] sm:$0xff]
  %v405 = vld [vmem:[%s1 + $0xb78] sm:$0xff]
  %v406 = vld [vmem:[%s1 + $0xb80] sm:$0xff]
  %v407 = vld [vmem:[%s1 + $0xb88] sm:$0xff]
  %v408 = vld [vmem:[%s1 + $0xb90] sm:$0xff]
  %v409 = vld [vmem:[%s1 + $0xb98] sm:$0xff]
  %v410 = vld [vmem:[%s1 + $0xba0] sm:$0xff]
  %v411 = vld [vmem:[%s1 + $0xba8] sm:$0xff]
  %v412 = vld [vmem:[%s1 + $0xbb0] sm:$0xff]
  %v413 = vld [vmem:[%s2] sm:$0x3f]
  %v415 = vlaneseq
  %v416 = vshrl.u32 %v415, 7
  %v417 = vsub.s32 0, %v416
  %v418 = vrot.slane %v413, %v417
  %v419 = vlaneseq
  %v420 = vshrl.u32 %v419, 7
  %v421 = vsub.s32 1, %v420
  %v422 = vrot.slane %v413, %v421
  %v423 = vlaneseq
  %v424 = vshrl.u32 %v423, 7
  %v425 = vsub.s32 2, %v424
  %v426 = vrot.slane %v413, %v425
  %v427 = vlaneseq
  %v428 = vshrl.u32 %v427, 7
  %v429 = vsub.s32 3, %v428
  %v430 = vrot.slane %v413, %v429
  %v431 = vlaneseq
  %v432 = vshrl.u32 %v431, 7
  %v433 = vsub.s32 4, %v432
  %v434 = vrot.slane %v413, %v433
  %v435 = vlaneseq
  %v436 = vshrl.u32 %v435, 7
  %v437 = vsub.s32 5, %v436
  %v438 = vrot.slane %v413, %v437
  %v449 = vunpack.c.l.b16 %v34
  %v450 = vunpack.c.h.b16 %v34
  %v451 = vunpack.c.l.b16 %v35
  %v452 = vunpack.c.h.b16 %v35
  %v453 = vunpack.c.l.b16 %v36
  %v454 = vunpack.c.h.b16 %v36
  %v455 = vunpack.c.l.b16 %v37
  %v456 = vunpack.c.h.b16 %v37
  %v457 = vpack.c.b16 %v449, %v449
  %v458 = vpack.c.b16 %v450, %v450
  %v459 = vpack.c.b16 %v451, %v451
  %v460 = vpack.c.b16 %v452, %v452
  %v461 = vpack.c.b16 %v453, %v453
  %v462 = vpack.c.b16 %v454, %v454
  %v463 = vpack.c.b16 %v455, %v455
  %v464 = vpack.c.b16 %v456, %v456
  %v847 = vunpack.c.l.b16 %v38
  %v848 = vunpack.c.h.b16 %v38
  %v849 = vunpack.c.l.b16 %v39
  %v850 = vunpack.c.h.b16 %v39
  %v851 = vunpack.c.l.b16 %v40
  %v852 = vunpack.c.h.b16 %v40
  %v853 = vunpack.c.l.b16 %v41
  %v854 = vunpack.c.h.b16 %v41
  %v855 = vunpack.c.l.b16 %v42
  %v856 = vunpack.c.h.b16 %v42
  %v857 = vunpack.c.l.b16 %v43
  %v858 = vunpack.c.h.b16 %v43
  %v859 = vunpack.c.l.b16 %v44
  %v860 = vunpack.c.h.b16 %v44
  %v861 = vunpack.c.l.b16 %v45
  %v862 = vunpack.c.h.b16 %v45
  %v863 = vunpack.c.l.b16 %v46
  %v864 = vunpack.c.h.b16 %v46
  %v865 = vunpack.c.l.b16 %v47
  %v866 = vunpack.c.h.b16 %v47
  %v867 = vunpack.c.l.b16 %v48
  %v868 = vunpack.c.h.b16 %v48
  %v869 = vunpack.c.l.b16 %v49
  %v870 = vunpack.c.h.b16 %v49
  %v871 = vunpack.c.l.b16 %v50
  %v872 = vunpack.c.h.b16 %v50
  %v873 = vunpack.c.l.b16 %v51
  %v874 = vunpack.c.h.b16 %v51
  %v875 = vunpack.c.l.b16 %v52
  %v876 = vunpack.c.h.b16 %v52
  %v877 = vunpack.c.l.b16 %v53
  %v878 = vunpack.c.h.b16 %v53
  %v879 = vunpack.c.l.b16 %v54
  %v880 = vunpack.c.h.b16 %v54
  %v881 = vunpack.c.l.b16 %v55
  %v882 = vunpack.c.h.b16 %v55
  %v883 = vunpack.c.l.b16 %v56
  %v884 = vunpack.c.h.b16 %v56
  %v885 = vunpack.c.l.b16 %v57
  %v886 = vunpack.c.h.b16 %v57
  %v887 = vunpack.c.l.b16 %v58
  %v888 = vunpack.c.h.b16 %v58
  %v889 = vunpack.c.l.b16 %v59
  %v890 = vunpack.c.h.b16 %v59
  %v891 = vunpack.c.l.b16 %v60
  %v892 = vunpack.c.h.b16 %v60
  %v893 = vunpack.c.l.b16 %v61
  %v894 = vunpack.c.h.b16 %v61
  %v895 = vunpack.c.l.b16 %v62
  %v896 = vunpack.c.h.b16 %v62
  %v897 = vunpack.c.l.b16 %v63
  %v898 = vunpack.c.h.b16 %v63
  %v899 = vunpack.c.l.b16 %v64
  %v900 = vunpack.c.h.b16 %v64
  %v901 = vunpack.c.l.b16 %v65
  %v902 = vunpack.c.h.b16 %v65
  %v903 = vunpack.c.l.b16 %v66
  %v904 = vunpack.c.h.b16 %v66
  %v905 = vunpack.c.l.b16 %v67
  %v906 = vunpack.c.h.b16 %v67
  %v907 = vunpack.c.l.b16 %v68
  %v908 = vunpack.c.h.b16 %v68
  %v909 = vunpack.c.l.b16 %v69
  %v910 = vunpack.c.h.b16 %v69
  %v911 = vunpack.c.l.b16 %v70
  %v912 = vunpack.c.h.b16 %v70
  %v913 = vunpack.c.l.b16 %v71
  %v914 = vunpack.c.h.b16 %v71
  %v915 = vunpack.c.l.b16 %v72
  %v916 = vunpack.c.h.b16 %v72
  %v917 = vunpack.c.l.b16 %v73
  %v918 = vunpack.c.h.b16 %v73
  %v919 = vunpack.c.l.b16 %v74
  %v920 = vunpack.c.h.b16 %v74
  %v921 = vunpack.c.l.b16 %v75
  %v922 = vunpack.c.h.b16 %v75
  %v923 = vunpack.c.l.b16 %v76
  %v924 = vunpack.c.h.b16 %v76
  %v925 = vunpack.c.l.b16 %v77
  %v926 = vunpack.c.h.b16 %v77
  %v927 = vunpack.c.l.b16 %v78
  %v928 = vunpack.c.h.b16 %v78
  %v929 = vunpack.c.l.b16 %v79
  %v930 = vunpack.c.h.b16 %v79
  %v931 = vunpack.c.l.b16 %v80
  %v932 = vunpack.c.h.b16 %v80
  %v933 = vunpack.c.l.b16 %v81
  %v934 = vunpack.c.h.b16 %v81
  %v935 = vunpack.c.l.b16 %v82
  %v936 = vunpack.c.h.b16 %v82
  %v937 = vunpack.c.l.b16 %v83
  %v938 = vunpack.c.h.b16 %v83
  %v939 = vunpack.c.l.b16 %v84
  %v940 = vunpack.c.h.b16 %v84
  %v941 = vunpack.c.l.b16 %v85
  %v942 = vunpack.c.h.b16 %v85
  %v943 = vunpack.c.l.b16 %v86
  %v944 = vunpack.c.h.b16 %v86
  %v945 = vunpack.c.l.b16 %v87
  %v946 = vunpack.c.h.b16 %v87
  %v947 = vunpack.c.l.b16 %v88
  %v948 = vunpack.c.h.b16 %v88
  %v949 = vunpack.c.l.b16 %v89
  %v950 = vunpack.c.h.b16 %v89
  %v951 = vunpack.c.l.b16 %v90
  %v952 = vunpack.c.h.b16 %v90
  %v953 = vunpack.c.l.b16 %v91
  %v954 = vunpack.c.h.b16 %v91
  %v955 = vunpack.c.l.b16 %v92
  %v956 = vunpack.c.h.b16 %v92
  %v957 = vunpack.c.l.b16 %v93
  %v958 = vunpack.c.h.b16 %v93
  %v959 = vunpack.c.l.b16 %v94
  %v960 = vunpack.c.h.b16 %v94
  %v961 = vunpack.c.l.b16 %v95
  %v962 = vunpack.c.h.b16 %v95
  %v963 = vunpack.c.l.b16 %v96
  %v964 = vunpack.c.h.b16 %v96
  %v965 = vunpack.c.l.b16 %v97
  %v966 = vunpack.c.h.b16 %v97
  %v967 = vunpack.c.l.b16 %v98
  %v968 = vunpack.c.h.b16 %v98
  %v969 = vunpack.c.l.b16 %v99
  %v970 = vunpack.c.h.b16 %v99
  %v971 = vunpack.c.l.b16 %v100
  %v972 = vunpack.c.h.b16 %v100
  %v973 = vunpack.c.l.b16 %v101
  %v974 = vunpack.c.h.b16 %v101
  %v975 = vunpack.c.l.b16 %v102
  %v976 = vunpack.c.h.b16 %v102
  %v977 = vunpack.c.l.b16 %v103
  %v978 = vunpack.c.h.b16 %v103
  %v979 = vunpack.c.l.b16 %v104
  %v980 = vunpack.c.h.b16 %v104
  %v981 = vunpack.c.l.b16 %v105
  %v982 = vunpack.c.h.b16 %v105
  %v983 = vunpack.c.l.b16 %v106
  %v984 = vunpack.c.h.b16 %v106
  %v985 = vunpack.c.l.b16 %v107
  %v986 = vunpack.c.h.b16 %v107
  %v987 = vunpack.c.l.b16 %v108
  %v988 = vunpack.c.h.b16 %v108
  %v989 = vunpack.c.l.b16 %v109
  %v990 = vunpack.c.h.b16 %v109
  %v991 = vunpack.c.l.b16 %v110
  %v992 = vunpack.c.h.b16 %v110
  %v993 = vunpack.c.l.b16 %v111
  %v994 = vunpack.c.h.b16 %v111
  %v995 = vunpack.c.l.b16 %v112
  %v996 = vunpack.c.h.b16 %v112
  %v997 = vunpack.c.l.b16 %v113
  %v998 = vunpack.c.h.b16 %v113
  %v999 = vunpack.c.l.b16 %v114
  %v1000 = vunpack.c.h.b16 %v114
  %v1001 = vunpack.c.l.b16 %v115
  %v1002 = vunpack.c.h.b16 %v115
  %v1003 = vunpack.c.l.b16 %v116
  %v1004 = vunpack.c.h.b16 %v116
  %v1005 = vunpack.c.l.b16 %v117
  %v1006 = vunpack.c.h.b16 %v117
  %v1007 = vunpack.c.l.b16 %v118
  %v1008 = vunpack.c.h.b16 %v118
  %v1009 = vunpack.c.l.b16 %v119
  %v1010 = vunpack.c.h.b16 %v119
  %v1011 = vunpack.c.l.b16 %v120
  %v1012 = vunpack.c.h.b16 %v120
  %v1013 = vunpack.c.l.b16 %v121
  %v1014 = vunpack.c.h.b16 %v121
  %v1015 = vunpack.c.l.b16 %v122
  %v1016 = vunpack.c.h.b16 %v122
  %v1017 = vunpack.c.l.b16 %v123
  %v1018 = vunpack.c.h.b16 %v123
  %v1019 = vunpack.c.l.b16 %v124
  %v1020 = vunpack.c.h.b16 %v124
  %v1021 = vunpack.c.l.b16 %v125
  %v1022 = vunpack.c.h.b16 %v125
  %v1023 = vunpack.c.l.b16 %v126
  %v1024 = vunpack.c.h.b16 %v126
  %v1025 = vunpack.c.l.b16 %v127
  %v1026 = vunpack.c.h.b16 %v127
  %v1027 = vunpack.c.l.b16 %v128
  %v1028 = vunpack.c.h.b16 %v128
  %v1029 = vunpack.c.l.b16 %v129
  %v1030 = vunpack.c.h.b16 %v129
  %v1031 = vunpack.c.l.b16 %v130
  %v1032 = vunpack.c.h.b16 %v130
  %v1033 = vunpack.c.l.b16 %v131
  %v1034 = vunpack.c.h.b16 %v131
  %v1035 = vunpack.c.l.b16 %v132
  %v1036 = vunpack.c.h.b16 %v132
  %v1037 = vunpack.c.l.b16 %v133
  %v1038 = vunpack.c.h.b16 %v133
  %v1039 = vunpack.c.l.b16 %v134
  %v1040 = vunpack.c.h.b16 %v134
  %v1041 = vunpack.c.l.b16 %v135
  %v1042 = vunpack.c.h.b16 %v135
  %v1043 = vunpack.c.l.b16 %v136
  %v1044 = vunpack.c.h.b16 %v136
  %v1045 = vunpack.c.l.b16 %v137
  %v1046 = vunpack.c.h.b16 %v137
  %v1047 = vunpack.c.l.b16 %v138
  %v1048 = vunpack.c.h.b16 %v138
  %v1049 = vunpack.c.l.b16 %v139
  %v1050 = vunpack.c.h.b16 %v139
  %v1051 = vunpack.c.l.b16 %v140
  %v1052 = vunpack.c.h.b16 %v140
  %v1053 = vunpack.c.l.b16 %v141
  %v1054 = vunpack.c.h.b16 %v141
  %v1055 = vunpack.c.l.b16 %v142
  %v1056 = vunpack.c.h.b16 %v142
  %v1057 = vunpack.c.l.b16 %v143
  %v1058 = vunpack.c.h.b16 %v143
  %v1059 = vunpack.c.l.b16 %v144
  %v1060 = vunpack.c.h.b16 %v144
  %v1061 = vunpack.c.l.b16 %v145
  %v1062 = vunpack.c.h.b16 %v145
  %v1063 = vunpack.c.l.b16 %v146
  %v1064 = vunpack.c.h.b16 %v146
  %v1065 = vunpack.c.l.b16 %v147
  %v1066 = vunpack.c.h.b16 %v147
  %v1067 = vunpack.c.l.b16 %v148
  %v1068 = vunpack.c.h.b16 %v148
  %v1069 = vunpack.c.l.b16 %v149
  %v1070 = vunpack.c.h.b16 %v149
  %v1071 = vunpack.c.l.b16 %v150
  %v1072 = vunpack.c.h.b16 %v150
  %v1073 = vunpack.c.l.b16 %v151
  %v1074 = vunpack.c.h.b16 %v151
  %v1075 = vunpack.c.l.b16 %v152
  %v1076 = vunpack.c.h.b16 %v152
  %v1077 = vunpack.c.l.b16 %v153
  %v1078 = vunpack.c.h.b16 %v153
  %v1079 = vunpack.c.l.b16 %v154
  %v1080 = vunpack.c.h.b16 %v154
  %v1081 = vunpack.c.l.b16 %v155
  %v1082 = vunpack.c.h.b16 %v155
  %v1083 = vunpack.c.l.b16 %v156
  %v1084 = vunpack.c.h.b16 %v156
  %v1085 = vunpack.c.l.b16 %v157
  %v1086 = vunpack.c.h.b16 %v157
  %v1087 = vunpack.c.l.b16 %v158
  %v1088 = vunpack.c.h.b16 %v158
  %v1089 = vunpack.c.l.b16 %v159
  %v1090 = vunpack.c.h.b16 %v159
  %v1091 = vunpack.c.l.b16 %v160
  %v1092 = vunpack.c.h.b16 %v160
  %v1093 = vunpack.c.l.b16 %v161
  %v1094 = vunpack.c.h.b16 %v161
  %v1095 = vunpack.c.l.b16 %v162
  %v1096 = vunpack.c.h.b16 %v162
  %v1097 = vunpack.c.l.b16 %v163
  %v1098 = vunpack.c.h.b16 %v163
  %v1099 = vunpack.c.l.b16 %v164
  %v1100 = vunpack.c.h.b16 %v164
  %v1101 = vunpack.c.l.b16 %v165
  %v1102 = vunpack.c.h.b16 %v165
  %v1103 = vunpack.c.l.b16 %v166
  %v1104 = vunpack.c.h.b16 %v166
  %v1105 = vunpack.c.l.b16 %v167
  %v1106 = vunpack.c.h.b16 %v167
  %v1107 = vunpack.c.l.b16 %v168
  %v1108 = vunpack.c.h.b16 %v168
  %v1109 = vunpack.c.l.b16 %v169
  %v1110 = vunpack.c.h.b16 %v169
  %v1111 = vunpack.c.l.b16 %v170
  %v1112 = vunpack.c.h.b16 %v170
  %v1113 = vunpack.c.l.b16 %v171
  %v1114 = vunpack.c.h.b16 %v171
  %v1115 = vunpack.c.l.b16 %v172
  %v1116 = vunpack.c.h.b16 %v172
  %v1117 = vunpack.c.l.b16 %v173
  %v1118 = vunpack.c.h.b16 %v173
  %v1119 = vunpack.c.l.b16 %v174
  %v1120 = vunpack.c.h.b16 %v174
  %v1121 = vunpack.c.l.b16 %v175
  %v1122 = vunpack.c.h.b16 %v175
  %v1123 = vunpack.c.l.b16 %v176
  %v1124 = vunpack.c.h.b16 %v176
  %v1125 = vunpack.c.l.b16 %v177
  %v1126 = vunpack.c.h.b16 %v177
  %v1127 = vunpack.c.l.b16 %v178
  %v1128 = vunpack.c.h.b16 %v178
  %v1129 = vunpack.c.l.b16 %v179
  %v1130 = vunpack.c.h.b16 %v179
  %v1131 = vunpack.c.l.b16 %v180
  %v1132 = vunpack.c.h.b16 %v180
  %v1133 = vunpack.c.l.b16 %v181
  %v1134 = vunpack.c.h.b16 %v181
  %v1135 = vunpack.c.l.b16 %v182
  %v1136 = vunpack.c.h.b16 %v182
  %v1137 = vunpack.c.l.b16 %v183
  %v1138 = vunpack.c.h.b16 %v183
  %v1139 = vunpack.c.l.b16 %v184
  %v1140 = vunpack.c.h.b16 %v184
  %v1141 = vunpack.c.l.b16 %v185
  %v1142 = vunpack.c.h.b16 %v185
  %v1143 = vunpack.c.l.b16 %v186
  %v1144 = vunpack.c.h.b16 %v186
  %v1145 = vunpack.c.l.b16 %v187
  %v1146 = vunpack.c.h.b16 %v187
  %v1147 = vunpack.c.l.b16 %v188
  %v1148 = vunpack.c.h.b16 %v188
  %v1149 = vunpack.c.l.b16 %v189
  %v1150 = vunpack.c.h.b16 %v189
  %v1151 = vunpack.c.l.b16 %v190
  %v1152 = vunpack.c.h.b16 %v190
  %v1153 = vunpack.c.l.b16 %v191
  %v1154 = vunpack.c.h.b16 %v191
  %v1155 = vunpack.c.l.b16 %v192
  %v1156 = vunpack.c.h.b16 %v192
  %v1157 = vunpack.c.l.b16 %v193
  %v1158 = vunpack.c.h.b16 %v193
  %v1159 = vunpack.c.l.b16 %v194
  %v1160 = vunpack.c.h.b16 %v194
  %v1161 = vunpack.c.l.b16 %v195
  %v1162 = vunpack.c.h.b16 %v195
  %v1163 = vunpack.c.l.b16 %v196
  %v1164 = vunpack.c.h.b16 %v196
  %v1165 = vunpack.c.l.b16 %v197
  %v1166 = vunpack.c.h.b16 %v197
  %v1167 = vunpack.c.l.b16 %v198
  %v1168 = vunpack.c.h.b16 %v198
  %v1169 = vunpack.c.l.b16 %v199
  %v1170 = vunpack.c.h.b16 %v199
  %v1171 = vunpack.c.l.b16 %v200
  %v1172 = vunpack.c.h.b16 %v200
  %v1173 = vunpack.c.l.b16 %v201
  %v1174 = vunpack.c.h.b16 %v201
  %v1175 = vunpack.c.l.b16 %v202
  %v1176 = vunpack.c.h.b16 %v202
  %v1177 = vunpack.c.l.b16 %v203
  %v1178 = vunpack.c.h.b16 %v203
  %v1179 = vunpack.c.l.b16 %v204
  %v1180 = vunpack.c.h.b16 %v204
  %v1181 = vunpack.c.l.b16 %v205
  %v1182 = vunpack.c.h.b16 %v205
  %v1183 = vunpack.c.l.b16 %v206
  %v1184 = vunpack.c.h.b16 %v206
  %v1185 = vunpack.c.l.b16 %v207
  %v1186 = vunpack.c.h.b16 %v207
  %v1187 = vunpack.c.l.b16 %v208
  %v1188 = vunpack.c.h.b16 %v208
  %v1189 = vunpack.c.l.b16 %v209
  %v1190 = vunpack.c.h.b16 %v209
  %v1191 = vunpack.c.l.b16 %v210
  %v1192 = vunpack.c.h.b16 %v210
  %v1193 = vunpack.c.l.b16 %v211
  %v1194 = vunpack.c.h.b16 %v211
  %v1195 = vunpack.c.l.b16 %v212
  %v1196 = vunpack.c.h.b16 %v212
  %v1197 = vunpack.c.l.b16 %v213
  %v1198 = vunpack.c.h.b16 %v213
  %v1199 = vunpack.c.l.b16 %v214
  %v1200 = vunpack.c.h.b16 %v214
  %v1201 = vunpack.c.l.b16 %v215
  %v1202 = vunpack.c.h.b16 %v215
  %v1203 = vunpack.c.l.b16 %v216
  %v1204 = vunpack.c.h.b16 %v216
  %v1205 = vunpack.c.l.b16 %v217
  %v1206 = vunpack.c.h.b16 %v217
  %v1207 = vunpack.c.l.b16 %v218
  %v1208 = vunpack.c.h.b16 %v218
  %v1209 = vunpack.c.l.b16 %v219
  %v1210 = vunpack.c.h.b16 %v219
  %v1211 = vunpack.c.l.b16 %v220
  %v1212 = vunpack.c.h.b16 %v220
  %v1213 = vunpack.c.l.b16 %v221
  %v1214 = vunpack.c.h.b16 %v221
  %v1215 = vunpack.c.l.b16 %v222
  %v1216 = vunpack.c.h.b16 %v222
  %v1217 = vunpack.c.l.b16 %v223
  %v1218 = vunpack.c.h.b16 %v223
  %v1219 = vunpack.c.l.b16 %v224
  %v1220 = vunpack.c.h.b16 %v224
  %v1221 = vunpack.c.l.b16 %v225
  %v1222 = vunpack.c.h.b16 %v225
  %v1223 = vunpack.c.l.b16 %v226
  %v1224 = vunpack.c.h.b16 %v226
  %v1225 = vunpack.c.l.b16 %v227
  %v1226 = vunpack.c.h.b16 %v227
  %v1227 = vunpack.c.l.b16 %v228
  %v1228 = vunpack.c.h.b16 %v228
  %v1229 = vunpack.c.l.b16 %v229
  %v1230 = vunpack.c.h.b16 %v229
  %v1231 = vunpack.c.l.b16 %v230
  %v1232 = vunpack.c.h.b16 %v230
  %v1233 = vunpack.c.l.b16 %v231
  %v1234 = vunpack.c.h.b16 %v231
  %v1235 = vunpack.c.l.b16 %v232
  %v1236 = vunpack.c.h.b16 %v232
  %v1237 = vunpack.c.l.b16 %v233
  %v1238 = vunpack.c.h.b16 %v233
  %v1239 = vunpack.c.l.b16 %v234
  %v1240 = vunpack.c.h.b16 %v234
  %v1241 = vunpack.c.l.b16 %v235
  %v1242 = vunpack.c.h.b16 %v235
  %v1243 = vunpack.c.l.b16 %v236
  %v1244 = vunpack.c.h.b16 %v236
  %v1245 = vunpack.c.l.b16 %v237
  %v1246 = vunpack.c.h.b16 %v237
  %v1247 = vunpack.c.l.b16 %v238
  %v1248 = vunpack.c.h.b16 %v238
  %v1249 = vunpack.c.l.b16 %v239
  %v1250 = vunpack.c.h.b16 %v239
  %v1251 = vunpack.c.l.b16 %v240
  %v1252 = vunpack.c.h.b16 %v240
  %v1253 = vunpack.c.l.b16 %v241
  %v1254 = vunpack.c.h.b16 %v241
  %v1255 = vunpack.c.l.b16 %v242
  %v1256 = vunpack.c.h.b16 %v242
  %v1257 = vunpack.c.l.b16 %v243
  %v1258 = vunpack.c.h.b16 %v243
  %v1259 = vunpack.c.l.b16 %v244
  %v1260 = vunpack.c.h.b16 %v244
  %v1261 = vunpack.c.l.b16 %v245
  %v1262 = vunpack.c.h.b16 %v245
  %v1263 = vunpack.c.l.b16 %v246
  %v1264 = vunpack.c.h.b16 %v246
  %v1265 = vunpack.c.l.b16 %v247
  %v1266 = vunpack.c.h.b16 %v247
  %v1267 = vunpack.c.l.b16 %v248
  %v1268 = vunpack.c.h.b16 %v248
  %v1269 = vunpack.c.l.b16 %v249
  %v1270 = vunpack.c.h.b16 %v249
  %v1271 = vunpack.c.l.b16 %v250
  %v1272 = vunpack.c.h.b16 %v250
  %v1273 = vunpack.c.l.b16 %v251
  %v1274 = vunpack.c.h.b16 %v251
  %v1275 = vunpack.c.l.b16 %v252
  %v1276 = vunpack.c.h.b16 %v252
  %v1277 = vunpack.c.l.b16 %v253
  %v1278 = vunpack.c.h.b16 %v253
  %v1279 = vunpack.c.l.b16 %v254
  %v1280 = vunpack.c.h.b16 %v254
  %v1281 = vunpack.c.l.b16 %v255
  %v1282 = vunpack.c.h.b16 %v255
  %v1283 = vunpack.c.l.b16 %v256
  %v1284 = vunpack.c.h.b16 %v256
  %v1285 = vunpack.c.l.b16 %v257
  %v1286 = vunpack.c.h.b16 %v257
  %v1287 = vunpack.c.l.b16 %v258
  %v1288 = vunpack.c.h.b16 %v258
  %v1289 = vunpack.c.l.b16 %v259
  %v1290 = vunpack.c.h.b16 %v259
  %v1291 = vunpack.c.l.b16 %v260
  %v1292 = vunpack.c.h.b16 %v260
  %v1293 = vunpack.c.l.b16 %v261
  %v1294 = vunpack.c.h.b16 %v261
  %v1295 = vunpack.c.l.b16 %v262
  %v1296 = vunpack.c.h.b16 %v262
  %v1297 = vunpack.c.l.b16 %v263
  %v1298 = vunpack.c.h.b16 %v263
  %v1299 = vunpack.c.l.b16 %v264
  %v1300 = vunpack.c.h.b16 %v264
  %v1301 = vunpack.c.l.b16 %v265
  %v1302 = vunpack.c.h.b16 %v265
  %v1303 = vunpack.c.l.b16 %v266
  %v1304 = vunpack.c.h.b16 %v266
  %v1305 = vunpack.c.l.b16 %v267
  %v1306 = vunpack.c.h.b16 %v267
  %v1307 = vunpack.c.l.b16 %v268
  %v1308 = vunpack.c.h.b16 %v268
  %v1309 = vunpack.c.l.b16 %v269
  %v1310 = vunpack.c.h.b16 %v269
  %v1311 = vunpack.c.l.b16 %v270
  %v1312 = vunpack.c.h.b16 %v270
  %v1313 = vunpack.c.l.b16 %v271
  %v1314 = vunpack.c.h.b16 %v271
  %v1315 = vunpack.c.l.b16 %v272
  %v1316 = vunpack.c.h.b16 %v272
  %v1317 = vunpack.c.l.b16 %v273
  %v1318 = vunpack.c.h.b16 %v273
  %v1319 = vunpack.c.l.b16 %v274
  %v1320 = vunpack.c.h.b16 %v274
  %v1321 = vunpack.c.l.b16 %v275
  %v1322 = vunpack.c.h.b16 %v275
  %v1323 = vunpack.c.l.b16 %v276
  %v1324 = vunpack.c.h.b16 %v276
  %v1325 = vunpack.c.l.b16 %v277
  %v1326 = vunpack.c.h.b16 %v277
  %v1327 = vunpack.c.l.b16 %v278
  %v1328 = vunpack.c.h.b16 %v278
  %v1329 = vunpack.c.l.b16 %v279
  %v1330 = vunpack.c.h.b16 %v279
  %v1331 = vunpack.c.l.b16 %v280
  %v1332 = vunpack.c.h.b16 %v280
  %v1333 = vunpack.c.l.b16 %v281
  %v1334 = vunpack.c.h.b16 %v281
  %v1335 = vunpack.c.l.b16 %v282
  %v1336 = vunpack.c.h.b16 %v282
  %v1337 = vunpack.c.l.b16 %v283
  %v1338 = vunpack.c.h.b16 %v283
  %v1339 = vunpack.c.l.b16 %v284
  %v1340 = vunpack.c.h.b16 %v284
  %v1341 = vunpack.c.l.b16 %v285
  %v1342 = vunpack.c.h.b16 %v285
  %v1343 = vunpack.c.l.b16 %v286
  %v1344 = vunpack.c.h.b16 %v286
  %v1345 = vunpack.c.l.b16 %v287
  %v1346 = vunpack.c.h.b16 %v287
  %v1347 = vunpack.c.l.b16 %v288
  %v1348 = vunpack.c.h.b16 %v288
  %v1349 = vunpack.c.l.b16 %v289
  %v1350 = vunpack.c.h.b16 %v289
  %v1351 = vunpack.c.l.b16 %v290
  %v1352 = vunpack.c.h.b16 %v290
  %v1353 = vunpack.c.l.b16 %v291
  %v1354 = vunpack.c.h.b16 %v291
  %v1355 = vunpack.c.l.b16 %v292
  %v1356 = vunpack.c.h.b16 %v292
  %v1357 = vunpack.c.l.b16 %v293
  %v1358 = vunpack.c.h.b16 %v293
  %v1359 = vunpack.c.l.b16 %v294
  %v1360 = vunpack.c.h.b16 %v294
  %v1361 = vunpack.c.l.b16 %v295
  %v1362 = vunpack.c.h.b16 %v295
  %v1363 = vunpack.c.l.b16 %v296
  %v1364 = vunpack.c.h.b16 %v296
  %v1365 = vunpack.c.l.b16 %v297
  %v1366 = vunpack.c.h.b16 %v297
  %v1367 = vunpack.c.l.b16 %v298
  %v1368 = vunpack.c.h.b16 %v298
  %v1369 = vunpack.c.l.b16 %v299
  %v1370 = vunpack.c.h.b16 %v299
  %v1371 = vunpack.c.l.b16 %v300
  %v1372 = vunpack.c.h.b16 %v300
  %v1373 = vunpack.c.l.b16 %v301
  %v1374 = vunpack.c.h.b16 %v301
  %v1375 = vunpack.c.l.b16 %v302
  %v1376 = vunpack.c.h.b16 %v302
  %v1377 = vunpack.c.l.b16 %v303
  %v1378 = vunpack.c.h.b16 %v303
  %v1379 = vunpack.c.l.b16 %v304
  %v1380 = vunpack.c.h.b16 %v304
  %v1381 = vunpack.c.l.b16 %v305
  %v1382 = vunpack.c.h.b16 %v305
  %v1383 = vunpack.c.l.b16 %v306
  %v1384 = vunpack.c.h.b16 %v306
  %v1385 = vunpack.c.l.b16 %v307
  %v1386 = vunpack.c.h.b16 %v307
  %v1387 = vunpack.c.l.b16 %v308
  %v1388 = vunpack.c.h.b16 %v308
  %v1389 = vunpack.c.l.b16 %v309
  %v1390 = vunpack.c.h.b16 %v309
  %v1391 = vunpack.c.l.b16 %v310
  %v1392 = vunpack.c.h.b16 %v310
  %v1393 = vunpack.c.l.b16 %v311
  %v1394 = vunpack.c.h.b16 %v311
  %v1395 = vunpack.c.l.b16 %v312
  %v1396 = vunpack.c.h.b16 %v312
  %v1397 = vunpack.c.l.b16 %v313
  %v1398 = vunpack.c.h.b16 %v313
  %v1399 = vunpack.c.l.b16 %v314
  %v1400 = vunpack.c.h.b16 %v314
  %v1401 = vunpack.c.l.b16 %v315
  %v1402 = vunpack.c.h.b16 %v315
  %v1403 = vunpack.c.l.b16 %v316
  %v1404 = vunpack.c.h.b16 %v316
  %v1405 = vunpack.c.l.b16 %v317
  %v1406 = vunpack.c.h.b16 %v317
  %v1407 = vunpack.c.l.b16 %v318
  %v1408 = vunpack.c.h.b16 %v318
  %v1409 = vunpack.c.l.b16 %v319
  %v1410 = vunpack.c.h.b16 %v319
  %v1411 = vunpack.c.l.b16 %v320
  %v1412 = vunpack.c.h.b16 %v320
  %v1413 = vunpack.c.l.b16 %v321
  %v1414 = vunpack.c.h.b16 %v321
  %v1415 = vunpack.c.l.b16 %v322
  %v1416 = vunpack.c.h.b16 %v322
  %v1417 = vunpack.c.l.b16 %v323
  %v1418 = vunpack.c.h.b16 %v323
  %v1419 = vunpack.c.l.b16 %v324
  %v1420 = vunpack.c.h.b16 %v324
  %v1421 = vunpack.c.l.b16 %v325
  %v1422 = vunpack.c.h.b16 %v325
  %v1423 = vunpack.c.l.b16 %v326
  %v1424 = vunpack.c.h.b16 %v326
  %v1425 = vunpack.c.l.b16 %v327
  %v1426 = vunpack.c.h.b16 %v327
  %v1427 = vunpack.c.l.b16 %v328
  %v1428 = vunpack.c.h.b16 %v328
  %v1429 = vunpack.c.l.b16 %v329
  %v1430 = vunpack.c.h.b16 %v329
  %v1431 = vunpack.c.l.b16 %v330
  %v1432 = vunpack.c.h.b16 %v330
  %v1433 = vunpack.c.l.b16 %v331
  %v1434 = vunpack.c.h.b16 %v331
  %v1435 = vunpack.c.l.b16 %v332
  %v1436 = vunpack.c.h.b16 %v332
  %v1437 = vunpack.c.l.b16 %v333
  %v1438 = vunpack.c.h.b16 %v333
  %v1439 = vunpack.c.l.b16 %v334
  %v1440 = vunpack.c.h.b16 %v334
  %v1441 = vunpack.c.l.b16 %v335
  %v1442 = vunpack.c.h.b16 %v335
  %v1443 = vunpack.c.l.b16 %v336
  %v1444 = vunpack.c.h.b16 %v336
  %v1445 = vunpack.c.l.b16 %v337
  %v1446 = vunpack.c.h.b16 %v337
  %v1447 = vunpack.c.l.b16 %v338
  %v1448 = vunpack.c.h.b16 %v338
  %v1449 = vunpack.c.l.b16 %v339
  %v1450 = vunpack.c.h.b16 %v339
  %v1451 = vunpack.c.l.b16 %v340
  %v1452 = vunpack.c.h.b16 %v340
  %v1453 = vunpack.c.l.b16 %v341
  %v1454 = vunpack.c.h.b16 %v341
  %v1455 = vunpack.c.l.b16 %v342
  %v1456 = vunpack.c.h.b16 %v342
  %v1457 = vunpack.c.l.b16 %v343
  %v1458 = vunpack.c.h.b16 %v343
  %v1459 = vunpack.c.l.b16 %v344
  %v1460 = vunpack.c.h.b16 %v344
  %v1461 = vunpack.c.l.b16 %v345
  %v1462 = vunpack.c.h.b16 %v345
  %v1463 = vunpack.c.l.b16 %v346
  %v1464 = vunpack.c.h.b16 %v346
  %v1465 = vunpack.c.l.b16 %v347
  %v1466 = vunpack.c.h.b16 %v347
  %v1467 = vunpack.c.l.b16 %v348
  %v1468 = vunpack.c.h.b16 %v348
  %v1469 = vunpack.c.l.b16 %v349
  %v1470 = vunpack.c.h.b16 %v349
  %v1471 = vunpack.c.l.b16 %v350
  %v1472 = vunpack.c.h.b16 %v350
  %v1473 = vunpack.c.l.b16 %v351
  %v1474 = vunpack.c.h.b16 %v351
  %v1475 = vunpack.c.l.b16 %v352
  %v1476 = vunpack.c.h.b16 %v352
  %v1477 = vunpack.c.l.b16 %v353
  %v1478 = vunpack.c.h.b16 %v353
  %v1479 = vunpack.c.l.b16 %v354
  %v1480 = vunpack.c.h.b16 %v354
  %v1481 = vunpack.c.l.b16 %v355
  %v1482 = vunpack.c.h.b16 %v355
  %v1483 = vunpack.c.l.b16 %v356
  %v1484 = vunpack.c.h.b16 %v356
  %v1485 = vunpack.c.l.b16 %v357
  %v1486 = vunpack.c.h.b16 %v357
  %v1487 = vunpack.c.l.b16 %v358
  %v1488 = vunpack.c.h.b16 %v358
  %v1489 = vunpack.c.l.b16 %v359
  %v1490 = vunpack.c.h.b16 %v359
  %v1491 = vunpack.c.l.b16 %v360
  %v1492 = vunpack.c.h.b16 %v360
  %v1493 = vunpack.c.l.b16 %v361
  %v1494 = vunpack.c.h.b16 %v361
  %v1495 = vunpack.c.l.b16 %v362
  %v1496 = vunpack.c.h.b16 %v362
  %v1497 = vunpack.c.l.b16 %v363
  %v1498 = vunpack.c.h.b16 %v363
  %v1499 = vunpack.c.l.b16 %v364
  %v1500 = vunpack.c.h.b16 %v364
  %v1501 = vunpack.c.l.b16 %v365
  %v1502 = vunpack.c.h.b16 %v365
  %v1503 = vunpack.c.l.b16 %v366
  %v1504 = vunpack.c.h.b16 %v366
  %v1505 = vunpack.c.l.b16 %v367
  %v1506 = vunpack.c.h.b16 %v367
  %v1507 = vunpack.c.l.b16 %v368
  %v1508 = vunpack.c.h.b16 %v368
  %v1509 = vunpack.c.l.b16 %v369
  %v1510 = vunpack.c.h.b16 %v369
  %v1511 = vunpack.c.l.b16 %v370
  %v1512 = vunpack.c.h.b16 %v370
  %v1513 = vunpack.c.l.b16 %v371
  %v1514 = vunpack.c.h.b16 %v371
  %v1515 = vunpack.c.l.b16 %v372
  %v1516 = vunpack.c.h.b16 %v372
  %v1517 = vunpack.c.l.b16 %v373
  %v1518 = vunpack.c.h.b16 %v373
  %v1519 = vunpack.c.l.b16 %v374
  %v1520 = vunpack.c.h.b16 %v374
  %v1521 = vunpack.c.l.b16 %v375
  %v1522 = vunpack.c.h.b16 %v375
  %v1523 = vunpack.c.l.b16 %v376
  %v1524 = vunpack.c.h.b16 %v376
  %v1525 = vunpack.c.l.b16 %v377
  %v1526 = vunpack.c.h.b16 %v377
  %v1527 = vunpack.c.l.b16 %v378
  %v1528 = vunpack.c.h.b16 %v378
  %v1529 = vunpack.c.l.b16 %v379
  %v1530 = vunpack.c.h.b16 %v379
  %v1531 = vunpack.c.l.b16 %v380
  %v1532 = vunpack.c.h.b16 %v380
  %v1533 = vunpack.c.l.b16 %v381
  %v1534 = vunpack.c.h.b16 %v381
  %v1535 = vunpack.c.l.b16 %v382
  %v1536 = vunpack.c.h.b16 %v382
  %v1537 = vunpack.c.l.b16 %v383
  %v1538 = vunpack.c.h.b16 %v383
  %v1539 = vunpack.c.l.b16 %v384
  %v1540 = vunpack.c.h.b16 %v384
  %v1541 = vunpack.c.l.b16 %v385
  %v1542 = vunpack.c.h.b16 %v385
  %v1543 = vunpack.c.l.b16 %v386
  %v1544 = vunpack.c.h.b16 %v386
  %v1545 = vunpack.c.l.b16 %v387
  %v1546 = vunpack.c.h.b16 %v387
  %v1547 = vunpack.c.l.b16 %v388
  %v1548 = vunpack.c.h.b16 %v388
  %v1549 = vunpack.c.l.b16 %v389
  %v1550 = vunpack.c.h.b16 %v389
  %v1551 = vunpack.c.l.b16 %v390
  %v1552 = vunpack.c.h.b16 %v390
  %v1553 = vunpack.c.l.b16 %v391
  %v1554 = vunpack.c.h.b16 %v391
  %v1555 = vunpack.c.l.b16 %v392
  %v1556 = vunpack.c.h.b16 %v392
  %v1557 = vunpack.c.l.b16 %v393
  %v1558 = vunpack.c.h.b16 %v393
  %v1559 = vunpack.c.l.b16 %v394
  %v1560 = vunpack.c.h.b16 %v394
  %v1561 = vunpack.c.l.b16 %v395
  %v1562 = vunpack.c.h.b16 %v395
  %v1563 = vunpack.c.l.b16 %v396
  %v1564 = vunpack.c.h.b16 %v396
  %v1565 = vunpack.c.l.b16 %v397
  %v1566 = vunpack.c.h.b16 %v397
  %v1567 = vunpack.c.l.b16 %v398
  %v1568 = vunpack.c.h.b16 %v398
  %v1569 = vunpack.c.l.b16 %v399
  %v1570 = vunpack.c.h.b16 %v399
  %v1571 = vunpack.c.l.b16 %v400
  %v1572 = vunpack.c.h.b16 %v400
  %v1573 = vunpack.c.l.b16 %v401
  %v1574 = vunpack.c.h.b16 %v401
  %v1575 = vunpack.c.l.b16 %v402
  %v1576 = vunpack.c.h.b16 %v402
  %v1577 = vunpack.c.l.b16 %v403
  %v1578 = vunpack.c.h.b16 %v403
  %v1579 = vunpack.c.l.b16 %v404
  %v1580 = vunpack.c.h.b16 %v404
  %v1581 = vunpack.c.l.b16 %v405
  %v1582 = vunpack.c.h.b16 %v405
  %v1583 = vunpack.c.l.b16 %v406
  %v1584 = vunpack.c.h.b16 %v406
  %v1585 = vunpack.c.l.b16 %v407
  %v1586 = vunpack.c.h.b16 %v407
  %v1587 = vunpack.c.l.b16 %v408
  %v1588 = vunpack.c.h.b16 %v408
  %v1589 = vunpack.c.l.b16 %v409
  %v1590 = vunpack.c.h.b16 %v409
  %v1591 = vunpack.c.l.b16 %v410
  %v1592 = vunpack.c.h.b16 %v410
  %v1593 = vunpack.c.l.b16 %v411
  %v1594 = vunpack.c.h.b16 %v411
  %v1595 = vunpack.c.l.b16 %v412
  %v1596 = vunpack.c.h.b16 %v412
  %v1597 = vpack.c.b16 %v853, %v847
  %v1598 = vpack.c.b16 %v854, %v848
  %v1599 = vpack.c.b16 %v855, %v849
  %v1600 = vpack.c.b16 %v856, %v850
  %v1601 = vpack.c.b16 %v857, %v851
  %v1602 = vpack.c.b16 %v858, %v852
  %v1603 = vpack.c.b16 %v865, %v859
  %v1604 = vpack.c.b16 %v866, %v860
  %v1605 = vpack.c.b16 %v867, %v861
  %v1606 = vpack.c.b16 %v868, %v862
  %v1607 = vpack.c.b16 %v869, %v863
  %v1608 = vpack.c.b16 %v870, %v864
  %v1609 = vpack.c.b16 %v877, %v871
  %v1610 = vpack.c.b16 %v878, %v872
  %v1611 = vpack.c.b16 %v879, %v873
  %v1612 = vpack.c.b16 %v880, %v874
  %v1613 = vpack.c.b16 %v881, %v875
  %v1614 = vpack.c.b16 %v882, %v876
  %v1615 = vpack.c.b16 %v889, %v883
  %v1616 = vpack.c.b16 %v890, %v884
  %v1617 = vpack.c.b16 %v891, %v885
  %v1618 = vpack.c.b16 %v892, %v886
  %v1619 = vpack.c.b16 %v893, %v887
  %v1620 = vpack.c.b16 %v894, %v888
  %v1621 = vpack.c.b16 %v901, %v895
  %v1622 = vpack.c.b16 %v902, %v896
  %v1623 = vpack.c.b16 %v903, %v897
  %v1624 = vpack.c.b16 %v904, %v898
  %v1625 = vpack.c.b16 %v905, %v899
  %v1626 = vpack.c.b16 %v906, %v900
  %v1627 = vpack.c.b16 %v913, %v907
  %v1628 = vpack.c.b16 %v914, %v908
  %v1629 = vpack.c.b16 %v915, %v909
  %v1630 = vpack.c.b16 %v916, %v910
  %v1631 = vpack.c.b16 %v917, %v911
  %v1632 = vpack.c.b16 %v918, %v912
  %v1633 = vpack.c.b16 %v925, %v919
  %v1634 = vpack.c.b16 %v926, %v920
  %v1635 = vpack.c.b16 %v927, %v921
  %v1636 = vpack.c.b16 %v928, %v922
  %v1637 = vpack.c.b16 %v929, %v923
  %v1638 = vpack.c.b16 %v930, %v924
  %v1639 = vpack.c.b16 %v937, %v931
  %v1640 = vpack.c.b16 %v938, %v932
  %v1641 = vpack.c.b16 %v939, %v933
  %v1642 = vpack.c.b16 %v940, %v934
  %v1643 = vpack.c.b16 %v941, %v935
  %v1644 = vpack.c.b16 %v942, %v936
  %v1645 = vpack.c.b16 %v949, %v943
  %v1646 = vpack.c.b16 %v950, %v944
  %v1647 = vpack.c.b16 %v951, %v945
  %v1648 = vpack.c.b16 %v952, %v946
  %v1649 = vpack.c.b16 %v953, %v947
  %v1650 = vpack.c.b16 %v954, %v948
  %v1651 = vpack.c.b16 %v961, %v955
  %v1652 = vpack.c.b16 %v962, %v956
  %v1653 = vpack.c.b16 %v963, %v957
  %v1654 = vpack.c.b16 %v964, %v958
  %v1655 = vpack.c.b16 %v965, %v959
  %v1656 = vpack.c.b16 %v966, %v960
  %v1657 = vpack.c.b16 %v973, %v967
  %v1658 = vpack.c.b16 %v974, %v968
  %v1659 = vpack.c.b16 %v975, %v969
  %v1660 = vpack.c.b16 %v976, %v970
  %v1661 = vpack.c.b16 %v977, %v971
  %v1662 = vpack.c.b16 %v978, %v972
  %v1663 = vpack.c.b16 %v985, %v979
  %v1664 = vpack.c.b16 %v986, %v980
  %v1665 = vpack.c.b16 %v987, %v981
  %v1666 = vpack.c.b16 %v988, %v982
  %v1667 = vpack.c.b16 %v989, %v983
  %v1668 = vpack.c.b16 %v990, %v984
  %v1669 = vpack.c.b16 %v997, %v991
  %v1670 = vpack.c.b16 %v998, %v992
  %v1671 = vpack.c.b16 %v999, %v993
  %v1672 = vpack.c.b16 %v1000, %v994
  %v1673 = vpack.c.b16 %v1001, %v995
  %v1674 = vpack.c.b16 %v1002, %v996
  %v1675 = vpack.c.b16 %v1009, %v1003
  %v1676 = vpack.c.b16 %v1010, %v1004
  %v1677 = vpack.c.b16 %v1011, %v1005
  %v1678 = vpack.c.b16 %v1012, %v1006
  %v1679 = vpack.c.b16 %v1013, %v1007
  %v1680 = vpack.c.b16 %v1014, %v1008
  %v1681 = vpack.c.b16 %v1021, %v1015
  %v1682 = vpack.c.b16 %v1022, %v1016
  %v1683 = vpack.c.b16 %v1023, %v1017
  %v1684 = vpack.c.b16 %v1024, %v1018
  %v1685 = vpack.c.b16 %v1025, %v1019
  %v1686 = vpack.c.b16 %v1026, %v1020
  %v1687 = vpack.c.b16 %v1033, %v1027
  %v1688 = vpack.c.b16 %v1034, %v1028
  %v1689 = vpack.c.b16 %v1035, %v1029
  %v1690 = vpack.c.b16 %v1036, %v1030
  %v1691 = vpack.c.b16 %v1037, %v1031
  %v1692 = vpack.c.b16 %v1038, %v1032
  %v1693 = vpack.c.b16 %v1045, %v1039
  %v1694 = vpack.c.b16 %v1046, %v1040
  %v1695 = vpack.c.b16 %v1047, %v1041
  %v1696 = vpack.c.b16 %v1048, %v1042
  %v1697 = vpack.c.b16 %v1049, %v1043
  %v1698 = vpack.c.b16 %v1050, %v1044
  %v1699 = vpack.c.b16 %v1057, %v1051
  %v1700 = vpack.c.b16 %v1058, %v1052
  %v1701 = vpack.c.b16 %v1059, %v1053
  %v1702 = vpack.c.b16 %v1060, %v1054
  %v1703 = vpack.c.b16 %v1061, %v1055
  %v1704 = vpack.c.b16 %v1062, %v1056
  %v1705 = vpack.c.b16 %v1069, %v1063
  %v1706 = vpack.c.b16 %v1070, %v1064
  %v1707 = vpack.c.b16 %v1071, %v1065
  %v1708 = vpack.c.b16 %v1072, %v1066
  %v1709 = vpack.c.b16 %v1073, %v1067
  %v1710 = vpack.c.b16 %v1074, %v1068
  %v1711 = vpack.c.b16 %v1081, %v1075
  %v1712 = vpack.c.b16 %v1082, %v1076
  %v1713 = vpack.c.b16 %v1083, %v1077
  %v1714 = vpack.c.b16 %v1084, %v1078
  %v1715 = vpack.c.b16 %v1085, %v1079
  %v1716 = vpack.c.b16 %v1086, %v1080
  %v1717 = vpack.c.b16 %v1093, %v1087
  %v1718 = vpack.c.b16 %v1094, %v1088
  %v1719 = vpack.c.b16 %v1095, %v1089
  %v1720 = vpack.c.b16 %v1096, %v1090
  %v1721 = vpack.c.b16 %v1097, %v1091
  %v1722 = vpack.c.b16 %v1098, %v1092
  %v1723 = vpack.c.b16 %v1105, %v1099
  %v1724 = vpack.c.b16 %v1106, %v1100
  %v1725 = vpack.c.b16 %v1107, %v1101
  %v1726 = vpack.c.b16 %v1108, %v1102
  %v1727 = vpack.c.b16 %v1109, %v1103
  %v1728 = vpack.c.b16 %v1110, %v1104
  %v1729 = vpack.c.b16 %v1117, %v1111
  %v1730 = vpack.c.b16 %v1118, %v1112
  %v1731 = vpack.c.b16 %v1119, %v1113
  %v1732 = vpack.c.b16 %v1120, %v1114
  %v1733 = vpack.c.b16 %v1121, %v1115
  %v1734 = vpack.c.b16 %v1122, %v1116
  %v1735 = vpack.c.b16 %v1129, %v1123
  %v1736 = vpack.c.b16 %v1130, %v1124
  %v1737 = vpack.c.b16 %v1131, %v1125
  %v1738 = vpack.c.b16 %v1132, %v1126
  %v1739 = vpack.c.b16 %v1133, %v1127
  %v1740 = vpack.c.b16 %v1134, %v1128
  %v1741 = vpack.c.b16 %v1141, %v1135
  %v1742 = vpack.c.b16 %v1142, %v1136
  %v1743 = vpack.c.b16 %v1143, %v1137
  %v1744 = vpack.c.b16 %v1144, %v1138
  %v1745 = vpack.c.b16 %v1145, %v1139
  %v1746 = vpack.c.b16 %v1146, %v1140
  %v1747 = vpack.c.b16 %v1153, %v1147
  %v1748 = vpack.c.b16 %v1154, %v1148
  %v1749 = vpack.c.b16 %v1155, %v1149
  %v1750 = vpack.c.b16 %v1156, %v1150
  %v1751 = vpack.c.b16 %v1157, %v1151
  %v1752 = vpack.c.b16 %v1158, %v1152
  %v1753 = vpack.c.b16 %v1165, %v1159
  %v1754 = vpack.c.b16 %v1166, %v1160
  %v1755 = vpack.c.b16 %v1167, %v1161
  %v1756 = vpack.c.b16 %v1168, %v1162
  %v1757 = vpack.c.b16 %v1169, %v1163
  %v1758 = vpack.c.b16 %v1170, %v1164
  %v1759 = vpack.c.b16 %v1177, %v1171
  %v1760 = vpack.c.b16 %v1178, %v1172
  %v1761 = vpack.c.b16 %v1179, %v1173
  %v1762 = vpack.c.b16 %v1180, %v1174
  %v1763 = vpack.c.b16 %v1181, %v1175
  %v1764 = vpack.c.b16 %v1182, %v1176
  %v1765 = vpack.c.b16 %v1189, %v1183
  %v1766 = vpack.c.b16 %v1190, %v1184
  %v1767 = vpack.c.b16 %v1191, %v1185
  %v1768 = vpack.c.b16 %v1192, %v1186
  %v1769 = vpack.c.b16 %v1193, %v1187
  %v1770 = vpack.c.b16 %v1194, %v1188
  %v1771 = vpack.c.b16 %v1201, %v1195
  %v1772 = vpack.c.b16 %v1202, %v1196
  %v1773 = vpack.c.b16 %v1203, %v1197
  %v1774 = vpack.c.b16 %v1204, %v1198
  %v1775 = vpack.c.b16 %v1205, %v1199
  %v1776 = vpack.c.b16 %v1206, %v1200
  %v1777 = vpack.c.b16 %v1213, %v1207
  %v1778 = vpack.c.b16 %v1214, %v1208
  %v1779 = vpack.c.b16 %v1215, %v1209
  %v1780 = vpack.c.b16 %v1216, %v1210
  %v1781 = vpack.c.b16 %v1217, %v1211
  %v1782 = vpack.c.b16 %v1218, %v1212
  %v1783 = vpack.c.b16 %v1225, %v1219
  %v1784 = vpack.c.b16 %v1226, %v1220
  %v1785 = vpack.c.b16 %v1227, %v1221
  %v1786 = vpack.c.b16 %v1228, %v1222
  %v1787 = vpack.c.b16 %v1229, %v1223
  %v1788 = vpack.c.b16 %v1230, %v1224
  %v1789 = vpack.c.b16 %v1237, %v1231
  %v1790 = vpack.c.b16 %v1238, %v1232
  %v1791 = vpack.c.b16 %v1239, %v1233
  %v1792 = vpack.c.b16 %v1240, %v1234
  %v1793 = vpack.c.b16 %v1241, %v1235
  %v1794 = vpack.c.b16 %v1242, %v1236
  %v1795 = vpack.c.b16 %v1249, %v1243
  %v1796 = vpack.c.b16 %v1250, %v1244
  %v1797 = vpack.c.b16 %v1251, %v1245
  %v1798 = vpack.c.b16 %v1252, %v1246
  %v1799 = vpack.c.b16 %v1253, %v1247
  %v1800 = vpack.c.b16 %v1254, %v1248
  %v1801 = vpack.c.b16 %v1261, %v1255
  %v1802 = vpack.c.b16 %v1262, %v1256
  %v1803 = vpack.c.b16 %v1263, %v1257
  %v1804 = vpack.c.b16 %v1264, %v1258
  %v1805 = vpack.c.b16 %v1265, %v1259
  %v1806 = vpack.c.b16 %v1266, %v1260
  %v1807 = vpack.c.b16 %v1273, %v1267
  %v1808 = vpack.c.b16 %v1274, %v1268
  %v1809 = vpack.c.b16 %v1275, %v1269
  %v1810 = vpack.c.b16 %v1276, %v1270
  %v1811 = vpack.c.b16 %v1277, %v1271
  %v1812 = vpack.c.b16 %v1278, %v1272
  %v1813 = vpack.c.b16 %v1285, %v1279
  %v1814 = vpack.c.b16 %v1286, %v1280
  %v1815 = vpack.c.b16 %v1287, %v1281
  %v1816 = vpack.c.b16 %v1288, %v1282
  %v1817 = vpack.c.b16 %v1289, %v1283
  %v1818 = vpack.c.b16 %v1290, %v1284
  %v1819 = vpack.c.b16 %v1297, %v1291
  %v1820 = vpack.c.b16 %v1298, %v1292
  %v1821 = vpack.c.b16 %v1299, %v1293
  %v1822 = vpack.c.b16 %v1300, %v1294
  %v1823 = vpack.c.b16 %v1301, %v1295
  %v1824 = vpack.c.b16 %v1302, %v1296
  %v1825 = vpack.c.b16 %v1309, %v1303
  %v1826 = vpack.c.b16 %v1310, %v1304
  %v1827 = vpack.c.b16 %v1311, %v1305
  %v1828 = vpack.c.b16 %v1312, %v1306
  %v1829 = vpack.c.b16 %v1313, %v1307
  %v1830 = vpack.c.b16 %v1314, %v1308
  %v1831 = vpack.c.b16 %v1321, %v1315
  %v1832 = vpack.c.b16 %v1322, %v1316
  %v1833 = vpack.c.b16 %v1323, %v1317
  %v1834 = vpack.c.b16 %v1324, %v1318
  %v1835 = vpack.c.b16 %v1325, %v1319
  %v1836 = vpack.c.b16 %v1326, %v1320
  %v1837 = vpack.c.b16 %v1333, %v1327
  %v1838 = vpack.c.b16 %v1334, %v1328
  %v1839 = vpack.c.b16 %v1335, %v1329
  %v1840 = vpack.c.b16 %v1336, %v1330
  %v1841 = vpack.c.b16 %v1337, %v1331
  %v1842 = vpack.c.b16 %v1338, %v1332
  %v1843 = vpack.c.b16 %v1345, %v1339
  %v1844 = vpack.c.b16 %v1346, %v1340
  %v1845 = vpack.c.b16 %v1347, %v1341
  %v1846 = vpack.c.b16 %v1348, %v1342
  %v1847 = vpack.c.b16 %v1349, %v1343
  %v1848 = vpack.c.b16 %v1350, %v1344
  %v1849 = vpack.c.b16 %v1357, %v1351
  %v1850 = vpack.c.b16 %v1358, %v1352
  %v1851 = vpack.c.b16 %v1359, %v1353
  %v1852 = vpack.c.b16 %v1360, %v1354
  %v1853 = vpack.c.b16 %v1361, %v1355
  %v1854 = vpack.c.b16 %v1362, %v1356
  %v1855 = vpack.c.b16 %v1369, %v1363
  %v1856 = vpack.c.b16 %v1370, %v1364
  %v1857 = vpack.c.b16 %v1371, %v1365
  %v1858 = vpack.c.b16 %v1372, %v1366
  %v1859 = vpack.c.b16 %v1373, %v1367
  %v1860 = vpack.c.b16 %v1374, %v1368
  %v1861 = vpack.c.b16 %v1381, %v1375
  %v1862 = vpack.c.b16 %v1382, %v1376
  %v1863 = vpack.c.b16 %v1383, %v1377
  %v1864 = vpack.c.b16 %v1384, %v1378
  %v1865 = vpack.c.b16 %v1385, %v1379
  %v1866 = vpack.c.b16 %v1386, %v1380
  %v1867 = vpack.c.b16 %v1393, %v1387
  %v1868 = vpack.c.b16 %v1394, %v1388
  %v1869 = vpack.c.b16 %v1395, %v1389
  %v1870 = vpack.c.b16 %v1396, %v1390
  %v1871 = vpack.c.b16 %v1397, %v1391
  %v1872 = vpack.c.b16 %v1398, %v1392
  %v1873 = vpack.c.b16 %v1405, %v1399
  %v1874 = vpack.c.b16 %v1406, %v1400
  %v1875 = vpack.c.b16 %v1407, %v1401
  %v1876 = vpack.c.b16 %v1408, %v1402
  %v1877 = vpack.c.b16 %v1409, %v1403
  %v1878 = vpack.c.b16 %v1410, %v1404
  %v1879 = vpack.c.b16 %v1417, %v1411
  %v1880 = vpack.c.b16 %v1418, %v1412
  %v1881 = vpack.c.b16 %v1419, %v1413
  %v1882 = vpack.c.b16 %v1420, %v1414
  %v1883 = vpack.c.b16 %v1421, %v1415
  %v1884 = vpack.c.b16 %v1422, %v1416
  %v1885 = vpack.c.b16 %v1429, %v1423
  %v1886 = vpack.c.b16 %v1430, %v1424
  %v1887 = vpack.c.b16 %v1431, %v1425
  %v1888 = vpack.c.b16 %v1432, %v1426
  %v1889 = vpack.c.b16 %v1433, %v1427
  %v1890 = vpack.c.b16 %v1434, %v1428
  %v1891 = vpack.c.b16 %v1441, %v1435
  %v1892 = vpack.c.b16 %v1442, %v1436
  %v1893 = vpack.c.b16 %v1443, %v1437
  %v1894 = vpack.c.b16 %v1444, %v1438
  %v1895 = vpack.c.b16 %v1445, %v1439
  %v1896 = vpack.c.b16 %v1446, %v1440
  %v1897 = vpack.c.b16 %v1453, %v1447
  %v1898 = vpack.c.b16 %v1454, %v1448
  %v1899 = vpack.c.b16 %v1455, %v1449
  %v1900 = vpack.c.b16 %v1456, %v1450
  %v1901 = vpack.c.b16 %v1457, %v1451
  %v1902 = vpack.c.b16 %v1458, %v1452
  %v1903 = vpack.c.b16 %v1465, %v1459
  %v1904 = vpack.c.b16 %v1466, %v1460
  %v1905 = vpack.c.b16 %v1467, %v1461
  %v1906 = vpack.c.b16 %v1468, %v1462
  %v1907 = vpack.c.b16 %v1469, %v1463
  %v1908 = vpack.c.b16 %v1470, %v1464
  %v1909 = vpack.c.b16 %v1477, %v1471
  %v1910 = vpack.c.b16 %v1478, %v1472
  %v1911 = vpack.c.b16 %v1479, %v1473
  %v1912 = vpack.c.b16 %v1480, %v1474
  %v1913 = vpack.c.b16 %v1481, %v1475
  %v1914 = vpack.c.b16 %v1482, %v1476
  %v1915 = vpack.c.b16 %v1489, %v1483
  %v1916 = vpack.c.b16 %v1490, %v1484
  %v1917 = vpack.c.b16 %v1491, %v1485
  %v1918 = vpack.c.b16 %v1492, %v1486
  %v1919 = vpack.c.b16 %v1493, %v1487
  %v1920 = vpack.c.b16 %v1494, %v1488
  %v1921 = vpack.c.b16 %v1501, %v1495
  %v1922 = vpack.c.b16 %v1502, %v1496
  %v1923 = vpack.c.b16 %v1503, %v1497
  %v1924 = vpack.c.b16 %v1504, %v1498
  %v1925 = vpack.c.b16 %v1505, %v1499
  %v1926 = vpack.c.b16 %v1506, %v1500
  %v1927 = vpack.c.b16 %v1513, %v1507
  %v1928 = vpack.c.b16 %v1514, %v1508
  %v1929 = vpack.c.b16 %v1515, %v1509
  %v1930 = vpack.c.b16 %v1516, %v1510
  %v1931 = vpack.c.b16 %v1517, %v1511
  %v1932 = vpack.c.b16 %v1518, %v1512
  %v1933 = vpack.c.b16 %v1525, %v1519
  %v1934 = vpack.c.b16 %v1526, %v1520
  %v1935 = vpack.c.b16 %v1527, %v1521
  %v1936 = vpack.c.b16 %v1528, %v1522
  %v1937 = vpack.c.b16 %v1529, %v1523
  %v1938 = vpack.c.b16 %v1530, %v1524
  %v1939 = vpack.c.b16 %v1537, %v1531
  %v1940 = vpack.c.b16 %v1538, %v1532
  %v1941 = vpack.c.b16 %v1539, %v1533
  %v1942 = vpack.c.b16 %v1540, %v1534
  %v1943 = vpack.c.b16 %v1541, %v1535
  %v1944 = vpack.c.b16 %v1542, %v1536
  %v1945 = vpack.c.b16 %v1549, %v1543
  %v1946 = vpack.c.b16 %v1550, %v1544
  %v1947 = vpack.c.b16 %v1551, %v1545
  %v1948 = vpack.c.b16 %v1552, %v1546
  %v1949 = vpack.c.b16 %v1553, %v1547
  %v1950 = vpack.c.b16 %v1554, %v1548
  %v1951 = vpack.c.b16 %v1561, %v1555
  %v1952 = vpack.c.b16 %v1562, %v1556
  %v1953 = vpack.c.b16 %v1563, %v1557
  %v1954 = vpack.c.b16 %v1564, %v1558
  %v1955 = vpack.c.b16 %v1565, %v1559
  %v1956 = vpack.c.b16 %v1566, %v1560
  %v1957 = vpack.c.b16 %v1573, %v1567
  %v1958 = vpack.c.b16 %v1574, %v1568
  %v1959 = vpack.c.b16 %v1575, %v1569
  %v1960 = vpack.c.b16 %v1576, %v1570
  %v1961 = vpack.c.b16 %v1577, %v1571
  %v1962 = vpack.c.b16 %v1578, %v1572
  %v1963 = vpack.c.b16 %v1585, %v1579
  %v1964 = vpack.c.b16 %v1586, %v1580
  %v1965 = vpack.c.b16 %v1587, %v1581
  %v1966 = vpack.c.b16 %v1588, %v1582
  %v1967 = vpack.c.b16 %v1589, %v1583
  %v1968 = vpack.c.b16 %v1590, %v1584
  %v1969 = vpack.c.b16 %v1591, %v1591
  %v1970 = vpack.c.b16 %v1592, %v1592
  %v1971 = vpack.c.b16 %v1593, %v1593
  %v1972 = vpack.c.b16 %v1594, %v1594
  %v1973 = vpack.c.b16 %v1595, %v1595
  %v1974 = vpack.c.b16 %v1596, %v1596
  %vm2347 = vcmask 850944
  %v2349 = vsel %vm2347, %v464, 0
  %vm2351 = vcmask 1043456
  %v2353 = vsel %vm2351, %v1969, 0
  %v2356 = vsel %vm2351, %v1970, 0
  %v2359 = vsel %vm2351, %v1971, 0
  %v2362 = vsel %vm2351, %v1972, 0
  %v2365 = vsel %vm2351, %v1973, 0
  %v2368 = vsel %vm2351, %v1974, 0
  %2370 = vmatprep.subr.bf16.mxu0 %v1598
  %2371 = vmatpush1.bf16.msra.mxu0 %v1597
  %2372 = vmatprep.subr.bf16.mxu0 %v1604
  %2373 = vmatpush1.bf16.msra.mxu0 %v1603
  %2374 = vmatprep.subr.bf16.mxu0 %v1610
  %2375 = vmatpush1.bf16.msra.mxu0 %v1609
  %2376 = vmatprep.subr.bf16.mxu0 %v1616
  %2377 = vmatpush1.bf16.msra.mxu0 %v1615
  %2378 = vmatprep.subr.bf16.mxu0 %v1622
  %2379 = vmatpush1.bf16.msra.mxu0 %v1621
  %2380 = vmatprep.subr.bf16.mxu0 %v1628
  %2381 = vmatpush1.bf16.msra.mxu0 %v1627
  %2382 = vmatprep.subr.bf16.mxu0 %v1634
  %2383 = vmatpush1.bf16.msra.mxu0 %v1633
  %2384 = vmatprep.subr.bf16.mxu0 %v1640
  %2385 = vmatpush1.bf16.msra.mxu0 %v1639
  %2386 = vmatprep.subr.bf16.mxu0 %v1646
  %2387 = vmatpush1.bf16.msra.mxu0 %v1645
  %2388 = vmatprep.subr.bf16.mxu0 %v1652
  %2389 = vmatpush1.bf16.msra.mxu0 %v1651
  %2390 = vmatprep.subr.bf16.mxu0 %v1658
  %2391 = vmatpush1.bf16.msra.mxu0 %v1657
  %2392 = vmatprep.subr.bf16.mxu0 %v1664
  %2393 = vmatpush1.bf16.msra.mxu0 %v1663
  %2394 = vmatprep.subr.bf16.mxu0 %v1670
  %2395 = vmatpush1.bf16.msra.mxu0 %v1669
  %2396 = vmatprep.subr.bf16.mxu0 %v1676
  %2397 = vmatpush1.bf16.msra.mxu0 %v1675
  %2398 = vmatprep.subr.bf16.mxu0 %v1682
  %2399 = vmatpush1.bf16.msra.mxu0 %v1681
  %2400 = vmatprep.subr.bf16.mxu0 %v1688
  %2401 = vmatpush1.bf16.msra.mxu0 %v1687
  %2402 = vmatprep.mubr.bf16.mxu0 %v458
  %2403 = vmatmul.mubr.bf16.gmra.mrb[0].mxu0 %v457
  %v2404 = vpop.f32.mrb[0].mxu0
  %v2405 = vadd.f32 %v418, %v2404
  %v2406 = vpop.f32.mrb[0].mxu0
  %v2407 = vadd.f32 %v422, %v2406
  %v2408 = vpop.f32.mrb[0].mxu0
  %v2409 = vpop.f32.mrb[0].mxu0
  %2410 = vdwg.mxu0
  %2411 = vmatprep.subr.bf16.mxu0 %v1694
  %2412 = vmatpush1.bf16.msra.mxu0 %v1693
  %2413 = vmatprep.subr.bf16.mxu0 %v1700
  %2414 = vmatpush1.bf16.msra.mxu0 %v1699
  %2415 = vmatprep.subr.bf16.mxu0 %v1706
  %2416 = vmatpush1.bf16.msra.mxu0 %v1705
  %2417 = vmatprep.subr.bf16.mxu0 %v1712
  %2418 = vmatpush1.bf16.msra.mxu0 %v1711
  %2419 = vmatprep.subr.bf16.mxu0 %v1718
  %2420 = vmatpush1.bf16.msra.mxu0 %v1717
  %2421 = vmatprep.subr.bf16.mxu0 %v1724
  %2422 = vmatpush1.bf16.msra.mxu0 %v1723
  %2423 = vmatprep.subr.bf16.mxu0 %v1730
  %2424 = vmatpush1.bf16.msra.mxu0 %v1729
  %2425 = vmatprep.subr.bf16.mxu0 %v1736
  %2426 = vmatpush1.bf16.msra.mxu0 %v1735
  %2427 = vmatprep.subr.bf16.mxu0 %v1742
  %2428 = vmatpush1.bf16.msra.mxu0 %v1741
  %2429 = vmatprep.subr.bf16.mxu0 %v1748
  %2430 = vmatpush1.bf16.msra.mxu0 %v1747
  %2431 = vmatprep.subr.bf16.mxu0 %v1754
  %2432 = vmatpush1.bf16.msra.mxu0 %v1753
  %2433 = vmatprep.subr.bf16.mxu0 %v1760
  %2434 = vmatpush1.bf16.msra.mxu0 %v1759
  %2435 = vmatprep.subr.bf16.mxu0 %v1766
  %2436 = vmatpush1.bf16.msra.mxu0 %v1765
  %2437 = vmatprep.subr.bf16.mxu0 %v1772
  %2438 = vmatpush1.bf16.msra.mxu0 %v1771
  %2439 = vmatprep.subr.bf16.mxu0 %v1778
  %2440 = vmatpush1.bf16.msra.mxu0 %v1777
  %2441 = vmatprep.subr.bf16.mxu0 %v1784
  %2442 = vmatpush1.bf16.msra.mxu0 %v1783
  %2443 = vmatprep.mubr.bf16.mxu0 %v460
  %2444 = vmatmul.mubr.bf16.gmra.mrb[0].mxu0 %v459
  %v2445 = vpop.f32.mrb[0].mxu0
  %v2446 = vadd.f32 %v2405, %v2445
  %v2447 = vpop.f32.mrb[0].mxu0
  %v2448 = vadd.f32 %v2407, %v2447
  %v2449 = vpop.f32.mrb[0].mxu0
  %v2450 = vpop.f32.mrb[0].mxu0
  %2451 = vdwg.mxu0
  %2452 = vmatprep.subr.bf16.mxu0 %v1790
  %2453 = vmatpush1.bf16.msra.mxu0 %v1789
  %2454 = vmatprep.subr.bf16.mxu0 %v1796
  %2455 = vmatpush1.bf16.msra.mxu0 %v1795
  %2456 = vmatprep.subr.bf16.mxu0 %v1802
  %2457 = vmatpush1.bf16.msra.mxu0 %v1801
  %2458 = vmatprep.subr.bf16.mxu0 %v1808
  %2459 = vmatpush1.bf16.msra.mxu0 %v1807
  %2460 = vmatprep.subr.bf16.mxu0 %v1814
  %2461 = vmatpush1.bf16.msra.mxu0 %v1813
  %2462 = vmatprep.subr.bf16.mxu0 %v1820
  %2463 = vmatpush1.bf16.msra.mxu0 %v1819
  %2464 = vmatprep.subr.bf16.mxu0 %v1826
  %2465 = vmatpush1.bf16.msra.mxu0 %v1825
  %2466 = vmatprep.subr.bf16.mxu0 %v1832
  %2467 = vmatpush1.bf16.msra.mxu0 %v1831
  %2468 = vmatprep.subr.bf16.mxu0 %v1838
  %2469 = vmatpush1.bf16.msra.mxu0 %v1837
  %2470 = vmatprep.subr.bf16.mxu0 %v1844
  %2471 = vmatpush1.bf16.msra.mxu0 %v1843
  %2472 = vmatprep.subr.bf16.mxu0 %v1850
  %2473 = vmatpush1.bf16.msra.mxu0 %v1849
  %2474 = vmatprep.subr.bf16.mxu0 %v1856
  %2475 = vmatpush1.bf16.msra.mxu0 %v1855
  %2476 = vmatprep.subr.bf16.mxu0 %v1862
  %2477 = vmatpush1.bf16.msra.mxu0 %v1861
  %2478 = vmatprep.subr.bf16.mxu0 %v1868
  %2479 = vmatpush1.bf16.msra.mxu0 %v1867
  %2480 = vmatprep.subr.bf16.mxu0 %v1874
  %2481 = vmatpush1.bf16.msra.mxu0 %v1873
  %2482 = vmatprep.subr.bf16.mxu0 %v1880
  %2483 = vmatpush1.bf16.msra.mxu0 %v1879
  %2484 = vmatprep.mubr.bf16.mxu0 %v462
  %2485 = vmatmul.mubr.bf16.gmra.mrb[0].mxu0 %v461
  %v2486 = vpop.f32.mrb[0].mxu0
  %v2487 = vadd.f32 %v2446, %v2486
  %v2488 = vpop.f32.mrb[0].mxu0
  %v2489 = vadd.f32 %v2448, %v2488
  %v2490 = vpop.f32.mrb[0].mxu0
  %v2491 = vpop.f32.mrb[0].mxu0
  %2492 = vdwg.mxu0
  %2493 = vmatprep.subr.bf16.mxu0 %v1886
  %2494 = vmatpush1.bf16.msra.mxu0 %v1885
  %2495 = vmatprep.subr.bf16.mxu0 %v1892
  %2496 = vmatpush1.bf16.msra.mxu0 %v1891
  %2497 = vmatprep.subr.bf16.mxu0 %v1898
  %2498 = vmatpush1.bf16.msra.mxu0 %v1897
  %2499 = vmatprep.subr.bf16.mxu0 %v1904
  %2500 = vmatpush1.bf16.msra.mxu0 %v1903
  %2501 = vmatprep.subr.bf16.mxu0 %v1910
  %2502 = vmatpush1.bf16.msra.mxu0 %v1909
  %2503 = vmatprep.subr.bf16.mxu0 %v1916
  %2504 = vmatpush1.bf16.msra.mxu0 %v1915
  %2505 = vmatprep.subr.bf16.mxu0 %v1922
  %2506 = vmatpush1.bf16.msra.mxu0 %v1921
  %2507 = vmatprep.subr.bf16.mxu0 %v1928
  %2508 = vmatpush1.bf16.msra.mxu0 %v1927
  %2509 = vmatprep.subr.bf16.mxu0 %v1934
  %2510 = vmatpush1.bf16.msra.mxu0 %v1933
  %2511 = vmatprep.subr.bf16.mxu0 %v1940
  %2512 = vmatpush1.bf16.msra.mxu0 %v1939
  %2513 = vmatprep.subr.bf16.mxu0 %v1946
  %2514 = vmatpush1.bf16.msra.mxu0 %v1945
  %2515 = vmatprep.subr.bf16.mxu0 %v1952
  %2516 = vmatpush1.bf16.msra.mxu0 %v1951
  %2517 = vmatprep.subr.bf16.mxu0 %v1958
  %2518 = vmatpush1.bf16.msra.mxu0 %v1957
  %2519 = vmatprep.subr.bf16.mxu0 %v1964
  %2520 = vmatpush1.bf16.msra.mxu0 %v1963
  %2521 = vmatprep.subr.bf16.mxu0 %v2356
  %2522 = vmatpush1.bf16.msra.mxu0 %v2353
  %2523 = vmatprep.subr.bf16.mxu0 0
  %2524 = vmatpush1.bf16.msra.mxu0 0
  %2525 = vmatprep.mubr.bf16.mxu0 %v2349
  %2526 = vmatmul.mubr.bf16.gmra.mrb[0].mxu0 %v463
  %v2527 = vpop.f32.mrb[0].mxu0
  %v2528 = vadd.f32 %v2487, %v2527
  %v2529 = vpop.f32.mrb[0].mxu0
  %v2530 = vadd.f32 %v2489, %v2529
  %v2531 = vpop.f32.mrb[0].mxu0
  %v2532 = vpop.f32.mrb[0].mxu0
  %2533 = vdwg.mxu0
  %2534 = vmatprep.subr.bf16.mxu0 %v1600
  %2535 = vmatpush1.bf16.msra.mxu0 %v1599
  %2536 = vmatprep.subr.bf16.mxu0 %v1606
  %2537 = vmatpush1.bf16.msra.mxu0 %v1605
  %2538 = vmatprep.subr.bf16.mxu0 %v1612
  %2539 = vmatpush1.bf16.msra.mxu0 %v1611
  %2540 = vmatprep.subr.bf16.mxu0 %v1618
  %2541 = vmatpush1.bf16.msra.mxu0 %v1617
  %2542 = vmatprep.subr.bf16.mxu0 %v1624
  %2543 = vmatpush1.bf16.msra.mxu0 %v1623
  %2544 = vmatprep.subr.bf16.mxu0 %v1630
  %2545 = vmatpush1.bf16.msra.mxu0 %v1629
  %2546 = vmatprep.subr.bf16.mxu0 %v1636
  %2547 = vmatpush1.bf16.msra.mxu0 %v1635
  %2548 = vmatprep.subr.bf16.mxu0 %v1642
  %2549 = vmatpush1.bf16.msra.mxu0 %v1641
  %2550 = vmatprep.subr.bf16.mxu0 %v1648
  %2551 = vmatpush1.bf16.msra.mxu0 %v1647
  %2552 = vmatprep.subr.bf16.mxu0 %v1654
  %2553 = vmatpush1.bf16.msra.mxu0 %v1653
  %2554 = vmatprep.subr.bf16.mxu0 %v1660
  %2555 = vmatpush1.bf16.msra.mxu0 %v1659
  %2556 = vmatprep.subr.bf16.mxu0 %v1666
  %2557 = vmatpush1.bf16.msra.mxu0 %v1665
  %2558 = vmatprep.subr.bf16.mxu0 %v1672
  %2559 = vmatpush1.bf16.msra.mxu0 %v1671
  %2560 = vmatprep.subr.bf16.mxu0 %v1678
  %2561 = vmatpush1.bf16.msra.mxu0 %v1677
  %2562 = vmatprep.subr.bf16.mxu0 %v1684
  %2563 = vmatpush1.bf16.msra.mxu0 %v1683
  %2564 = vmatprep.subr.bf16.mxu0 %v1690
  %2565 = vmatpush1.bf16.msra.mxu0 %v1689
  %2566 = vmatprep.mubr.bf16.mxu0 %v458
  %2567 = vmatmul.mubr.bf16.gmra.mrb[0].mxu0 %v457
  %v2568 = vpop.f32.mrb[0].mxu0
  %v2569 = vadd.f32 %v426, %v2568
  %v2570 = vpop.f32.mrb[0].mxu0
  %v2571 = vadd.f32 %v430, %v2570
  %v2572 = vpop.f32.mrb[0].mxu0
  %v2573 = vpop.f32.mrb[0].mxu0
  %2574 = vdwg.mxu0
  %2575 = vmatprep.subr.bf16.mxu0 %v1696
  %2576 = vmatpush1.bf16.msra.mxu0 %v1695
  %2577 = vmatprep.subr.bf16.mxu0 %v1702
  %2578 = vmatpush1.bf16.msra.mxu0 %v1701
  %2579 = vmatprep.subr.bf16.mxu0 %v1708
  %2580 = vmatpush1.bf16.msra.mxu0 %v1707
  %2581 = vmatprep.subr.bf16.mxu0 %v1714
  %2582 = vmatpush1.bf16.msra.mxu0 %v1713
  %2583 = vmatprep.subr.bf16.mxu0 %v1720
  %2584 = vmatpush1.bf16.msra.mxu0 %v1719
  %2585 = vmatprep.subr.bf16.mxu0 %v1726
  %2586 = vmatpush1.bf16.msra.mxu0 %v1725
  %2587 = vmatprep.subr.bf16.mxu0 %v1732
  %2588 = vmatpush1.bf16.msra.mxu0 %v1731
  %2589 = vmatprep.subr.bf16.mxu0 %v1738
  %2590 = vmatpush1.bf16.msra.mxu0 %v1737
  %2591 = vmatprep.subr.bf16.mxu0 %v1744
  %2592 = vmatpush1.bf16.msra.mxu0 %v1743
  %2593 = vmatprep.subr.bf16.mxu0 %v1750
  %2594 = vmatpush1.bf16.msra.mxu0 %v1749
  %2595 = vmatprep.subr.bf16.mxu0 %v1756
  %2596 = vmatpush1.bf16.msra.mxu0 %v1755
  %2597 = vmatprep.subr.bf16.mxu0 %v1762
  %2598 = vmatpush1.bf16.msra.mxu0 %v1761
  %2599 = vmatprep.subr.bf16.mxu0 %v1768
  %2600 = vmatpush1.bf16.msra.mxu0 %v1767
  %2601 = vmatprep.subr.bf16.mxu0 %v1774
  %2602 = vmatpush1.bf16.msra.mxu0 %v1773
  %2603 = vmatprep.subr.bf16.mxu0 %v1780
  %2604 = vmatpush1.bf16.msra.mxu0 %v1779
  %2605 = vmatprep.subr.bf16.mxu0 %v1786
  %2606 = vmatpush1.bf16.msra.mxu0 %v1785
  %2607 = vmatprep.mubr.bf16.mxu0 %v460
  %2608 = vmatmul.mubr.bf16.gmra.mrb[0].mxu0 %v459
  %v2609 = vpop.f32.mrb[0].mxu0
  %v2610 = vadd.f32 %v2569, %v2609
  %v2611 = vpop.f32.mrb[0].mxu0
  %v2612 = vadd.f32 %v2571, %v2611
  %v2613 = vpop.f32.mrb[0].mxu0
  %v2614 = vpop.f32.mrb[0].mxu0
  %2615 = vdwg.mxu0
  %2616 = vmatprep.subr.bf16.mxu0 %v1792
  %2617 = vmatpush1.bf16.msra.mxu0 %v1791
  %2618 = vmatprep.subr.bf16.mxu0 %v1798
  %2619 = vmatpush1.bf16.msra.mxu0 %v1797
  %2620 = vmatprep.subr.bf16.mxu0 %v1804
  %2621 = vmatpush1.bf16.msra.mxu0 %v1803
  %2622 = vmatprep.subr.bf16.mxu0 %v1810
  %2623 = vmatpush1.bf16.msra.mxu0 %v1809
  %2624 = vmatprep.subr.bf16.mxu0 %v1816
  %2625 = vmatpush1.bf16.msra.mxu0 %v1815
  %2626 = vmatprep.subr.bf16.mxu0 %v1822
  %2627 = vmatpush1.bf16.msra.mxu0 %v1821
  %2628 = vmatprep.subr.bf16.mxu0 %v1828
  %2629 = vmatpush1.bf16.msra.mxu0 %v1827
  %2630 = vmatprep.subr.bf16.mxu0 %v1834
  %2631 = vmatpush1.bf16.msra.mxu0 %v1833
  %2632 = vmatprep.subr.bf16.mxu0 %v1840
  %2633 = vmatpush1.bf16.msra.mxu0 %v1839
  %2634 = vmatprep.subr.bf16.mxu0 %v1846
  %2635 = vmatpush1.bf16.msra.mxu0 %v1845
  %2636 = vmatprep.subr.bf16.mxu0 %v1852
  %2637 = vmatpush1.bf16.msra.mxu0 %v1851
  %2638 = vmatprep.subr.bf16.mxu0 %v1858
  %2639 = vmatpush1.bf16.msra.mxu0 %v1857
  %2640 = vmatprep.subr.bf16.mxu0 %v1864
  %2641 = vmatpush1.bf16.msra.mxu0 %v1863
  %2642 = vmatprep.subr.bf16.mxu0 %v1870
  %2643 = vmatpush1.bf16.msra.mxu0 %v1869
  %2644 = vmatprep.subr.bf16.mxu0 %v1876
  %2645 = vmatpush1.bf16.msra.mxu0 %v1875
  %2646 = vmatprep.subr.bf16.mxu0 %v1882
  %2647 = vmatpush1.bf16.msra.mxu0 %v1881
  %2648 = vmatprep.mubr.bf16.mxu0 %v462
  %2649 = vmatmul.mubr.bf16.gmra.mrb[0].mxu0 %v461
  %v2650 = vpop.f32.mrb[0].mxu0
  %v2651 = vadd.f32 %v2610, %v2650
  %v2652 = vpop.f32.mrb[0].mxu0
  %v2653 = vadd.f32 %v2612, %v2652
  %v2654 = vpop.f32.mrb[0].mxu0
  %v2655 = vpop.f32.mrb[0].mxu0
  %2656 = vdwg.mxu0
  %2657 = vmatprep.subr.bf16.mxu0 %v1888
  %2658 = vmatpush1.bf16.msra.mxu0 %v1887
  %2659 = vmatprep.subr.bf16.mxu0 %v1894
  %2660 = vmatpush1.bf16.msra.mxu0 %v1893
  %2661 = vmatprep.subr.bf16.mxu0 %v1900
  %2662 = vmatpush1.bf16.msra.mxu0 %v1899
  %2663 = vmatprep.subr.bf16.mxu0 %v1906
  %2664 = vmatpush1.bf16.msra.mxu0 %v1905
  %2665 = vmatprep.subr.bf16.mxu0 %v1912
  %2666 = vmatpush1.bf16.msra.mxu0 %v1911
  %2667 = vmatprep.subr.bf16.mxu0 %v1918
  %2668 = vmatpush1.bf16.msra.mxu0 %v1917
  %2669 = vmatprep.subr.bf16.mxu0 %v1924
  %2670 = vmatpush1.bf16.msra.mxu0 %v1923
  %2671 = vmatprep.subr.bf16.mxu0 %v1930
  %2672 = vmatpush1.bf16.msra.mxu0 %v1929
  %2673 = vmatprep.subr.bf16.mxu0 %v1936
  %2674 = vmatpush1.bf16.msra.mxu0 %v1935
  %2675 = vmatprep.subr.bf16.mxu0 %v1942
  %2676 = vmatpush1.bf16.msra.mxu0 %v1941
  %2677 = vmatprep.subr.bf16.mxu0 %v1948
  %2678 = vmatpush1.bf16.msra.mxu0 %v1947
  %2679 = vmatprep.subr.bf16.mxu0 %v1954
  %2680 = vmatpush1.bf16.msra.mxu0 %v1953
  %2681 = vmatprep.subr.bf16.mxu0 %v1960
  %2682 = vmatpush1.bf16.msra.mxu0 %v1959
  %2683 = vmatprep.subr.bf16.mxu0 %v1966
  %2684 = vmatpush1.bf16.msra.mxu0 %v1965
  %2685 = vmatprep.subr.bf16.mxu0 %v2362
  %2686 = vmatpush1.bf16.msra.mxu0 %v2359
  %2687 = vmatprep.subr.bf16.mxu0 0
  %2688 = vmatpush1.bf16.msra.mxu0 0
  %2689 = vmatprep.mubr.bf16.mxu0 %v2349
  %2690 = vmatmul.mubr.bf16.gmra.mrb[0].mxu0 %v463
  %v2691 = vpop.f32.mrb[0].mxu0
  %v2692 = vadd.f32 %v2651, %v2691
  %v2693 = vpop.f32.mrb[0].mxu0
  %v2694 = vadd.f32 %v2653, %v2693
  %v2695 = vpop.f32.mrb[0].mxu0
  %v2696 = vpop.f32.mrb[0].mxu0
  %2697 = vdwg.mxu0
  %2698 = vmatprep.subr.bf16.mxu0 %v1602
  %2699 = vmatpush1.bf16.msra.mxu0 %v1601
  %2700 = vmatprep.subr.bf16.mxu0 %v1608
  %2701 = vmatpush1.bf16.msra.mxu0 %v1607
  %2702 = vmatprep.subr.bf16.mxu0 %v1614
  %2703 = vmatpush1.bf16.msra.mxu0 %v1613
  %2704 = vmatprep.subr.bf16.mxu0 %v1620
  %2705 = vmatpush1.bf16.msra.mxu0 %v1619
  %2706 = vmatprep.subr.bf16.mxu0 %v1626
  %2707 = vmatpush1.bf16.msra.mxu0 %v1625
  %2708 = vmatprep.subr.bf16.mxu0 %v1632
  %2709 = vmatpush1.bf16.msra.mxu0 %v1631
  %2710 = vmatprep.subr.bf16.mxu0 %v1638
  %2711 = vmatpush1.bf16.msra.mxu0 %v1637
  %2712 = vmatprep.subr.bf16.mxu0 %v1644
  %2713 = vmatpush1.bf16.msra.mxu0 %v1643
  %2714 = vmatprep.subr.bf16.mxu0 %v1650
  %2715 = vmatpush1.bf16.msra.mxu0 %v1649
  %2716 = vmatprep.subr.bf16.mxu0 %v1656
  %2717 = vmatpush1.bf16.msra.mxu0 %v1655
  %2718 = vmatprep.subr.bf16.mxu0 %v1662
  %2719 = vmatpush1.bf16.msra.mxu0 %v1661
  %2720 = vmatprep.subr.bf16.mxu0 %v1668
  %2721 = vmatpush1.bf16.msra.mxu0 %v1667
  %2722 = vmatprep.subr.bf16.mxu0 %v1674
  %2723 = vmatpush1.bf16.msra.mxu0 %v1673
  %2724 = vmatprep.subr.bf16.mxu0 %v1680
  %2725 = vmatpush1.bf16.msra.mxu0 %v1679
  %2726 = vmatprep.subr.bf16.mxu0 %v1686
  %2727 = vmatpush1.bf16.msra.mxu0 %v1685
  %2728 = vmatprep.subr.bf16.mxu0 %v1692
  %2729 = vmatpush1.bf16.msra.mxu0 %v1691
  %2730 = vmatprep.mubr.bf16.mxu0 %v458
  %2731 = vmatmul.mubr.bf16.gmra.mrb[0].mxu0 %v457
  %v2732 = vpop.f32.mrb[0].mxu0
  %v2733 = vadd.f32 %v434, %v2732
  %v2734 = vpop.f32.mrb[0].mxu0
  %v2735 = vadd.f32 %v438, %v2734
  %v2736 = vpop.f32.mrb[0].mxu0
  %v2737 = vpop.f32.mrb[0].mxu0
  %2738 = vdwg.mxu0
  %2739 = vmatprep.subr.bf16.mxu0 %v1698
  %2740 = vmatpush1.bf16.msra.mxu0 %v1697
  %2741 = vmatprep.subr.bf16.mxu0 %v1704
  %2742 = vmatpush1.bf16.msra.mxu0 %v1703
  %2743 = vmatprep.subr.bf16.mxu0 %v1710
  %2744 = vmatpush1.bf16.msra.mxu0 %v1709
  %2745 = vmatprep.subr.bf16.mxu0 %v1716
  %2746 = vmatpush1.bf16.msra.mxu0 %v1715
  %2747 = vmatprep.subr.bf16.mxu0 %v1722
  %2748 = vmatpush1.bf16.msra.mxu0 %v1721
  %2749 = vmatprep.subr.bf16.mxu0 %v1728
  %2750 = vmatpush1.bf16.msra.mxu0 %v1727
  %2751 = vmatprep.subr.bf16.mxu0 %v1734
  %2752 = vmatpush1.bf16.msra.mxu0 %v1733
  %2753 = vmatprep.subr.bf16.mxu0 %v1740
  %2754 = vmatpush1.bf16.msra.mxu0 %v1739
  %2755 = vmatprep.subr.bf16.mxu0 %v1746
  %2756 = vmatpush1.bf16.msra.mxu0 %v1745
  %2757 = vmatprep.subr.bf16.mxu0 %v1752
  %2758 = vmatpush1.bf16.msra.mxu0 %v1751
  %2759 = vmatprep.subr.bf16.mxu0 %v1758
  %2760 = vmatpush1.bf16.msra.mxu0 %v1757
  %2761 = vmatprep.subr.bf16.mxu0 %v1764
  %2762 = vmatpush1.bf16.msra.mxu0 %v1763
  %2763 = vmatprep.subr.bf16.mxu0 %v1770
  %2764 = vmatpush1.bf16.msra.mxu0 %v1769
  %2765 = vmatprep.subr.bf16.mxu0 %v1776
  %2766 = vmatpush1.bf16.msra.mxu0 %v1775
  %2767 = vmatprep.subr.bf16.mxu0 %v1782
  %2768 = vmatpush1.bf16.msra.mxu0 %v1781
  %2769 = vmatprep.subr.bf16.mxu0 %v1788
  %2770 = vmatpush1.bf16.msra.mxu0 %v1787
  %2771 = vmatprep.mubr.bf16.mxu0 %v460
  %2772 = vmatmul.mubr.bf16.gmra.mrb[0].mxu0 %v459
  %v2773 = vpop.f32.mrb[0].mxu0
  %v2774 = vadd.f32 %v2733, %v2773
  %v2775 = vpop.f32.mrb[0].mxu0
  %v2776 = vadd.f32 %v2735, %v2775
  %v2777 = vpop.f32.mrb[0].mxu0
  %v2778 = vpop.f32.mrb[0].mxu0
  %2779 = vdwg.mxu0
  %2780 = vmatprep.subr.bf16.mxu0 %v1794
  %2781 = vmatpush1.bf16.msra.mxu0 %v1793
  %2782 = vmatprep.subr.bf16.mxu0 %v1800
  %2783 = vmatpush1.bf16.msra.mxu0 %v1799
  %2784 = vmatprep.subr.bf16.mxu0 %v1806
  %2785 = vmatpush1.bf16.msra.mxu0 %v1805
  %2786 = vmatprep.subr.bf16.mxu0 %v1812
  %2787 = vmatpush1.bf16.msra.mxu0 %v1811
  %2788 = vmatprep.subr.bf16.mxu0 %v1818
  %2789 = vmatpush1.bf16.msra.mxu0 %v1817
  %2790 = vmatprep.subr.bf16.mxu0 %v1824
  %2791 = vmatpush1.bf16.msra.mxu0 %v1823
  %2792 = vmatprep.subr.bf16.mxu0 %v1830
  %2793 = vmatpush1.bf16.msra.mxu0 %v1829
  %2794 = vmatprep.subr.bf16.mxu0 %v1836
  %2795 = vmatpush1.bf16.msra.mxu0 %v1835
  %2796 = vmatprep.subr.bf16.mxu0 %v1842
  %2797 = vmatpush1.bf16.msra.mxu0 %v1841
  %2798 = vmatprep.subr.bf16.mxu0 %v1848
  %2799 = vmatpush1.bf16.msra.mxu0 %v1847
  %2800 = vmatprep.subr.bf16.mxu0 %v1854
  %2801 = vmatpush1.bf16.msra.mxu0 %v1853
  %2802 = vmatprep.subr.bf16.mxu0 %v1860
  %2803 = vmatpush1.bf16.msra.mxu0 %v1859
  %2804 = vmatprep.subr.bf16.mxu0 %v1866
  %2805 = vmatpush1.bf16.msra.mxu0 %v1865
  %2806 = vmatprep.subr.bf16.mxu0 %v1872
  %2807 = vmatpush1.bf16.msra.mxu0 %v1871
  %2808 = vmatprep.subr.bf16.mxu0 %v1878
  %2809 = vmatpush1.bf16.msra.mxu0 %v1877
  %2810 = vmatprep.subr.bf16.mxu0 %v1884
  %2811 = vmatpush1.bf16.msra.mxu0 %v1883
  %2812 = vmatprep.mubr.bf16.mxu0 %v462
  %2813 = vmatmul.mubr.bf16.gmra.mrb[0].mxu0 %v461
  %v2814 = vpop.f32.mrb[0].mxu0
  %v2815 = vadd.f32 %v2774, %v2814
  %v2816 = vpop.f32.mrb[0].mxu0
  %v2817 = vadd.f32 %v2776, %v2816
  %v2818 = vpop.f32.mrb[0].mxu0
  %v2819 = vpop.f32.mrb[0].mxu0
  %2820 = vdwg.mxu0
  %2821 = vmatprep.subr.bf16.mxu0 %v1890
  %2822 = vmatpush1.bf16.msra.mxu0 %v1889
  %2823 = vmatprep.subr.bf16.mxu0 %v1896
  %2824 = vmatpush1.bf16.msra.mxu0 %v1895
  %2825 = vmatprep.subr.bf16.mxu0 %v1902
  %2826 = vmatpush1.bf16.msra.mxu0 %v1901
  %2827 = vmatprep.subr.bf16.mxu0 %v1908
  %2828 = vmatpush1.bf16.msra.mxu0 %v1907
  %2829 = vmatprep.subr.bf16.mxu0 %v1914
  %2830 = vmatpush1.bf16.msra.mxu0 %v1913
  %2831 = vmatprep.subr.bf16.mxu0 %v1920
  %2832 = vmatpush1.bf16.msra.mxu0 %v1919
  %2833 = vmatprep.subr.bf16.mxu0 %v1926
  %2834 = vmatpush1.bf16.msra.mxu0 %v1925
  %2835 = vmatprep.subr.bf16.mxu0 %v1932
  %2836 = vmatpush1.bf16.msra.mxu0 %v1931
  %2837 = vmatprep.subr.bf16.mxu0 %v1938
  %2838 = vmatpush1.bf16.msra.mxu0 %v1937
  %2839 = vmatprep.subr.bf16.mxu0 %v1944
  %2840 = vmatpush1.bf16.msra.mxu0 %v1943
  %2841 = vmatprep.subr.bf16.mxu0 %v1950
  %2842 = vmatpush1.bf16.msra.mxu0 %v1949
  %2843 = vmatprep.subr.bf16.mxu0 %v1956
  %2844 = vmatpush1.bf16.msra.mxu0 %v1955
  %2845 = vmatprep.subr.bf16.mxu0 %v1962
  %2846 = vmatpush1.bf16.msra.mxu0 %v1961
  %2847 = vmatprep.subr.bf16.mxu0 %v1968
  %2848 = vmatpush1.bf16.msra.mxu0 %v1967
  %2849 = vmatprep.subr.bf16.mxu0 %v2368
  %2850 = vmatpush1.bf16.msra.mxu0 %v2365
  %2851 = vmatprep.subr.bf16.mxu0 0
  %2852 = vmatpush1.bf16.msra.mxu0 0
  %2853 = vmatprep.mubr.bf16.mxu0 %v2349
  %2854 = vmatmul.mubr.bf16.gmra.mrb[0].mxu0 %v463
  %v2855 = vpop.f32.mrb[0].mxu0
  %v2856 = vadd.f32 %v2815, %v2855
  %v2857 = vpop.f32.mrb[0].mxu0
  %v2858 = vadd.f32 %v2817, %v2857
  %v2859 = vpop.f32.mrb[0].mxu0
  %v2860 = vpop.f32.mrb[0].mxu0
  %2861 = vdwg.mxu0
  %v2862 = vmax.f32 %v2528, 0.0
  %v2863 = vmax.f32 %v2530, 0.0
  %v2864 = vmax.f32 %v2692, 0.0
  %v2865 = vmax.f32 %v2694, 0.0
  %v2866 = vmax.f32 %v2856, 0.0
  %v2867 = vmax.f32 %v2858, 0.0
  %v2868 = vpack.c.bf16 %v2862, %v2862
  %v2869 = vpack.c.bf16 %v2863, %v2863
  %v2870 = vpack.c.bf16 %v2864, %v2864
  %v2871 = vpack.c.bf16 %v2865, %v2865
  %v2872 = vpack.c.bf16 %v2866, %v2866
  %v2873 = vpack.c.bf16 %v2867, %v2867
  %v2874 = vld [vmem:[%s3] sm:$0xff]
  %v2875 = vld [vmem:[%s3 + $0x8] sm:$0xf]
  %v2876 = vld [vmem:[%s3 + $0xc] sm:$0xff]
  %v2877 = vld [vmem:[%s3 + $0x14] sm:$0xf]
  %v2878 = vld [vmem:[%s3 + $0x18] sm:$0xff]
  %v2879 = vld [vmem:[%s3 + $0x20] sm:$0xf]
  %v2880 = vld [vmem:[%s3 + $0x24] sm:$0xff]
  %v2881 = vld [vmem:[%s3 + $0x2c] sm:$0xf]
  %v2882 = vld [vmem:[%s3 + $0x30] sm:$0xff]
  %v2883 = vld [vmem:[%s3 + $0x38] sm:$0xf]
  %v2884 = vld [vmem:[%s3 + $0x3c] sm:$0xff]
  %v2885 = vld [vmem:[%s3 + $0x44] sm:$0xf]
  %v2886 = vld [vmem:[%s3 + $0x48] sm:$0xff]
  %v2887 = vld [vmem:[%s3 + $0x50] sm:$0xf]
  %v2888 = vld [vmem:[%s3 + $0x54] sm:$0xff]
  %v2889 = vld [vmem:[%s3 + $0x5c] sm:$0xf]
  %v2890 = vld [vmem:[%s3 + $0x60] sm:$0xff]
  %v2891 = vld [vmem:[%s3 + $0x68] sm:$0xf]
  %v2892 = vld [vmem:[%s3 + $0x6c] sm:$0xff]
  %v2893 = vld [vmem:[%s3 + $0x74] sm:$0xf]
  %v2894 = vld [vmem:[%s3 + $0x78] sm:$0xff]
  %v2895 = vld [vmem:[%s3 + $0x80] sm:$0xf]
  %v2896 = vld [vmem:[%s3 + $0x84] sm:$0xff]
  %v2897 = vld [vmem:[%s3 + $0x8c] sm:$0xf]
  %v2898 = vld [vmem:[%s3 + $0x90] sm:$0xff]
  %v2899 = vld [vmem:[%s3 + $0x98] sm:$0xf]
  %v2900 = vld [vmem:[%s3 + $0x9c] sm:$0xff]
  %v2901 = vld [vmem:[%s3 + $0xa4] sm:$0xf]
  %v2902 = vld [vmem:[%s3 + $0xa8] sm:$0xff]
  %v2903 = vld [vmem:[%s3 + $0xb0] sm:$0xf]
  %v2904 = vld [vmem:[%s3 + $0xb4] sm:$0xff]
  %v2905 = vld [vmem:[%s3 + $0xbc] sm:$0xf]
  %v2906 = vld [vmem:[%s3 + $0xc0] sm:$0xff]
  %v2907 = vld [vmem:[%s3 + $0xc8] sm:$0xf]
  %v2908 = vld [vmem:[%s3 + $0xcc] sm:$0xff]
  %v2909 = vld [vmem:[%s3 + $0xd4] sm:$0xf]
  %v2910 = vld [vmem:[%s3 + $0xd8] sm:$0xff]
  %v2911 = vld [vmem:[%s3 + $0xe0] sm:$0xf]
  %v2912 = vld [vmem:[%s3 + $0xe4] sm:$0xff]
  %v2913 = vld [vmem:[%s3 + $0xec] sm:$0xf]
  %v2914 = vld [vmem:[%s3 + $0xf0] sm:$0xff]
  %v2915 = vld [vmem:[%s3 + $0xf8] sm:$0xf]
  %v2916 = vld [vmem:[%s3 + $0xfc] sm:$0xff]
  %v2917 = vld [vmem:[%s3 + $0x104] sm:$0xf]
  %v2918 = vld [vmem:[%s3 + $0x108] sm:$0xff]
  %v2919 = vld [vmem:[%s3 + $0x110] sm:$0xf]
  %v2920 = vld [vmem:[%s3 + $0x114] sm:$0xff]
  %v2921 = vld [vmem:[%s3 + $0x11c] sm:$0xf]
  %v2922 = vld [vmem:[%s3 + $0x120] sm:$0xff]
  %v2923 = vld [vmem:[%s3 + $0x128] sm:$0xf]
  %v2924 = vld [vmem:[%s3 + $0x12c] sm:$0xff]
  %v2925 = vld [vmem:[%s3 + $0x134] sm:$0xf]
  %v2926 = vld [vmem:[%s3 + $0x138] sm:$0xff]
  %v2927 = vld [vmem:[%s3 + $0x140] sm:$0xf]
  %v2928 = vld [vmem:[%s3 + $0x144] sm:$0xff]
  %v2929 = vld [vmem:[%s3 + $0x14c] sm:$0xf]
  %v2930 = vld [vmem:[%s3 + $0x150] sm:$0xff]
  %v2931 = vld [vmem:[%s3 + $0x158] sm:$0xf]
  %v2932 = vld [vmem:[%s3 + $0x15c] sm:$0xff]
  %v2933 = vld [vmem:[%s3 + $0x164] sm:$0xf]
  %v2934 = vld [vmem:[%s3 + $0x168] sm:$0xff]
  %v2935 = vld [vmem:[%s3 + $0x170] sm:$0xf]
  %v2936 = vld [vmem:[%s3 + $0x174] sm:$0xff]
  %v2937 = vld [vmem:[%s3 + $0x17c] sm:$0xf]
  %v2938 = vld [vmem:[%s3 + $0x180] sm:$0xff]
  %v2939 = vld [vmem:[%s3 + $0x188] sm:$0xf]
  %v2940 = vld [vmem:[%s3 + $0x18c] sm:$0xff]
  %v2941 = vld [vmem:[%s3 + $0x194] sm:$0xf]
  %v2942 = vld [vmem:[%s3 + $0x198] sm:$0xff]
  %v2943 = vld [vmem:[%s3 + $0x1a0] sm:$0xf]
  %v2944 = vld [vmem:[%s3 + $0x1a4] sm:$0xff]
  %v2945 = vld [vmem:[%s3 + $0x1ac] sm:$0xf]
  %v2946 = vld [vmem:[%s3 + $0x1b0] sm:$0xff]
  %v2947 = vld [vmem:[%s3 + $0x1b8] sm:$0xf]
  %v2948 = vld [vmem:[%s3 + $0x1bc] sm:$0xff]
  %v2949 = vld [vmem:[%s3 + $0x1c4] sm:$0xf]
  %v2950 = vld [vmem:[%s3 + $0x1c8] sm:$0xff]
  %v2951 = vld [vmem:[%s3 + $0x1d0] sm:$0xf]
  %v2952 = vld [vmem:[%s3 + $0x1d4] sm:$0xff]
  %v2953 = vld [vmem:[%s3 + $0x1dc] sm:$0xf]
  %v2954 = vld [vmem:[%s3 + $0x1e0] sm:$0xff]
  %v2955 = vld [vmem:[%s3 + $0x1e8] sm:$0xf]
  %v2956 = vld [vmem:[%s3 + $0x1ec] sm:$0xff]
  %v2957 = vld [vmem:[%s3 + $0x1f4] sm:$0xf]
  %v2958 = vld [vmem:[%s3 + $0x1f8] sm:$0xff]
  %v2959 = vld [vmem:[%s3 + $0x200] sm:$0xf]
  %v2960 = vld [vmem:[%s3 + $0x204] sm:$0xff]
  %v2961 = vld [vmem:[%s3 + $0x20c] sm:$0xf]
  %v2962 = vld [vmem:[%s3 + $0x210] sm:$0xff]
  %v2963 = vld [vmem:[%s3 + $0x218] sm:$0xf]
  %v2964 = vld [vmem:[%s3 + $0x21c] sm:$0xff]
  %v2965 = vld [vmem:[%s3 + $0x224] sm:$0xf]
  %v2966 = vld [vmem:[%s3 + $0x228] sm:$0xff]
  %v2967 = vld [vmem:[%s3 + $0x230] sm:$0xf]
  %v2968 = vld [vmem:[%s3 + $0x234] sm:$0xff]
  %v2969 = vld [vmem:[%s3 + $0x23c] sm:$0xf]
  %v2970 = vld [vmem:[%s3 + $0x240] sm:$0xff]
  %v2971 = vld [vmem:[%s3 + $0x248] sm:$0xf]
  %v2972 = vld [vmem:[%s3 + $0x24c] sm:$0xff]
  %v2973 = vld [vmem:[%s3 + $0x254] sm:$0xf]
  %v2974 = vld [vmem:[%s3 + $0x258] sm:$0xff]
  %v2975 = vld [vmem:[%s3 + $0x260] sm:$0xf]
  %v2976 = vld [vmem:[%s3 + $0x264] sm:$0xff]
  %v2977 = vld [vmem:[%s3 + $0x26c] sm:$0xf]
  %v2978 = vld [vmem:[%s3 + $0x270] sm:$0xff]
  %v2979 = vld [vmem:[%s3 + $0x278] sm:$0xf]
  %v2980 = vld [vmem:[%s3 + $0x27c] sm:$0xff]
  %v2981 = vld [vmem:[%s3 + $0x284] sm:$0xf]
  %v2982 = vld [vmem:[%s3 + $0x288] sm:$0xff]
  %v2983 = vld [vmem:[%s3 + $0x290] sm:$0xf]
  %v2984 = vld [vmem:[%s3 + $0x294] sm:$0xff]
  %v2985 = vld [vmem:[%s3 + $0x29c] sm:$0xf]
  %v2986 = vld [vmem:[%s3 + $0x2a0] sm:$0xff]
  %v2987 = vld [vmem:[%s3 + $0x2a8] sm:$0xf]
  %v2988 = vld [vmem:[%s3 + $0x2ac] sm:$0xff]
  %v2989 = vld [vmem:[%s3 + $0x2b4] sm:$0xf]
  %v2990 = vld [vmem:[%s3 + $0x2b8] sm:$0xff]
  %v2991 = vld [vmem:[%s3 + $0x2c0] sm:$0xf]
  %v2992 = vld [vmem:[%s3 + $0x2c4] sm:$0xff]
  %v2993 = vld [vmem:[%s3 + $0x2cc] sm:$0xf]
  %v2994 = vld [vmem:[%s3 + $0x2d0] sm:$0xff]
  %v2995 = vld [vmem:[%s3 + $0x2d8] sm:$0xf]
  %v2996 = vld [vmem:[%s3 + $0x2dc] sm:$0xff]
  %v2997 = vld [vmem:[%s3 + $0x2e4] sm:$0xf]
  %v2998 = vld [vmem:[%s3 + $0x2e8] sm:$0xff]
  %v2999 = vld [vmem:[%s3 + $0x2f0] sm:$0xf]
  %v3000 = vld [vmem:[%s3 + $0x2f4] sm:$0xff]
  %v3001 = vld [vmem:[%s3 + $0x2fc] sm:$0xf]
  %v3002 = vld [vmem:[%s3 + $0x300] sm:$0xff]
  %v3003 = vld [vmem:[%s3 + $0x308] sm:$0xf]
  %v3004 = vld [vmem:[%s3 + $0x30c] sm:$0xff]
  %v3005 = vld [vmem:[%s3 + $0x314] sm:$0xf]
  %v3006 = vld [vmem:[%s3 + $0x318] sm:$0xff]
  %v3007 = vld [vmem:[%s3 + $0x320] sm:$0xf]
  %v3008 = vld [vmem:[%s3 + $0x324] sm:$0xff]
  %v3009 = vld [vmem:[%s3 + $0x32c] sm:$0xf]
  %v3010 = vld [vmem:[%s3 + $0x330] sm:$0xff]
  %v3011 = vld [vmem:[%s3 + $0x338] sm:$0xf]
  %v3012 = vld [vmem:[%s3 + $0x33c] sm:$0xff]
  %v3013 = vld [vmem:[%s3 + $0x344] sm:$0xf]
  %v3014 = vld [vmem:[%s3 + $0x348] sm:$0xff]
  %v3015 = vld [vmem:[%s3 + $0x350] sm:$0xf]
  %v3016 = vld [vmem:[%s3 + $0x354] sm:$0xff]
  %v3017 = vld [vmem:[%s3 + $0x35c] sm:$0xf]
  %v3018 = vld [vmem:[%s3 + $0x360] sm:$0xff]
  %v3019 = vld [vmem:[%s3 + $0x368] sm:$0xf]
  %v3020 = vld [vmem:[%s3 + $0x36c] sm:$0xff]
  %v3021 = vld [vmem:[%s3 + $0x374] sm:$0xf]
  %v3022 = vld [vmem:[%s3 + $0x378] sm:$0xff]
  %v3023 = vld [vmem:[%s3 + $0x380] sm:$0xf]
  %v3024 = vld [vmem:[%s3 + $0x384] sm:$0xff]
  %v3025 = vld [vmem:[%s3 + $0x38c] sm:$0xf]
  %v3026 = vld [vmem:[%s3 + $0x390] sm:$0xff]
  %v3027 = vld [vmem:[%s3 + $0x398] sm:$0xf]
  %v3028 = vld [vmem:[%s3 + $0x39c] sm:$0xff]
  %v3029 = vld [vmem:[%s3 + $0x3a4] sm:$0xf]
  %v3030 = vld [vmem:[%s3 + $0x3a8] sm:$0xff]
  %v3031 = vld [vmem:[%s3 + $0x3b0] sm:$0xf]
  %v3032 = vld [vmem:[%s3 + $0x3b4] sm:$0xff]
  %v3033 = vld [vmem:[%s3 + $0x3bc] sm:$0xf]
  %v3034 = vld [vmem:[%s3 + $0x3c0] sm:$0xff]
  %v3035 = vld [vmem:[%s3 + $0x3c8] sm:$0xf]
  %v3036 = vld [vmem:[%s3 + $0x3cc] sm:$0xff]
  %v3037 = vld [vmem:[%s3 + $0x3d4] sm:$0xf]
  %v3038 = vld [vmem:[%s3 + $0x3d8] sm:$0xff]
  %v3039 = vld [vmem:[%s3 + $0x3e0] sm:$0xf]
  %v3040 = vld [vmem:[%s3 + $0x3e4] sm:$0xff]
  %v3041 = vld [vmem:[%s3 + $0x3ec] sm:$0xf]
  %v3042 = vld [vmem:[%s3 + $0x3f0] sm:$0xff]
  %v3043 = vld [vmem:[%s3 + $0x3f8] sm:$0xf]
  %v3044 = vld [vmem:[%s3 + $0x3fc] sm:$0xff]
  %v3045 = vld [vmem:[%s3 + $0x404] sm:$0xf]
  %v3046 = vld [vmem:[%s3 + $0x408] sm:$0xff]
  %v3047 = vld [vmem:[%s3 + $0x410] sm:$0xf]
  %v3048 = vld [vmem:[%s3 + $0x414] sm:$0x33]
  %v3049 = vld [vmem:[%s3 + $0x41c] sm:$0x3]
  %v3050 = vld [vmem:[%s4] sm:$0x7]
  %v3052 = vlaneseq
  %v3053 = vshrl.u32 %v3052, 7
  %v3054 = vsub.s32 0, %v3053
  %v3055 = vrot.slane %v3050, %v3054
  %v3056 = vlaneseq
  %v3057 = vshrl.u32 %v3056, 7
  %v3058 = vsub.s32 1, %v3057
  %v3059 = vrot.slane %v3050, %v3058
  %v3060 = vlaneseq
  %v3061 = vshrl.u32 %v3060, 7
  %v3062 = vsub.s32 2, %v3061
  %v3063 = vrot.slane %v3050, %v3062
  %v3243 = vunpack.c.l.b16 %v2874
  %v3244 = vunpack.c.h.b16 %v2874
  %v3245 = vunpack.c.l.b16 %v2875
  %v3246 = vunpack.c.l.b16 %v2876
  %v3247 = vunpack.c.h.b16 %v2876
  %v3248 = vunpack.c.l.b16 %v2877
  %v3249 = vunpack.c.l.b16 %v2878
  %v3250 = vunpack.c.h.b16 %v2878
  %v3251 = vunpack.c.l.b16 %v2879
  %v3252 = vunpack.c.l.b16 %v2880
  %v3253 = vunpack.c.h.b16 %v2880
  %v3254 = vunpack.c.l.b16 %v2881
  %v3255 = vunpack.c.l.b16 %v2882
  %v3256 = vunpack.c.h.b16 %v2882
  %v3257 = vunpack.c.l.b16 %v2883
  %v3258 = vunpack.c.l.b16 %v2884
  %v3259 = vunpack.c.h.b16 %v2884
  %v3260 = vunpack.c.l.b16 %v2885
  %v3261 = vunpack.c.l.b16 %v2886
  %v3262 = vunpack.c.h.b16 %v2886
  %v3263 = vunpack.c.l.b16 %v2887
  %v3264 = vunpack.c.l.b16 %v2888
  %v3265 = vunpack.c.h.b16 %v2888
  %v3266 = vunpack.c.l.b16 %v2889
  %v3267 = vunpack.c.l.b16 %v2890
  %v3268 = vunpack.c.h.b16 %v2890
  %v3269 = vunpack.c.l.b16 %v2891
  %v3270 = vunpack.c.l.b16 %v2892
  %v3271 = vunpack.c.h.b16 %v2892
  %v3272 = vunpack.c.l.b16 %v2893
  %v3273 = vunpack.c.l.b16 %v2894
  %v3274 = vunpack.c.h.b16 %v2894
  %v3275 = vunpack.c.l.b16 %v2895
  %v3276 = vunpack.c.l.b16 %v2896
  %v3277 = vunpack.c.h.b16 %v2896
  %v3278 = vunpack.c.l.b16 %v2897
  %v3279 = vunpack.c.l.b16 %v2898
  %v3280 = vunpack.c.h.b16 %v2898
  %v3281 = vunpack.c.l.b16 %v2899
  %v3282 = vunpack.c.l.b16 %v2900
  %v3283 = vunpack.c.h.b16 %v2900
  %v3284 = vunpack.c.l.b16 %v2901
  %v3285 = vunpack.c.l.b16 %v2902
  %v3286 = vunpack.c.h.b16 %v2902
  %v3287 = vunpack.c.l.b16 %v2903
  %v3288 = vunpack.c.l.b16 %v2904
  %v3289 = vunpack.c.h.b16 %v2904
  %v3290 = vunpack.c.l.b16 %v2905
  %v3291 = vunpack.c.l.b16 %v2906
  %v3292 = vunpack.c.h.b16 %v2906
  %v3293 = vunpack.c.l.b16 %v2907
  %v3294 = vunpack.c.l.b16 %v2908
  %v3295 = vunpack.c.h.b16 %v2908
  %v3296 = vunpack.c.l.b16 %v2909
  %v3297 = vunpack.c.l.b16 %v2910
  %v3298 = vunpack.c.h.b16 %v2910
  %v3299 = vunpack.c.l.b16 %v2911
  %v3300 = vunpack.c.l.b16 %v2912
  %v3301 = vunpack.c.h.b16 %v2912
  %v3302 = vunpack.c.l.b16 %v2913
  %v3303 = vunpack.c.l.b16 %v2914
  %v3304 = vunpack.c.h.b16 %v2914
  %v3305 = vunpack.c.l.b16 %v2915
  %v3306 = vunpack.c.l.b16 %v2916
  %v3307 = vunpack.c.h.b16 %v2916
  %v3308 = vunpack.c.l.b16 %v2917
  %v3309 = vunpack.c.l.b16 %v2918
  %v3310 = vunpack.c.h.b16 %v2918
  %v3311 = vunpack.c.l.b16 %v2919
  %v3312 = vunpack.c.l.b16 %v2920
  %v3313 = vunpack.c.h.b16 %v2920
  %v3314 = vunpack.c.l.b16 %v2921
  %v3315 = vunpack.c.l.b16 %v2922
  %v3316 = vunpack.c.h.b16 %v2922
  %v3317 = vunpack.c.l.b16 %v2923
  %v3318 = vunpack.c.l.b16 %v2924
  %v3319 = vunpack.c.h.b16 %v2924
  %v3320 = vunpack.c.l.b16 %v2925
  %v3321 = vunpack.c.l.b16 %v2926
  %v3322 = vunpack.c.h.b16 %v2926
  %v3323 = vunpack.c.l.b16 %v2927
  %v3324 = vunpack.c.l.b16 %v2928
  %v3325 = vunpack.c.h.b16 %v2928
  %v3326 = vunpack.c.l.b16 %v2929
  %v3327 = vunpack.c.l.b16 %v2930
  %v3328 = vunpack.c.h.b16 %v2930
  %v3329 = vunpack.c.l.b16 %v2931
  %v3330 = vunpack.c.l.b16 %v2932
  %v3331 = vunpack.c.h.b16 %v2932
  %v3332 = vunpack.c.l.b16 %v2933
  %v3333 = vunpack.c.l.b16 %v2934
  %v3334 = vunpack.c.h.b16 %v2934
  %v3335 = vunpack.c.l.b16 %v2935
  %v3336 = vunpack.c.l.b16 %v2936
  %v3337 = vunpack.c.h.b16 %v2936
  %v3338 = vunpack.c.l.b16 %v2937
  %v3339 = vunpack.c.l.b16 %v2938
  %v3340 = vunpack.c.h.b16 %v2938
  %v3341 = vunpack.c.l.b16 %v2939
  %v3342 = vunpack.c.l.b16 %v2940
  %v3343 = vunpack.c.h.b16 %v2940
  %v3344 = vunpack.c.l.b16 %v2941
  %v3345 = vunpack.c.l.b16 %v2942
  %v3346 = vunpack.c.h.b16 %v2942
  %v3347 = vunpack.c.l.b16 %v2943
  %v3348 = vunpack.c.l.b16 %v2944
  %v3349 = vunpack.c.h.b16 %v2944
  %v3350 = vunpack.c.l.b16 %v2945
  %v3351 = vunpack.c.l.b16 %v2946
  %v3352 = vunpack.c.h.b16 %v2946
  %v3353 = vunpack.c.l.b16 %v2947
  %v3354 = vunpack.c.l.b16 %v2948
  %v3355 = vunpack.c.h.b16 %v2948
  %v3356 = vunpack.c.l.b16 %v2949
  %v3357 = vunpack.c.l.b16 %v2950
  %v3358 = vunpack.c.h.b16 %v2950
  %v3359 = vunpack.c.l.b16 %v2951
  %v3360 = vunpack.c.l.b16 %v2952
  %v3361 = vunpack.c.h.b16 %v2952
  %v3362 = vunpack.c.l.b16 %v2953
  %v3363 = vunpack.c.l.b16 %v2954
  %v3364 = vunpack.c.h.b16 %v2954
  %v3365 = vunpack.c.l.b16 %v2955
  %v3366 = vunpack.c.l.b16 %v2956
  %v3367 = vunpack.c.h.b16 %v2956
  %v3368 = vunpack.c.l.b16 %v2957
  %v3369 = vunpack.c.l.b16 %v2958
  %v3370 = vunpack.c.h.b16 %v2958
  %v3371 = vunpack.c.l.b16 %v2959
  %v3372 = vunpack.c.l.b16 %v2960
  %v3373 = vunpack.c.h.b16 %v2960
  %v3374 = vunpack.c.l.b16 %v2961
  %v3375 = vunpack.c.l.b16 %v2962
  %v3376 = vunpack.c.h.b16 %v2962
  %v3377 = vunpack.c.l.b16 %v2963
  %v3378 = vunpack.c.l.b16 %v2964
  %v3379 = vunpack.c.h.b16 %v2964
  %v3380 = vunpack.c.l.b16 %v2965
  %v3381 = vunpack.c.l.b16 %v2966
  %v3382 = vunpack.c.h.b16 %v2966
  %v3383 = vunpack.c.l.b16 %v2967
  %v3384 = vunpack.c.l.b16 %v2968
  %v3385 = vunpack.c.h.b16 %v2968
  %v3386 = vunpack.c.l.b16 %v2969
  %v3387 = vunpack.c.l.b16 %v2970
  %v3388 = vunpack.c.h.b16 %v2970
  %v3389 = vunpack.c.l.b16 %v2971
  %v3390 = vunpack.c.l.b16 %v2972
  %v3391 = vunpack.c.h.b16 %v2972
  %v3392 = vunpack.c.l.b16 %v2973
  %v3393 = vunpack.c.l.b16 %v2974
  %v3394 = vunpack.c.h.b16 %v2974
  %v3395 = vunpack.c.l.b16 %v2975
  %v3396 = vunpack.c.l.b16 %v2976
  %v3397 = vunpack.c.h.b16 %v2976
  %v3398 = vunpack.c.l.b16 %v2977
  %v3399 = vunpack.c.l.b16 %v2978
  %v3400 = vunpack.c.h.b16 %v2978
  %v3401 = vunpack.c.l.b16 %v2979
  %v3402 = vunpack.c.l.b16 %v2980
  %v3403 = vunpack.c.h.b16 %v2980
  %v3404 = vunpack.c.l.b16 %v2981
  %v3405 = vunpack.c.l.b16 %v2982
  %v3406 = vunpack.c.h.b16 %v2982
  %v3407 = vunpack.c.l.b16 %v2983
  %v3408 = vunpack.c.l.b16 %v2984
  %v3409 = vunpack.c.h.b16 %v2984
  %v3410 = vunpack.c.l.b16 %v2985
  %v3411 = vunpack.c.l.b16 %v2986
  %v3412 = vunpack.c.h.b16 %v2986
  %v3413 = vunpack.c.l.b16 %v2987
  %v3414 = vunpack.c.l.b16 %v2988
  %v3415 = vunpack.c.h.b16 %v2988
  %v3416 = vunpack.c.l.b16 %v2989
  %v3417 = vunpack.c.l.b16 %v2990
  %v3418 = vunpack.c.h.b16 %v2990
  %v3419 = vunpack.c.l.b16 %v2991
  %v3420 = vunpack.c.l.b16 %v2992
  %v3421 = vunpack.c.h.b16 %v2992
  %v3422 = vunpack.c.l.b16 %v2993
  %v3423 = vunpack.c.l.b16 %v2994
  %v3424 = vunpack.c.h.b16 %v2994
  %v3425 = vunpack.c.l.b16 %v2995
  %v3426 = vunpack.c.l.b16 %v2996
  %v3427 = vunpack.c.h.b16 %v2996
  %v3428 = vunpack.c.l.b16 %v2997
  %v3429 = vunpack.c.l.b16 %v2998
  %v3430 = vunpack.c.h.b16 %v2998
  %v3431 = vunpack.c.l.b16 %v2999
  %v3432 = vunpack.c.l.b16 %v3000
  %v3433 = vunpack.c.h.b16 %v3000
  %v3434 = vunpack.c.l.b16 %v3001
  %v3435 = vunpack.c.l.b16 %v3002
  %v3436 = vunpack.c.h.b16 %v3002
  %v3437 = vunpack.c.l.b16 %v3003
  %v3438 = vunpack.c.l.b16 %v3004
  %v3439 = vunpack.c.h.b16 %v3004
  %v3440 = vunpack.c.l.b16 %v3005
  %v3441 = vunpack.c.l.b16 %v3006
  %v3442 = vunpack.c.h.b16 %v3006
  %v3443 = vunpack.c.l.b16 %v3007
  %v3444 = vunpack.c.l.b16 %v3008
  %v3445 = vunpack.c.h.b16 %v3008
  %v3446 = vunpack.c.l.b16 %v3009
  %v3447 = vunpack.c.l.b16 %v3010
  %v3448 = vunpack.c.h.b16 %v3010
  %v3449 = vunpack.c.l.b16 %v3011
  %v3450 = vunpack.c.l.b16 %v3012
  %v3451 = vunpack.c.h.b16 %v3012
  %v3452 = vunpack.c.l.b16 %v3013
  %v3453 = vunpack.c.l.b16 %v3014
  %v3454 = vunpack.c.h.b16 %v3014
  %v3455 = vunpack.c.l.b16 %v3015
  %v3456 = vunpack.c.l.b16 %v3016
  %v3457 = vunpack.c.h.b16 %v3016
  %v3458 = vunpack.c.l.b16 %v3017
  %v3459 = vunpack.c.l.b16 %v3018
  %v3460 = vunpack.c.h.b16 %v3018
  %v3461 = vunpack.c.l.b16 %v3019
  %v3462 = vunpack.c.l.b16 %v3020
  %v3463 = vunpack.c.h.b16 %v3020
  %v3464 = vunpack.c.l.b16 %v3021
  %v3465 = vunpack.c.l.b16 %v3022
  %v3466 = vunpack.c.h.b16 %v3022
  %v3467 = vunpack.c.l.b16 %v3023
  %v3468 = vunpack.c.l.b16 %v3024
  %v3469 = vunpack.c.h.b16 %v3024
  %v3470 = vunpack.c.l.b16 %v3025
  %v3471 = vunpack.c.l.b16 %v3026
  %v3472 = vunpack.c.h.b16 %v3026
  %v3473 = vunpack.c.l.b16 %v3027
  %v3474 = vunpack.c.l.b16 %v3028
  %v3475 = vunpack.c.h.b16 %v3028
  %v3476 = vunpack.c.l.b16 %v3029
  %v3477 = vunpack.c.l.b16 %v3030
  %v3478 = vunpack.c.h.b16 %v3030
  %v3479 = vunpack.c.l.b16 %v3031
  %v3480 = vunpack.c.l.b16 %v3032
  %v3481 = vunpack.c.h.b16 %v3032
  %v3482 = vunpack.c.l.b16 %v3033
  %v3483 = vunpack.c.l.b16 %v3034
  %v3484 = vunpack.c.h.b16 %v3034
  %v3485 = vunpack.c.l.b16 %v3035
  %v3486 = vunpack.c.l.b16 %v3036
  %v3487 = vunpack.c.h.b16 %v3036
  %v3488 = vunpack.c.l.b16 %v3037
  %v3489 = vunpack.c.l.b16 %v3038
  %v3490 = vunpack.c.h.b16 %v3038
  %v3491 = vunpack.c.l.b16 %v3039
  %v3492 = vunpack.c.l.b16 %v3040
  %v3493 = vunpack.c.h.b16 %v3040
  %v3494 = vunpack.c.l.b16 %v3041
  %v3495 = vunpack.c.l.b16 %v3042
  %v3496 = vunpack.c.h.b16 %v3042
  %v3497 = vunpack.c.l.b16 %v3043
  %v3498 = vunpack.c.l.b16 %v3044
  %v3499 = vunpack.c.h.b16 %v3044
  %v3500 = vunpack.c.l.b16 %v3045
  %v3501 = vunpack.c.l.b16 %v3046
  %v3502 = vunpack.c.h.b16 %v3046
  %v3503 = vunpack.c.l.b16 %v3047
  %v3504 = vunpack.c.l.b16 %v3048
  %v3505 = vunpack.c.h.b16 %v3048
  %v3506 = vunpack.c.l.b16 %v3049
  %v3507 = vpack.c.b16 %v3246, %v3243
  %v3508 = vpack.c.b16 %v3247, %v3244
  %v3509 = vpack.c.b16 %v3248, %v3245
  %v3510 = vpack.c.b16 %v3252, %v3249
  %v3511 = vpack.c.b16 %v3253, %v3250
  %v3512 = vpack.c.b16 %v3254, %v3251
  %v3513 = vpack.c.b16 %v3258, %v3255
  %v3514 = vpack.c.b16 %v3259, %v3256
  %v3515 = vpack.c.b16 %v3260, %v3257
  %v3516 = vpack.c.b16 %v3264, %v3261
  %v3517 = vpack.c.b16 %v3265, %v3262
  %v3518 = vpack.c.b16 %v3266, %v3263
  %v3519 = vpack.c.b16 %v3270, %v3267
  %v3520 = vpack.c.b16 %v3271, %v3268
  %v3521 = vpack.c.b16 %v3272, %v3269
  %v3522 = vpack.c.b16 %v3276, %v3273
  %v3523 = vpack.c.b16 %v3277, %v3274
  %v3524 = vpack.c.b16 %v3278, %v3275
  %v3525 = vpack.c.b16 %v3282, %v3279
  %v3526 = vpack.c.b16 %v3283, %v3280
  %v3527 = vpack.c.b16 %v3284, %v3281
  %v3528 = vpack.c.b16 %v3288, %v3285
  %v3529 = vpack.c.b16 %v3289, %v3286
  %v3530 = vpack.c.b16 %v3290, %v3287
  %v3531 = vpack.c.b16 %v3294, %v3291
  %v3532 = vpack.c.b16 %v3295, %v3292
  %v3533 = vpack.c.b16 %v3296, %v3293
  %v3534 = vpack.c.b16 %v3300, %v3297
  %v3535 = vpack.c.b16 %v3301, %v3298
  %v3536 = vpack.c.b16 %v3302, %v3299
  %v3537 = vpack.c.b16 %v3306, %v3303
  %v3538 = vpack.c.b16 %v3307, %v3304
  %v3539 = vpack.c.b16 %v3308, %v3305
  %v3540 = vpack.c.b16 %v3312, %v3309
  %v3541 = vpack.c.b16 %v3313, %v3310
  %v3542 = vpack.c.b16 %v3314, %v3311
  %v3543 = vpack.c.b16 %v3318, %v3315
  %v3544 = vpack.c.b16 %v3319, %v3316
  %v3545 = vpack.c.b16 %v3320, %v3317
  %v3546 = vpack.c.b16 %v3324, %v3321
  %v3547 = vpack.c.b16 %v3325, %v3322
  %v3548 = vpack.c.b16 %v3326, %v3323
  %v3549 = vpack.c.b16 %v3330, %v3327
  %v3550 = vpack.c.b16 %v3331, %v3328
  %v3551 = vpack.c.b16 %v3332, %v3329
  %v3552 = vpack.c.b16 %v3336, %v3333
  %v3553 = vpack.c.b16 %v3337, %v3334
  %v3554 = vpack.c.b16 %v3338, %v3335
  %v3555 = vpack.c.b16 %v3342, %v3339
  %v3556 = vpack.c.b16 %v3343, %v3340
  %v3557 = vpack.c.b16 %v3344, %v3341
  %v3558 = vpack.c.b16 %v3348, %v3345
  %v3559 = vpack.c.b16 %v3349, %v3346
  %v3560 = vpack.c.b16 %v3350, %v3347
  %v3561 = vpack.c.b16 %v3354, %v3351
  %v3562 = vpack.c.b16 %v3355, %v3352
  %v3563 = vpack.c.b16 %v3356, %v3353
  %v3564 = vpack.c.b16 %v3360, %v3357
  %v3565 = vpack.c.b16 %v3361, %v3358
  %v3566 = vpack.c.b16 %v3362, %v3359
  %v3567 = vpack.c.b16 %v3366, %v3363
  %v3568 = vpack.c.b16 %v3367, %v3364
  %v3569 = vpack.c.b16 %v3368, %v3365
  %v3570 = vpack.c.b16 %v3372, %v3369
  %v3571 = vpack.c.b16 %v3373, %v3370
  %v3572 = vpack.c.b16 %v3374, %v3371
  %v3573 = vpack.c.b16 %v3378, %v3375
  %v3574 = vpack.c.b16 %v3379, %v3376
  %v3575 = vpack.c.b16 %v3380, %v3377
  %v3576 = vpack.c.b16 %v3384, %v3381
  %v3577 = vpack.c.b16 %v3385, %v3382
  %v3578 = vpack.c.b16 %v3386, %v3383
  %v3579 = vpack.c.b16 %v3390, %v3387
  %v3580 = vpack.c.b16 %v3391, %v3388
  %v3581 = vpack.c.b16 %v3392, %v3389
  %v3582 = vpack.c.b16 %v3396, %v3393
  %v3583 = vpack.c.b16 %v3397, %v3394
  %v3584 = vpack.c.b16 %v3398, %v3395
  %v3585 = vpack.c.b16 %v3402, %v3399
  %v3586 = vpack.c.b16 %v3403, %v3400
  %v3587 = vpack.c.b16 %v3404, %v3401
  %v3588 = vpack.c.b16 %v3408, %v3405
  %v3589 = vpack.c.b16 %v3409, %v3406
  %v3590 = vpack.c.b16 %v3410, %v3407
  %v3591 = vpack.c.b16 %v3414, %v3411
  %v3592 = vpack.c.b16 %v3415, %v3412
  %v3593 = vpack.c.b16 %v3416, %v3413
  %v3594 = vpack.c.b16 %v3420, %v3417
  %v3595 = vpack.c.b16 %v3421, %v3418
  %v3596 = vpack.c.b16 %v3422, %v3419
  %v3597 = vpack.c.b16 %v3426, %v3423
  %v3598 = vpack.c.b16 %v3427, %v3424
  %v3599 = vpack.c.b16 %v3428, %v3425
  %v3600 = vpack.c.b16 %v3432, %v3429
  %v3601 = vpack.c.b16 %v3433, %v3430
  %v3602 = vpack.c.b16 %v3434, %v3431
  %v3603 = vpack.c.b16 %v3438, %v3435
  %v3604 = vpack.c.b16 %v3439, %v3436
  %v3605 = vpack.c.b16 %v3440, %v3437
  %v3606 = vpack.c.b16 %v3444, %v3441
  %v3607 = vpack.c.b16 %v3445, %v3442
  %v3608 = vpack.c.b16 %v3446, %v3443
  %v3609 = vpack.c.b16 %v3450, %v3447
  %v3610 = vpack.c.b16 %v3451, %v3448
  %v3611 = vpack.c.b16 %v3452, %v3449
  %v3612 = vpack.c.b16 %v3456, %v3453
  %v3613 = vpack.c.b16 %v3457, %v3454
  %v3614 = vpack.c.b16 %v3458, %v3455
  %v3615 = vpack.c.b16 %v3462, %v3459
  %v3616 = vpack.c.b16 %v3463, %v3460
  %v3617 = vpack.c.b16 %v3464, %v3461
  %v3618 = vpack.c.b16 %v3468, %v3465
  %v3619 = vpack.c.b16 %v3469, %v3466
  %v3620 = vpack.c.b16 %v3470, %v3467
  %v3621 = vpack.c.b16 %v3474, %v3471
  %v3622 = vpack.c.b16 %v3475, %v3472
  %v3623 = vpack.c.b16 %v3476, %v3473
  %v3624 = vpack.c.b16 %v3480, %v3477
  %v3625 = vpack.c.b16 %v3481, %v3478
  %v3626 = vpack.c.b16 %v3482, %v3479
  %v3627 = vpack.c.b16 %v3486, %v3483
  %v3628 = vpack.c.b16 %v3487, %v3484
  %v3629 = vpack.c.b16 %v3488, %v3485
  %v3630 = vpack.c.b16 %v3492, %v3489
  %v3631 = vpack.c.b16 %v3493, %v3490
  %v3632 = vpack.c.b16 %v3494, %v3491
  %v3633 = vpack.c.b16 %v3498, %v3495
  %v3634 = vpack.c.b16 %v3499, %v3496
  %v3635 = vpack.c.b16 %v3500, %v3497
  %v3636 = vpack.c.b16 %v3504, %v3501
  %v3637 = vpack.c.b16 %v3505, %v3502
  %v3638 = vpack.c.b16 %v3506, %v3503
  %vm3768 = vcmask 490496
  %v3770 = vsel %vm3768, %v2873, 0
  %vm3772 = vcmask 1045504
  %v3774 = vsel %vm3772, %v3636, 0
  %v3777 = vsel %vm3772, %v3637, 0
  %v3780 = vsel %vm3772, %v3638, 0
  %3782 = vmatprep.subr.bf16.mxu0 %v3508
  %3783 = vmatpush1.bf16.msra.mxu0 %v3507
  %3784 = vmatprep.subr.bf16.mxu0 %v3511
  %3785 = vmatpush1.bf16.msra.mxu0 %v3510
  %3786 = vmatprep.subr.bf16.mxu0 %v3514
  %3787 = vmatpush1.bf16.msra.mxu0 %v3513
  %3788 = vmatprep.subr.bf16.mxu0 %v3517
  %3789 = vmatpush1.bf16.msra.mxu0 %v3516
  %3790 = vmatprep.subr.bf16.mxu0 %v3520
  %3791 = vmatpush1.bf16.msra.mxu0 %v3519
  %3792 = vmatprep.subr.bf16.mxu0 %v3523
  %3793 = vmatpush1.bf16.msra.mxu0 %v3522
  %3794 = vmatprep.subr.bf16.mxu0 %v3526
  %3795 = vmatpush1.bf16.msra.mxu0 %v3525
  %3796 = vmatprep.subr.bf16.mxu0 %v3529
  %3797 = vmatpush1.bf16.msra.mxu0 %v3528
  %3798 = vmatprep.subr.bf16.mxu0 %v3532
  %3799 = vmatpush1.bf16.msra.mxu0 %v3531
  %3800 = vmatprep.subr.bf16.mxu0 %v3535
  %3801 = vmatpush1.bf16.msra.mxu0 %v3534
  %3802 = vmatprep.subr.bf16.mxu0 %v3538
  %3803 = vmatpush1.bf16.msra.mxu0 %v3537
  %3804 = vmatprep.subr.bf16.mxu0 %v3541
  %3805 = vmatpush1.bf16.msra.mxu0 %v3540
  %3806 = vmatprep.subr.bf16.mxu0 %v3544
  %3807 = vmatpush1.bf16.msra.mxu0 %v3543
  %3808 = vmatprep.subr.bf16.mxu0 %v3547
  %3809 = vmatpush1.bf16.msra.mxu0 %v3546
  %3810 = vmatprep.subr.bf16.mxu0 %v3550
  %3811 = vmatpush1.bf16.msra.mxu0 %v3549
  %3812 = vmatprep.subr.bf16.mxu0 %v3553
  %3813 = vmatpush1.bf16.msra.mxu0 %v3552
  %3814 = vmatprep.mubr.bf16.mxu0 %v2869
  %3815 = vmatmul.mubr.bf16.gmra.mrb[0].mxu0 %v2868
  %v3816 = vpop.f32.mrb[0].mxu0
  %v3817 = vadd.f32 %v3055, %v3816
  %v3818 = vpop.f32.mrb[0].mxu0
  %v3819 = vadd.f32 %v3059, %v3818
  %v3820 = vpop.f32.mrb[0].mxu0
  %v3821 = vpop.f32.mrb[0].mxu0
  %3822 = vdwg.mxu0
  %3823 = vmatprep.subr.bf16.mxu0 %v3556
  %3824 = vmatpush1.bf16.msra.mxu0 %v3555
  %3825 = vmatprep.subr.bf16.mxu0 %v3559
  %3826 = vmatpush1.bf16.msra.mxu0 %v3558
  %3827 = vmatprep.subr.bf16.mxu0 %v3562
  %3828 = vmatpush1.bf16.msra.mxu0 %v3561
  %3829 = vmatprep.subr.bf16.mxu0 %v3565
  %3830 = vmatpush1.bf16.msra.mxu0 %v3564
  %3831 = vmatprep.subr.bf16.mxu0 %v3568
  %3832 = vmatpush1.bf16.msra.mxu0 %v3567
  %3833 = vmatprep.subr.bf16.mxu0 %v3571
  %3834 = vmatpush1.bf16.msra.mxu0 %v3570
  %3835 = vmatprep.subr.bf16.mxu0 %v3574
  %3836 = vmatpush1.bf16.msra.mxu0 %v3573
  %3837 = vmatprep.subr.bf16.mxu0 %v3577
  %3838 = vmatpush1.bf16.msra.mxu0 %v3576
  %3839 = vmatprep.subr.bf16.mxu0 %v3580
  %3840 = vmatpush1.bf16.msra.mxu0 %v3579
  %3841 = vmatprep.subr.bf16.mxu0 %v3583
  %3842 = vmatpush1.bf16.msra.mxu0 %v3582
  %3843 = vmatprep.subr.bf16.mxu0 %v3586
  %3844 = vmatpush1.bf16.msra.mxu0 %v3585
  %3845 = vmatprep.subr.bf16.mxu0 %v3589
  %3846 = vmatpush1.bf16.msra.mxu0 %v3588
  %3847 = vmatprep.subr.bf16.mxu0 %v3592
  %3848 = vmatpush1.bf16.msra.mxu0 %v3591
  %3849 = vmatprep.subr.bf16.mxu0 %v3595
  %3850 = vmatpush1.bf16.msra.mxu0 %v3594
  %3851 = vmatprep.subr.bf16.mxu0 %v3598
  %3852 = vmatpush1.bf16.msra.mxu0 %v3597
  %3853 = vmatprep.subr.bf16.mxu0 %v3601
  %3854 = vmatpush1.bf16.msra.mxu0 %v3600
  %3855 = vmatprep.mubr.bf16.mxu0 %v2871
  %3856 = vmatmul.mubr.bf16.gmra.mrb[0].mxu0 %v2870
  %v3857 = vpop.f32.mrb[0].mxu0
  %v3858 = vadd.f32 %v3817, %v3857
  %v3859 = vpop.f32.mrb[0].mxu0
  %v3860 = vadd.f32 %v3819, %v3859
  %v3861 = vpop.f32.mrb[0].mxu0
  %v3862 = vpop.f32.mrb[0].mxu0
  %3863 = vdwg.mxu0
  %3864 = vmatprep.subr.bf16.mxu0 %v3604
  %3865 = vmatpush1.bf16.msra.mxu0 %v3603
  %3866 = vmatprep.subr.bf16.mxu0 %v3607
  %3867 = vmatpush1.bf16.msra.mxu0 %v3606
  %3868 = vmatprep.subr.bf16.mxu0 %v3610
  %3869 = vmatpush1.bf16.msra.mxu0 %v3609
  %3870 = vmatprep.subr.bf16.mxu0 %v3613
  %3871 = vmatpush1.bf16.msra.mxu0 %v3612
  %3872 = vmatprep.subr.bf16.mxu0 %v3616
  %3873 = vmatpush1.bf16.msra.mxu0 %v3615
  %3874 = vmatprep.subr.bf16.mxu0 %v3619
  %3875 = vmatpush1.bf16.msra.mxu0 %v3618
  %3876 = vmatprep.subr.bf16.mxu0 %v3622
  %3877 = vmatpush1.bf16.msra.mxu0 %v3621
  %3878 = vmatprep.subr.bf16.mxu0 %v3625
  %3879 = vmatpush1.bf16.msra.mxu0 %v3624
  %3880 = vmatprep.subr.bf16.mxu0 %v3628
  %3881 = vmatpush1.bf16.msra.mxu0 %v3627
  %3882 = vmatprep.subr.bf16.mxu0 %v3631
  %3883 = vmatpush1.bf16.msra.mxu0 %v3630
  %3884 = vmatprep.subr.bf16.mxu0 %v3634
  %3885 = vmatpush1.bf16.msra.mxu0 %v3633
  %3886 = vmatprep.subr.bf16.mxu0 %v3777
  %3887 = vmatpush1.bf16.msra.mxu0 %v3774
  %3888 = vmatprep.subr.bf16.mxu0 0
  %3889 = vmatpush1.bf16.msra.mxu0 0
  %3890 = vmatprep.subr.bf16.mxu0 0
  %3891 = vmatpush1.bf16.msra.mxu0 0
  %3892 = vmatprep.subr.bf16.mxu0 0
  %3893 = vmatpush1.bf16.msra.mxu0 0
  %3894 = vmatprep.subr.bf16.mxu0 0
  %3895 = vmatpush1.bf16.msra.mxu0 0
  %3896 = vmatprep.mubr.bf16.mxu0 %v3770
  %3897 = vmatmul.mubr.bf16.gmra.mrb[0].mxu0 %v2872
  %v3898 = vpop.f32.mrb[0].mxu0
  %v3899 = vadd.f32 %v3858, %v3898
  %v3900 = vpop.f32.mrb[0].mxu0
  %v3901 = vadd.f32 %v3860, %v3900
  %v3902 = vpop.f32.mrb[0].mxu0
  %v3903 = vpop.f32.mrb[0].mxu0
  %3904 = vdwg.mxu0
  %3905 = vmatprep.subr.bf16.mxu0 0
  %3906 = vmatpush1.bf16.msra.mxu0 %v3509
  %3907 = vmatprep.subr.bf16.mxu0 0
  %3908 = vmatpush1.bf16.msra.mxu0 %v3512
  %3909 = vmatprep.subr.bf16.mxu0 0
  %3910 = vmatpush1.bf16.msra.mxu0 %v3515
  %3911 = vmatprep.subr.bf16.mxu0 0
  %3912 = vmatpush1.bf16.msra.mxu0 %v3518
  %3913 = vmatprep.subr.bf16.mxu0 0
  %3914 = vmatpush1.bf16.msra.mxu0 %v3521
  %3915 = vmatprep.subr.bf16.mxu0 0
  %3916 = vmatpush1.bf16.msra.mxu0 %v3524
  %3917 = vmatprep.subr.bf16.mxu0 0
  %3918 = vmatpush1.bf16.msra.mxu0 %v3527
  %3919 = vmatprep.subr.bf16.mxu0 0
  %3920 = vmatpush1.bf16.msra.mxu0 %v3530
  %3921 = vmatprep.subr.bf16.mxu0 0
  %3922 = vmatpush1.bf16.msra.mxu0 %v3533
  %3923 = vmatprep.subr.bf16.mxu0 0
  %3924 = vmatpush1.bf16.msra.mxu0 %v3536
  %3925 = vmatprep.subr.bf16.mxu0 0
  %3926 = vmatpush1.bf16.msra.mxu0 %v3539
  %3927 = vmatprep.subr.bf16.mxu0 0
  %3928 = vmatpush1.bf16.msra.mxu0 %v3542
  %3929 = vmatprep.subr.bf16.mxu0 0
  %3930 = vmatpush1.bf16.msra.mxu0 %v3545
  %3931 = vmatprep.subr.bf16.mxu0 0
  %3932 = vmatpush1.bf16.msra.mxu0 %v3548
  %3933 = vmatprep.subr.bf16.mxu0 0
  %3934 = vmatpush1.bf16.msra.mxu0 %v3551
  %3935 = vmatprep.subr.bf16.mxu0 0
  %3936 = vmatpush1.bf16.msra.mxu0 %v3554
  %3937 = vmatprep.mubr.bf16.mxu0 %v2869
  %3938 = vmatmul.mubr.bf16.gmra.mrb[0].mxu0 %v2868
  %v3939 = vpop.f32.mrb[0].mxu0
  %v3940 = vadd.f32 %v3063, %v3939
  %v3941 = vpop.f32.mrb[0].mxu0
  %v3942 = vpop.f32.mrb[0].mxu0
  %v3943 = vpop.f32.mrb[0].mxu0
  %3944 = vdwg.mxu0
  %3945 = vmatprep.subr.bf16.mxu0 0
  %3946 = vmatpush1.bf16.msra.mxu0 %v3557
  %3947 = vmatprep.subr.bf16.mxu0 0
  %3948 = vmatpush1.bf16.msra.mxu0 %v3560
  %3949 = vmatprep.subr.bf16.mxu0 0
  %3950 = vmatpush1.bf16.msra.mxu0 %v3563
  %3951 = vmatprep.subr.bf16.mxu0 0
  %3952 = vmatpush1.bf16.msra.mxu0 %v3566
  %3953 = vmatprep.subr.bf16.mxu0 0
  %3954 = vmatpush1.bf16.msra.mxu0 %v3569
  %3955 = vmatprep.subr.bf16.mxu0 0
  %3956 = vmatpush1.bf16.msra.mxu0 %v3572
  %3957 = vmatprep.subr.bf16.mxu0 0
  %3958 = vmatpush1.bf16.msra.mxu0 %v3575
  %3959 = vmatprep.subr.bf16.mxu0 0
  %3960 = vmatpush1.bf16.msra.mxu0 %v3578
  %3961 = vmatprep.subr.bf16.mxu0 0
  %3962 = vmatpush1.bf16.msra.mxu0 %v3581
  %3963 = vmatprep.subr.bf16.mxu0 0
  %3964 = vmatpush1.bf16.msra.mxu0 %v3584
  %3965 = vmatprep.subr.bf16.mxu0 0
  %3966 = vmatpush1.bf16.msra.mxu0 %v3587
  %3967 = vmatprep.subr.bf16.mxu0 0
  %3968 = vmatpush1.bf16.msra.mxu0 %v3590
  %3969 = vmatprep.subr.bf16.mxu0 0
  %3970 = vmatpush1.bf16.msra.mxu0 %v3593
  %3971 = vmatprep.subr.bf16.mxu0 0
  %3972 = vmatpush1.bf16.msra.mxu0 %v3596
  %3973 = vmatprep.subr.bf16.mxu0 0
  %3974 = vmatpush1.bf16.msra.mxu0 %v3599
  %3975 = vmatprep.subr.bf16.mxu0 0
  %3976 = vmatpush1.bf16.msra.mxu0 %v3602
  %3977 = vmatprep.mubr.bf16.mxu0 %v2871
  %3978 = vmatmul.mubr.bf16.gmra.mrb[0].mxu0 %v2870
  %v3979 = vpop.f32.mrb[0].mxu0
  %v3980 = vadd.f32 %v3940, %v3979
  %v3981 = vpop.f32.mrb[0].mxu0
  %v3982 = vpop.f32.mrb[0].mxu0
  %v3983 = vpop.f32.mrb[0].mxu0
  %3984 = vdwg.mxu0
  %3985 = vmatprep.subr.bf16.mxu0 0
  %3986 = vmatpush1.bf16.msra.mxu0 %v3605
  %3987 = vmatprep.subr.bf16.mxu0 0
  %3988 = vmatpush1.bf16.msra.mxu0 %v3608
  %3989 = vmatprep.subr.bf16.mxu0 0
  %3990 = vmatpush1.bf16.msra.mxu0 %v3611
  %3991 = vmatprep.subr.bf16.mxu0 0
  %3992 = vmatpush1.bf16.msra.mxu0 %v3614
  %3993 = vmatprep.subr.bf16.mxu0 0
  %3994 = vmatpush1.bf16.msra.mxu0 %v3617
  %3995 = vmatprep.subr.bf16.mxu0 0
  %3996 = vmatpush1.bf16.msra.mxu0 %v3620
  %3997 = vmatprep.subr.bf16.mxu0 0
  %3998 = vmatpush1.bf16.msra.mxu0 %v3623
  %3999 = vmatprep.subr.bf16.mxu0 0
  %4000 = vmatpush1.bf16.msra.mxu0 %v3626
  %4001 = vmatprep.subr.bf16.mxu0 0
  %4002 = vmatpush1.bf16.msra.mxu0 %v3629
  %4003 = vmatprep.subr.bf16.mxu0 0
  %4004 = vmatpush1.bf16.msra.mxu0 %v3632
  %4005 = vmatprep.subr.bf16.mxu0 0
  %4006 = vmatpush1.bf16.msra.mxu0 %v3635
  %4007 = vmatprep.subr.bf16.mxu0 0
  %4008 = vmatpush1.bf16.msra.mxu0 %v3780
  %4009 = vmatprep.subr.bf16.mxu0 0
  %4010 = vmatpush1.bf16.msra.mxu0 0
  %4011 = vmatprep.subr.bf16.mxu0 0
  %4012 = vmatpush1.bf16.msra.mxu0 0
  %4013 = vmatprep.subr.bf16.mxu0 0
  %4014 = vmatpush1.bf16.msra.mxu0 0
  %4015 = vmatprep.subr.bf16.mxu0 0
  %4016 = vmatpush1.bf16.msra.mxu0 0
  %4017 = vmatprep.mubr.bf16.mxu0 %v3770
  %4018 = vmatmul.mubr.bf16.gmra.mrb[0].mxu0 %v2872
  %v4019 = vpop.f32.mrb[0].mxu0
  %v4020 = vadd.f32 %v3980, %v4019
  %v4021 = vpop.f32.mrb[0].mxu0
  %v4022 = vpop.f32.mrb[0].mxu0
  %v4023 = vpop.f32.mrb[0].mxu0
  %4024 = vdwg.mxu0
  %v4025 = vmax.f32 %v3899, 0.0
  %v4026 = vmax.f32 %v3901, 0.0
  %v4027 = vmax.f32 %v4020, 0.0
  %v4028 = vpack.c.bf16 %v4025, %v4025
  %v4029 = vpack.c.bf16 %v4026, %v4026
  %v4030 = vpack.c.bf16 %v4027, %v4027
  %v4031 = vld [vmem:[%s5] sm:$0xf]
  %v4032 = vld [vmem:[%s5 + $0x4] sm:$0xf]
  %v4033 = vld [vmem:[%s5 + $0x8] sm:$0xf]
  %v4034 = vld [vmem:[%s5 + $0xc] sm:$0xf]
  %v4035 = vld [vmem:[%s5 + $0x10] sm:$0xf]
  %v4036 = vld [vmem:[%s5 + $0x14] sm:$0xf]
  %v4037 = vld [vmem:[%s5 + $0x18] sm:$0xf]
  %v4038 = vld [vmem:[%s5 + $0x1c] sm:$0xf]
  %v4039 = vld [vmem:[%s5 + $0x20] sm:$0xf]
  %v4040 = vld [vmem:[%s5 + $0x24] sm:$0xf]
  %v4041 = vld [vmem:[%s5 + $0x28] sm:$0xf]
  %v4042 = vld [vmem:[%s5 + $0x2c] sm:$0xf]
  %v4043 = vld [vmem:[%s5 + $0x30] sm:$0xf]
  %v4044 = vld [vmem:[%s5 + $0x34] sm:$0xf]
  %v4045 = vld [vmem:[%s5 + $0x38] sm:$0xf]
  %v4046 = vld [vmem:[%s5 + $0x3c] sm:$0xf]
  %v4047 = vld [vmem:[%s5 + $0x40] sm:$0xf]
  %v4048 = vld [vmem:[%s5 + $0x44] sm:$0xf]
  %v4049 = vld [vmem:[%s5 + $0x48] sm:$0xf]
  %v4050 = vld [vmem:[%s5 + $0x4c] sm:$0xf]
  %v4051 = vld [vmem:[%s5 + $0x50] sm:$0xf]
  %v4052 = vld [vmem:[%s5 + $0x54] sm:$0xf]
  %v4053 = vld [vmem:[%s5 + $0x58] sm:$0xf]
  %v4054 = vld [vmem:[%s5 + $0x5c] sm:$0xf]
  %v4055 = vld [vmem:[%s5 + $0x60] sm:$0xf]
  %v4056 = vld [vmem:[%s5 + $0x64] sm:$0xf]
  %v4057 = vld [vmem:[%s5 + $0x68] sm:$0xf]
  %v4058 = vld [vmem:[%s5 + $0x6c] sm:$0xf]
  %v4059 = vld [vmem:[%s5 + $0x70] sm:$0xf]
  %v4060 = vld [vmem:[%s5 + $0x74] sm:$0xf]
  %v4061 = vld [vmem:[%s5 + $0x78] sm:$0xf]
  %v4062 = vld [vmem:[%s5 + $0x7c] sm:$0xf]
  %v4063 = vld [vmem:[%s5 + $0x80] sm:$0xf]
  %v4064 = vld [vmem:[%s5 + $0x84] sm:$0xf]
  %v4065 = vld [vmem:[%s5 + $0x88] sm:$0xf]
  %v4066 = vld [vmem:[%s5 + $0x8c] sm:$0xf]
  %v4067 = vld [vmem:[%s5 + $0x90] sm:$0xf]
  %v4068 = vld [vmem:[%s5 + $0x94] sm:$0xf]
  %v4069 = vld [vmem:[%s5 + $0x98] sm:$0xf]
  %v4070 = vld [vmem:[%s5 + $0x9c] sm:$0xf]
  %v4071 = vld [vmem:[%s5 + $0xa0] sm:$0xf]
  %v4072 = vld [vmem:[%s5 + $0xa4] sm:$0xf]
  %v4073 = vld [vmem:[%s5 + $0xa8] sm:$0xf]
  %v4074 = vld [vmem:[%s5 + $0xac] sm:$0x7]
  %v4075 = vld [vmem:[%s6] sm:$0x1]
  %v4077 = vlaneseq
  %v4078 = vshrl.u32 %v4077, 7
  %v4079 = vsub.s32 0, %v4078
  %v4080 = vrot.slane %v4075, %v4079
  %v4126 = vunpack.c.l.b16 %v4031
  %v4127 = vunpack.c.l.b16 %v4032
  %v4128 = vunpack.c.l.b16 %v4033
  %v4129 = vunpack.c.l.b16 %v4034
  %v4130 = vunpack.c.l.b16 %v4035
  %v4131 = vunpack.c.l.b16 %v4036
  %v4132 = vunpack.c.l.b16 %v4037
  %v4133 = vunpack.c.l.b16 %v4038
  %v4134 = vunpack.c.l.b16 %v4039
  %v4135 = vunpack.c.l.b16 %v4040
  %v4136 = vunpack.c.l.b16 %v4041
  %v4137 = vunpack.c.l.b16 %v4042
  %v4138 = vunpack.c.l.b16 %v4043
  %v4139 = vunpack.c.l.b16 %v4044
  %v4140 = vunpack.c.l.b16 %v4045
  %v4141 = vunpack.c.l.b16 %v4046
  %v4142 = vunpack.c.l.b16 %v4047
  %v4143 = vunpack.c.l.b16 %v4048
  %v4144 = vunpack.c.l.b16 %v4049
  %v4145 = vunpack.c.l.b16 %v4050
  %v4146 = vunpack.c.l.b16 %v4051
  %v4147 = vunpack.c.l.b16 %v4052
  %v4148 = vunpack.c.l.b16 %v4053
  %v4149 = vunpack.c.l.b16 %v4054
  %v4150 = vunpack.c.l.b16 %v4055
  %v4151 = vunpack.c.l.b16 %v4056
  %v4152 = vunpack.c.l.b16 %v4057
  %v4153 = vunpack.c.l.b16 %v4058
  %v4154 = vunpack.c.l.b16 %v4059
  %v4155 = vunpack.c.l.b16 %v4060
  %v4156 = vunpack.c.l.b16 %v4061
  %v4157 = vunpack.c.l.b16 %v4062
  %v4158 = vunpack.c.l.b16 %v4063
  %v4159 = vunpack.c.l.b16 %v4064
  %v4160 = vunpack.c.l.b16 %v4065
  %v4161 = vunpack.c.l.b16 %v4066
  %v4162 = vunpack.c.l.b16 %v4067
  %v4163 = vunpack.c.l.b16 %v4068
  %v4164 = vunpack.c.l.b16 %v4069
  %v4165 = vunpack.c.l.b16 %v4070
  %v4166 = vunpack.c.l.b16 %v4071
  %v4167 = vunpack.c.l.b16 %v4072
  %v4168 = vunpack.c.l.b16 %v4073
  %v4169 = vunpack.c.l.b16 %v4074
  %v4170 = vpack.c.b16 %v4127, %v4126
  %v4171 = vpack.c.b16 %v4129, %v4128
  %v4172 = vpack.c.b16 %v4131, %v4130
  %v4173 = vpack.c.b16 %v4133, %v4132
  %v4174 = vpack.c.b16 %v4135, %v4134
  %v4175 = vpack.c.b16 %v4137, %v4136
  %v4176 = vpack.c.b16 %v4139, %v4138
  %v4177 = vpack.c.b16 %v4141, %v4140
  %v4178 = vpack.c.b16 %v4143, %v4142
  %v4179 = vpack.c.b16 %v4145, %v4144
  %v4180 = vpack.c.b16 %v4147, %v4146
  %v4181 = vpack.c.b16 %v4149, %v4148
  %v4182 = vpack.c.b16 %v4151, %v4150
  %v4183 = vpack.c.b16 %v4153, %v4152
  %v4184 = vpack.c.b16 %v4155, %v4154
  %v4185 = vpack.c.b16 %v4157, %v4156
  %v4186 = vpack.c.b16 %v4159, %v4158
  %v4187 = vpack.c.b16 %v4161, %v4160
  %v4188 = vpack.c.b16 %v4163, %v4162
  %v4189 = vpack.c.b16 %v4165, %v4164
  %v4190 = vpack.c.b16 %v4167, %v4166
  %v4191 = vpack.c.b16 %v4169, %v4168
  %vm4213 = vcmask 769024
  %v4215 = vsel %vm4213, %v4030, 0
  %vm4217 = vcmask 1046528
  %v4219 = vsel %vm4217, %v4191, 0
  %4221 = vmatprep.subr.bf16.mxu0 0
  %4222 = vmatpush1.bf16.msra.mxu0 %v4170
  %4223 = vmatprep.subr.bf16.mxu0 0
  %4224 = vmatpush1.bf16.msra.mxu0 %v4171
  %4225 = vmatprep.subr.bf16.mxu0 0
  %4226 = vmatpush1.bf16.msra.mxu0 %v4172
  %4227 = vmatprep.subr.bf16.mxu0 0
  %4228 = vmatpush1.bf16.msra.mxu0 %v4173
  %4229 = vmatprep.subr.bf16.mxu0 0
  %4230 = vmatpush1.bf16.msra.mxu0 %v4174
  %4231 = vmatprep.subr.bf16.mxu0 0
  %4232 = vmatpush1.bf16.msra.mxu0 %v4175
  %4233 = vmatprep.subr.bf16.mxu0 0
  %4234 = vmatpush1.bf16.msra.mxu0 %v4176
  %4235 = vmatprep.subr.bf16.mxu0 0
  %4236 = vmatpush1.bf16.msra.mxu0 %v4177
  %4237 = vmatprep.subr.bf16.mxu0 0
  %4238 = vmatpush1.bf16.msra.mxu0 %v4178
  %4239 = vmatprep.subr.bf16.mxu0 0
  %4240 = vmatpush1.bf16.msra.mxu0 %v4179
  %4241 = vmatprep.subr.bf16.mxu0 0
  %4242 = vmatpush1.bf16.msra.mxu0 %v4180
  %4243 = vmatprep.subr.bf16.mxu0 0
  %4244 = vmatpush1.bf16.msra.mxu0 %v4181
  %4245 = vmatprep.subr.bf16.mxu0 0
  %4246 = vmatpush1.bf16.msra.mxu0 %v4182
  %4247 = vmatprep.subr.bf16.mxu0 0
  %4248 = vmatpush1.bf16.msra.mxu0 %v4183
  %4249 = vmatprep.subr.bf16.mxu0 0
  %4250 = vmatpush1.bf16.msra.mxu0 %v4184
  %4251 = vmatprep.subr.bf16.mxu0 0
  %4252 = vmatpush1.bf16.msra.mxu0 %v4185
  %4253 = vmatprep.mubr.bf16.mxu0 %v4029
  %4254 = vmatmul.mubr.bf16.gmra.mrb[0].mxu0 %v4028
  %v4255 = vpop.f32.mrb[0].mxu0
  %v4256 = vadd.f32 %v4080, %v4255
  %v4257 = vpop.f32.mrb[0].mxu0
  %v4258 = vpop.f32.mrb[0].mxu0
  %v4259 = vpop.f32.mrb[0].mxu0
  %4260 = vdwg.mxu0
  %4261 = vmatprep.subr.bf16.mxu0 0
  %4262 = vmatpush1.bf16.msra.mxu0 %v4186
  %4263 = vmatprep.subr.bf16.mxu0 0
  %4264 = vmatpush1.bf16.msra.mxu0 %v4187
  %4265 = vmatprep.subr.bf16.mxu0 0
  %4266 = vmatpush1.bf16.msra.mxu0 %v4188
  %4267 = vmatprep.subr.bf16.mxu0 0
  %4268 = vmatpush1.bf16.msra.mxu0 %v4189
  %4269 = vmatprep.subr.bf16.mxu0 0
  %4270 = vmatpush1.bf16.msra.mxu0 %v4190
  %4271 = vmatprep.subr.bf16.mxu0 0
  %4272 = vmatpush1.bf16.msra.mxu0 %v4219
  %4273 = vmatprep.subr.bf16.mxu0 0
  %4274 = vmatpush1.bf16.msra.mxu0 0
  %4275 = vmatprep.subr.bf16.mxu0 0
  %4276 = vmatpush1.bf16.msra.mxu0 0
  %4277 = vmatprep.subr.bf16.mxu0 0
  %4278 = vmatpush1.bf16.msra.mxu0 0
  %4279 = vmatprep.subr.bf16.mxu0 0
  %4280 = vmatpush1.bf16.msra.mxu0 0
  %4281 = vmatprep.subr.bf16.mxu0 0
  %4282 = vmatpush1.bf16.msra.mxu0 0
  %4283 = vmatprep.subr.bf16.mxu0 0
  %4284 = vmatpush1.bf16.msra.mxu0 0
  %4285 = vmatprep.subr.bf16.mxu0 0
  %4286 = vmatpush1.bf16.msra.mxu0 0
  %4287 = vmatprep.subr.bf16.mxu0 0
  %4288 = vmatpush1.bf16.msra.mxu0 0
  %4289 = vmatprep.subr.bf16.mxu0 0
  %4290 = vmatpush1.bf16.msra.mxu0 0
  %4291 = vmatprep.subr.bf16.mxu0 0
  %4292 = vmatpush1.bf16.msra.mxu0 0
  %4293 = vmatprep.mubr.bf16.mxu0 0
  %4294 = vmatmul.mubr.bf16.gmra.mrb[0].mxu0 %v4215
  %v4295 = vpop.f32.mrb[0].mxu0
  %v4296 = vadd.f32 %v4256, %v4295
  %v4297 = vpop.f32.mrb[0].mxu0
  %v4298 = vpop.f32.mrb[0].mxu0
  %v4299 = vpop.f32.mrb[0].mxu0
  %4300 = vdwg.mxu0
  %v4301 = vmax.f32 %v4296, 0.0
  %v4302 = vld [vmem:[%s7] sm:$0x1]
  %v4304 = vlaneseq
  %v4305 = vshrl.u32 %v4304, 7
  %v4306 = vsub.s32 0, %v4305
  %v4307 = vrot.slane %v4302, %v4306
  %v4309 = vmul.f32 %v4301, %v4307
  %vm4310 = vcmask 261120
  %v4311 = vsel %vm4310, %v4309, 0.0
  %4312 = vadd.xlane.f32.xlu0 %v4311
  %v4313 = vpop.xlane.xlu0 %4312
  %s4314 = sld [smem:[#allocation2]]
  %v4315 = vstv %s4314
  %v4316 = vadd.f32 %v4313, %v4315
  %vm4317 = vcmask 7168
  %4318 = vst.msk [vmem:[%s9] sm:$0xff] %vm4317, %v4316
  // Predicated region
  $region38: #{tpu_custom_call.1} parent=0 // pred_check
    _
  $region39: #{tpu_custom_call.1} parent=0 // pred_check_branch
    %4320 = sbr.rel (0) target = $region41
  $region40: #{tpu_custom_call.1} parent=0 // pred_region
    _
  $region41: #{tpu_custom_call.1} parent=0 // pred_fallthru
    _
  // Predicated region
  $region42: #{tpu_custom_call.1} parent=0 // pred_check
    _
  $region43: #{tpu_custom_call.1} parent=0 // pred_check_branch
    %4322 = sbr.rel (0) target = $region45
  $region44: #{tpu_custom_call.1} parent=0 // pred_region
    _
  $region45: #{tpu_custom_call.1} parent=0 // pred_fallthru
    _

</llo_original>
